<compile_context>
chip_gen: v6e
topology: v6e:2x2x1
jax: 0.10.0
libtpu: 0.0.40
codegen_flags: <defaults>
</compile_context>

<pallas_src>
import math

import jax
import jax.numpy as jnp
from jax.experimental import pallas as pl
from jax.experimental.pallas import tpu as pltpu  # noqa: F401  (TPU backend)

# ---- model hyper-parameters (small, consistent with the module) ----
B = 2            # batch
N = 8            # tokens per batch element
DIM = 32         # model dim (patch_dim)
DEPTH = 2
HEADS = 4
DIM_HEAD = 8     # inner_dim = HEADS * DIM_HEAD = 32
INNER = HEADS * DIM_HEAD
MLP_DIM = 64
LN_EPS = 1e-5
T = B * N        # total tokens processed in one kernel invocation
NEG_INF = -1e30


def _layernorm(x, gamma, beta):
    # PyTorch nn.LayerNorm semantics: biased variance over the last dim.
    mean = jnp.mean(x, axis=-1, keepdims=True)
    var = jnp.mean((x - mean) ** 2, axis=-1, keepdims=True)
    return (x - mean) * jax.lax.rsqrt(var + LN_EPS) * gamma + beta


def _gelu_exact(x):
    # nn.GELU() default = exact erf formulation.
    return 0.5 * x * (1.0 + jax.lax.erf(x * (1.0 / math.sqrt(2.0))))


def transformer_kernel(
    x_ref, bias_ref,
    ln1_g_ref, ln1_b_ref, w_qk_ref, w_vo_ref, b_o_ref,
    ln2_g_ref, ln2_b_ref, w1_ref, b1_ref, w2_ref, b2_ref,
    o_ref,
):
    """Whole DEPTH-layer transformer in one invocation; all operands VMEM-resident.

    x_ref:      (T, D)             flattened (B*N, D) tokens
    bias_ref:   (T, T)             block-diagonal additive attention bias
    w_qk_ref:   (DEPTH, H, D, D)   A_h = scale * W_q_h @ W_k_h^T  (folded)
    w_vo_ref:   (DEPTH, H, D, D)   C_h = W_v_h @ W_o_h            (folded)
    w1/w2_ref:  (DEPTH, D, MLP) / (DEPTH, MLP, D)
    """
    x = x_ref[...].astype(jnp.float32)        # (T, D)
    attn_bias = bias_ref[...][None]           # (1, T, T) — hoisted, reused every layer

    for l in range(DEPTH):                    # static unroll over layers
        # ---------------- PreNorm + multi-head attention (folded weights) ----------------
        xn = _layernorm(x, ln1_g_ref[l], ln1_b_ref[l])            # (T, D)
        xh = jnp.broadcast_to(xn[None], (HEADS, T, DIM))          # (H, T, D)

        # S_h = xn @ A_h @ xn^T   (scale already folded into A_h)
        xa = jnp.einsum('htd,hde->hte', xh, w_qk_ref[l],
                        preferred_element_type=jnp.float32)       # (H, T, D)
        s = jnp.einsum('hte,hme->htm', xa, xh,
                       preferred_element_type=jnp.float32)        # (H, T, T)
        s = s + attn_bias                                         # batch isolation
        s = s - jnp.max(s, axis=-1, keepdims=True)
        e = jnp.exp(s)
        attn = e * pl.reciprocal(jnp.sum(e, axis=-1, keepdims=True), approx=True)

        # out_h = attn_h @ xn @ C_h ; sum over heads == concat @ W_o
        ctx = jnp.einsum('htm,hmd->htd', attn, xh,
                         preferred_element_type=jnp.float32)      # (H, T, D)
        proj = jnp.einsum('htd,hde->hte', ctx, w_vo_ref[l],
                          preferred_element_type=jnp.float32)     # (H, T, D)
        x = x + jnp.sum(proj, axis=0) + b_o_ref[l]                # residual

        # ---------------- PreNorm + FeedForward ----------------
        xn2 = _layernorm(x, ln2_g_ref[l], ln2_b_ref[l])
        h1 = _gelu_exact(jnp.dot(xn2, w1_ref[l],
                                 preferred_element_type=jnp.float32) + b1_ref[l])
        x = x + jnp.dot(h1, w2_ref[l],
                        preferred_element_type=jnp.float32) + b2_ref[l]

    o_ref[...] = x.astype(o_ref.dtype)


def _cost_estimate():
    per_layer = (
        2 * HEADS * T * DIM * DIM            # xn @ A_h
        + 2 * HEADS * T * T * DIM            # (xn A_h) @ xn^T
        + 2 * HEADS * T * T * DIM            # attn @ xn
        + 2 * HEADS * T * DIM * DIM          # ctx @ C_h
        + 2 * 2 * T * DIM * MLP_DIM          # feed-forward
    )
    transcendentals = DEPTH * (HEADS * T * T + T * MLP_DIM + 4 * T)
    weight_bytes = 4 * DEPTH * (2 * HEADS * DIM * DIM
                                + 2 * DIM * MLP_DIM + 6 * DIM + MLP_DIM)
    bytes_accessed = weight_bytes + 4 * (2 * T * DIM + T * T)
    return pl.CostEstimate(flops=DEPTH * per_layer,
                           transcendentals=transcendentals,
                           bytes_accessed=bytes_accessed)


@jax.jit
def transformer_forward(x, params):
    """x: (B, N, D) float32; params: packed/stacked weights (see pack_params)."""
    Bx, Nx, Dx = x.shape
    x_flat = x.reshape(Bx * Nx, Dx).astype(jnp.float32)
    # Block-diagonal additive bias: tokens only attend within their own batch element.
    tok_batch = jnp.repeat(jnp.arange(Bx, dtype=jnp.int32), Nx)
    bias = jnp.where(tok_batch[:, None] == tok_batch[None, :],
                     0.0, NEG_INF).astype(jnp.float32)            # (T, T)
    weights = (params["ln1_g"], params["ln1_b"],
               params["w_qk"], params["w_vo"], params["b_o"],
               params["ln2_g"], params["ln2_b"],
               params["w1"], params["b1"], params["w2"], params["b2"])
    out_flat = pl.pallas_call(
        transformer_kernel,
        out_shape=jax.ShapeDtypeStruct((Bx * Nx, Dx), jnp.float32),
        cost_estimate=_cost_estimate(),
    )(x_flat, bias, *weights)
    return out_flat.reshape(Bx, Nx, Dx)


# ---------------- parameters (PyTorch-equivalent layout) ----------------
def init_params(key, depth=DEPTH, dim=DIM, heads=HEADS, dim_head=DIM_HEAD,
                mlp_dim=MLP_DIM):
    """Per-layer parameters; Linear weights stored (in, out) so y = x @ W + b."""
    inner = heads * dim_head
    layers = []
    for _ in range(depth):
        keys = jax.random.split(key, 6)
        key = keys[-1]
        layers.append({
            "ln1_g": jnp.ones((1, dim), jnp.float32),
            "ln1_b": jnp.zeros((1, dim), jnp.float32),
            "ln2_g": jnp.ones((1, dim), jnp.float32),
            "ln2_b": jnp.zeros((1, dim), jnp.float32),
            "w_qkv": 0.02 * jax.random.normal(keys[0], (dim, inner * 3), jnp.float32),
            "w_o":   0.02 * jax.random.normal(keys[1], (inner, dim), jnp.float32),
            "b_o":   jnp.zeros((1, dim), jnp.float32),
            "w1":    0.02 * jax.random.normal(keys[2], (dim, mlp_dim), jnp.float32),
            "b1":    0.01 * jax.random.normal(keys[3], (1, mlp_dim), jnp.float32),
            "w2":    0.02 * jax.random.normal(keys[4], (mlp_dim, dim), jnp.float32),
            "b2":    jnp.zeros((1, dim), jnp.float32),
        })
    return layers


def pack_params(layers):
    """Stack per-layer params along a depth axis and fold the attention
    projections:  A_h = scale * W_q_h @ W_k_h^T  and  C_h = W_v_h @ W_o_h,
    so the kernel only sees two (H, D, D) tensors per layer."""
    scale = DIM_HEAD ** (-0.5)

    def split_heads_in(w):       # (D, H*dh) -> (H, D, dh)
        return jnp.transpose(w.reshape(DIM, HEADS, DIM_HEAD), (1, 0, 2))

    keys = ("ln1_g", "ln1_b", "w_qk", "w_vo", "b_o",
            "ln2_g", "ln2_b", "w1", "b1", "w2", "b2")
    packed = {k: [] for k in keys}
    for p in layers:
        wq = split_heads_in(p["w_qkv"][:, 0 * INNER:1 * INNER])   # (H, D, dh)
        wk = split_heads_in(p["w_qkv"][:, 1 * INNER:2 * INNER])   # (H, D, dh)
        wv = split_heads_in(p["w_qkv"][:, 2 * INNER:3 * INNER])   # (H, D, dh)
        wo = p["w_o"].reshape(HEADS, DIM_HEAD, DIM)               # (H, dh, D)
        packed["w_qk"].append(scale * jnp.einsum('hde,hfe->hdf', wq, wk))  # (H, D, D)
        packed["w_vo"].append(jnp.einsum('hde,hef->hdf', wv, wo))          # (H, D, D)
        for k in ("ln1_g", "ln1_b", "b_o", "ln2_g", "ln2_b", "w1", "b1", "w2", "b2"):
            packed[k].append(p[k])
    return {k: jnp.stack(v, axis=0) for k, v in packed.items()}


# ---------------- pure-JAX reference (mirrors the PyTorch forward) ----------------
def transformer_reference(x, layers):
    scale = DIM_HEAD ** (-0.5)
    for p in layers:
        xn = _layernorm(x, p["ln1_g"], p["ln1_b"])
        qkv = xn @ p["w_qkv"]
        q, k, v = jnp.split(qkv, 3, axis=-1)

        def heads(t):
            return t.reshape(B, N, HEADS, DIM_HEAD).transpose(0, 2, 1, 3)

        q, k, v = heads(q), heads(k), heads(v)
        attn = jax.nn.softmax(jnp.einsum('bhnd,bhmd->bhnm', q, k) * scale, axis=-1)
        out = jnp.einsum('bhnm,bhmd->bhnd', attn, v)
        out = out.transpose(0, 2, 1, 3).reshape(B, N, INNER)
        x = x + out @ p["w_o"] + p["b_o"]
        xn2 = _layernorm(x, p["ln2_g"], p["ln2_b"])
        x = x + _gelu_exact(xn2 @ p["w1"] + p["b1"]) @ p["w2"] + p["b2"]
    return x


if __name__ == "__main__":
    key = jax.random.PRNGKey(0)
    kx, kp = jax.random.split(key)
    x = jax.random.normal(kx, (B, N, DIM), jnp.float32)

    layers = init_params(kp)
    params = pack_params(layers)

    out = transformer_forward(x, params)
    out = jax.block_until_ready(out)

    ref = transformer_reference(x, layers)
    assert out.shape == (B, N, DIM)
    assert bool(jnp.all(jnp.isfinite(out)))
    assert bool(jnp.allclose(out, ref, atol=2e-2, rtol=2e-2)), \
        float(jnp.max(jnp.abs(out - ref)))
    print("KERNEL_OK")
</pallas_src>

<mosaic_0001>
module attributes {stable_mosaic.version = 11 : i64} {
  func.func @transformer_kernel(%arg0: memref<16x32xf32, #tpu.memory_space<vmem>>, %arg1: memref<16x16xf32, #tpu.memory_space<vmem>>, %arg2: memref<2x1x32xf32, #tpu.memory_space<vmem>>, %arg3: memref<2x1x32xf32, #tpu.memory_space<vmem>>, %arg4: memref<2x4x32x32xf32, #tpu.memory_space<vmem>>, %arg5: memref<2x4x32x32xf32, #tpu.memory_space<vmem>>, %arg6: memref<2x1x32xf32, #tpu.memory_space<vmem>>, %arg7: memref<2x1x32xf32, #tpu.memory_space<vmem>>, %arg8: memref<2x1x32xf32, #tpu.memory_space<vmem>>, %arg9: memref<2x32x64xf32, #tpu.memory_space<vmem>>, %arg10: memref<2x1x64xf32, #tpu.memory_space<vmem>>, %arg11: memref<2x64x32xf32, #tpu.memory_space<vmem>>, %arg12: memref<2x1x32xf32, #tpu.memory_space<vmem>>, %arg13: memref<16x32xf32, #tpu.memory_space<vmem>>) attributes {dimension_semantics = [], scalar_prefetch = 0 : i64, scratch_operands = 0 : i64, tpu.core_type = #tpu.core_type<tc>} {
    %c0 = arith.constant 0 : index
    %c0_0 = arith.constant 0 : index
    %0 = vector.load %arg0[%c0, %c0_0] : memref<16x32xf32, #tpu.memory_space<vmem>>, vector<16x32xf32>
    %c0_1 = arith.constant 0 : index
    %c0_2 = arith.constant 0 : index
    %1 = vector.load %arg1[%c0_1, %c0_2] : memref<16x16xf32, #tpu.memory_space<vmem>>, vector<16x16xf32>
    %2 = vector.shape_cast %1 : vector<16x16xf32> to vector<1x16x16xf32>
    %c0_3 = arith.constant 0 : index
    %c0_4 = arith.constant 0 : index
    %c0_5 = arith.constant 0 : index
    %3 = vector.load %arg2[%c0_3, %c0_4, %c0_5] : memref<2x1x32xf32, #tpu.memory_space<vmem>>, vector<1x1x32xf32>
    %4 = vector.shape_cast %3 : vector<1x1x32xf32> to vector<1x32xf32>
    %c0_6 = arith.constant 0 : index
    %c0_7 = arith.constant 0 : index
    %c0_8 = arith.constant 0 : index
    %5 = vector.load %arg3[%c0_6, %c0_7, %c0_8] : memref<2x1x32xf32, #tpu.memory_space<vmem>>, vector<1x1x32xf32>
    %6 = vector.shape_cast %5 : vector<1x1x32xf32> to vector<1x32xf32>
    %cst = arith.constant dense<0.000000e+00> : vector<16xf32>
    %7 = vector.multi_reduction <add>, %0, %cst [1] : vector<16x32xf32> to vector<16xf32>
    %8 = vector.shape_cast %7 : vector<16xf32> to vector<16x1xf32>
    %cst_9 = arith.constant 3.200000e+01 : f32
    %9 = vector.broadcast %cst_9 : f32 to vector<16x1xf32>
    %10 = arith.divf %8, %9 : vector<16x1xf32>
    %11 = vector.broadcast %10 : vector<16x1xf32> to vector<16x32xf32>
    %12 = arith.subf %0, %11 : vector<16x32xf32>
    %13 = arith.mulf %12, %12 : vector<16x32xf32>
    %cst_10 = arith.constant dense<0.000000e+00> : vector<16xf32>
    %14 = vector.multi_reduction <add>, %13, %cst_10 [1] : vector<16x32xf32> to vector<16xf32>
    %15 = vector.shape_cast %14 : vector<16xf32> to vector<16x1xf32>
    %cst_11 = arith.constant 3.200000e+01 : f32
    %16 = vector.broadcast %cst_11 : f32 to vector<16x1xf32>
    %17 = arith.divf %15, %16 : vector<16x1xf32>
    %18 = vector.broadcast %10 : vector<16x1xf32> to vector<16x32xf32>
    %19 = arith.subf %0, %18 : vector<16x32xf32>
    %cst_12 = arith.constant 9.99999974E-6 : f32
    %20 = vector.broadcast %cst_12 : f32 to vector<16x1xf32>
    %21 = arith.addf %17, %20 : vector<16x1xf32>
    %22 = math.rsqrt %21 : vector<16x1xf32>
    %23 = vector.broadcast %22 : vector<16x1xf32> to vector<16x32xf32>
    %24 = arith.mulf %19, %23 : vector<16x32xf32>
    %25 = vector.broadcast %4 : vector<1x32xf32> to vector<16x32xf32>
    %26 = arith.mulf %24, %25 : vector<16x32xf32>
    %27 = vector.broadcast %6 : vector<1x32xf32> to vector<16x32xf32>
    %28 = arith.addf %26, %27 : vector<16x32xf32>
    %29 = vector.shape_cast %28 : vector<16x32xf32> to vector<1x16x32xf32>
    %30 = vector.shape_cast %29 : vector<1x16x32xf32> to vector<1x16x32xf32>
    %31 = vector.broadcast %30 : vector<1x16x32xf32> to vector<4x16x32xf32>
    %c0_13 = arith.constant 0 : index
    %c0_14 = arith.constant 0 : index
    %c0_15 = arith.constant 0 : index
    %c0_16 = arith.constant 0 : index
    %32 = vector.load %arg4[%c0_13, %c0_14, %c0_15, %c0_16] : memref<2x4x32x32xf32, #tpu.memory_space<vmem>>, vector<1x4x32x32xf32>
    %33 = vector.shape_cast %32 : vector<1x4x32x32xf32> to vector<4x32x32xf32>
    "tpu.trace_start"() <{level = 10 : i32, message = "htd,hde->hte"}> : () -> ()
    %cst_17 = arith.constant dense<0.000000e+00> : vector<4x16x32xf32>
    %34 = tpu.matmul %31, %33, %cst_17 {dimension_numbers = #tpu.dot_dimension_numbers<[2], [1], [1], [2], [0, 0, 0, 1, 1, 2], [0], [0]>} : vector<4x16x32xf32>, vector<4x32x32xf32>, vector<4x16x32xf32> -> vector<4x16x32xf32>
    "tpu.trace_stop"() : () -> ()
    "tpu.trace_start"() <{level = 10 : i32, message = "hte,hme->htm"}> : () -> ()
    %cst_18 = arith.constant dense<0.000000e+00> : vector<4x16x16xf32>
    %35 = tpu.matmul %34, %31, %cst_18 {dimension_numbers = #tpu.dot_dimension_numbers<[2], [2], [1], [1], [0, 0, 0, 1, 1, 1], [0], [0]>} : vector<4x16x32xf32>, vector<4x16x32xf32>, vector<4x16x16xf32> -> vector<4x16x16xf32>
    "tpu.trace_stop"() : () -> ()
    %36 = vector.broadcast %2 : vector<1x16x16xf32> to vector<4x16x16xf32>
    %37 = arith.addf %35, %36 : vector<4x16x16xf32>
    %cst_19 = arith.constant dense<0xFF800000> : vector<4x16xf32>
    %38 = vector.multi_reduction <maximumf>, %37, %cst_19 [2] : vector<4x16x16xf32> to vector<4x16xf32>
    %39 = vector.shape_cast %38 : vector<4x16xf32> to vector<4x16x1xf32>
    %40 = vector.broadcast %39 : vector<4x16x1xf32> to vector<4x16x16xf32>
    %41 = arith.subf %37, %40 : vector<4x16x16xf32>
    %42 = math.exp %41 : vector<4x16x16xf32>
    %cst_20 = arith.constant dense<0.000000e+00> : vector<4x16xf32>
    %43 = vector.multi_reduction <add>, %42, %cst_20 [2] : vector<4x16x16xf32> to vector<4x16xf32>
    %44 = vector.shape_cast %43 : vector<4x16xf32> to vector<4x16x1xf32>
    %45 = tpu.reciprocal %44 {approx = true} : vector<4x16x1xf32> -> vector<4x16x1xf32>
    %46 = vector.broadcast %45 : vector<4x16x1xf32> to vector<4x16x16xf32>
    %47 = arith.mulf %42, %46 : vector<4x16x16xf32>
    "tpu.trace_start"() <{level = 10 : i32, message = "htm,hmd->htd"}> : () -> ()
    %cst_21 = arith.constant dense<0.000000e+00> : vector<4x16x32xf32>
    %48 = tpu.matmul %47, %31, %cst_21 {dimension_numbers = #tpu.dot_dimension_numbers<[2], [1], [1], [2], [0, 0, 0, 1, 1, 2], [0], [0]>} : vector<4x16x16xf32>, vector<4x16x32xf32>, vector<4x16x32xf32> -> vector<4x16x32xf32>
    "tpu.trace_stop"() : () -> ()
    %c0_22 = arith.constant 0 : index
    %c0_23 = arith.constant 0 : index
    %c0_24 = arith.constant 0 : index
    %c0_25 = arith.constant 0 : index
    %49 = vector.load %arg5[%c0_22, %c0_23, %c0_24, %c0_25] : memref<2x4x32x32xf32, #tpu.memory_space<vmem>>, vector<1x4x32x32xf32>
    %50 = vector.shape_cast %49 : vector<1x4x32x32xf32> to vector<4x32x32xf32>
    "tpu.trace_start"() <{level = 10 : i32, message = "htd,hde->hte"}> : () -> ()
    %cst_26 = arith.constant dense<0.000000e+00> : vector<4x16x32xf32>
    %51 = tpu.matmul %48, %50, %cst_26 {dimension_numbers = #tpu.dot_dimension_numbers<[2], [1], [1], [2], [0, 0, 0, 1, 1, 2], [0], [0]>} : vector<4x16x32xf32>, vector<4x32x32xf32>, vector<4x16x32xf32> -> vector<4x16x32xf32>
    "tpu.trace_stop"() : () -> ()
    %cst_27 = arith.constant dense<0.000000e+00> : vector<16x32xf32>
    %52 = vector.multi_reduction <add>, %51, %cst_27 [0] : vector<4x16x32xf32> to vector<16x32xf32>
    %53 = arith.addf %0, %52 : vector<16x32xf32>
    %c0_28 = arith.constant 0 : index
    %c0_29 = arith.constant 0 : index
    %c0_30 = arith.constant 0 : index
    %54 = vector.load %arg6[%c0_28, %c0_29, %c0_30] : memref<2x1x32xf32, #tpu.memory_space<vmem>>, vector<1x1x32xf32>
    %55 = vector.shape_cast %54 : vector<1x1x32xf32> to vector<1x32xf32>
    %56 = vector.broadcast %55 : vector<1x32xf32> to vector<16x32xf32>
    %57 = arith.addf %53, %56 : vector<16x32xf32>
    %c0_31 = arith.constant 0 : index
    %c0_32 = arith.constant 0 : index
    %c0_33 = arith.constant 0 : index
    %58 = vector.load %arg7[%c0_31, %c0_32, %c0_33] : memref<2x1x32xf32, #tpu.memory_space<vmem>>, vector<1x1x32xf32>
    %59 = vector.shape_cast %58 : vector<1x1x32xf32> to vector<1x32xf32>
    %c0_34 = arith.constant 0 : index
    %c0_35 = arith.constant 0 : index
    %c0_36 = arith.constant 0 : index
    %60 = vector.load %arg8[%c0_34, %c0_35, %c0_36] : memref<2x1x32xf32, #tpu.memory_space<vmem>>, vector<1x1x32xf32>
    %61 = vector.shape_cast %60 : vector<1x1x32xf32> to vector<1x32xf32>
    %cst_37 = arith.constant dense<0.000000e+00> : vector<16xf32>
    %62 = vector.multi_reduction <add>, %57, %cst_37 [1] : vector<16x32xf32> to vector<16xf32>
    %63 = vector.shape_cast %62 : vector<16xf32> to vector<16x1xf32>
    %cst_38 = arith.constant 3.200000e+01 : f32
    %64 = vector.broadcast %cst_38 : f32 to vector<16x1xf32>
    %65 = arith.divf %63, %64 : vector<16x1xf32>
    %66 = vector.broadcast %65 : vector<16x1xf32> to vector<16x32xf32>
    %67 = arith.subf %57, %66 : vector<16x32xf32>
    %68 = arith.mulf %67, %67 : vector<16x32xf32>
    %cst_39 = arith.constant dense<0.000000e+00> : vector<16xf32>
    %69 = vector.multi_reduction <add>, %68, %cst_39 [1] : vector<16x32xf32> to vector<16xf32>
    %70 = vector.shape_cast %69 : vector<16xf32> to vector<16x1xf32>
    %cst_40 = arith.constant 3.200000e+01 : f32
    %71 = vector.broadcast %cst_40 : f32 to vector<16x1xf32>
    %72 = arith.divf %70, %71 : vector<16x1xf32>
    %73 = vector.broadcast %65 : vector<16x1xf32> to vector<16x32xf32>
    %74 = arith.subf %57, %73 : vector<16x32xf32>
    %cst_41 = arith.constant 9.99999974E-6 : f32
    %75 = vector.broadcast %cst_41 : f32 to vector<16x1xf32>
    %76 = arith.addf %72, %75 : vector<16x1xf32>
    %77 = math.rsqrt %76 : vector<16x1xf32>
    %78 = vector.broadcast %77 : vector<16x1xf32> to vector<16x32xf32>
    %79 = arith.mulf %74, %78 : vector<16x32xf32>
    %80 = vector.broadcast %59 : vector<1x32xf32> to vector<16x32xf32>
    %81 = arith.mulf %79, %80 : vector<16x32xf32>
    %82 = vector.broadcast %61 : vector<1x32xf32> to vector<16x32xf32>
    %83 = arith.addf %81, %82 : vector<16x32xf32>
    %c0_42 = arith.constant 0 : index
    %c0_43 = arith.constant 0 : index
    %c0_44 = arith.constant 0 : index
    %84 = vector.load %arg9[%c0_42, %c0_43, %c0_44] : memref<2x32x64xf32, #tpu.memory_space<vmem>>, vector<1x32x64xf32>
    %85 = vector.shape_cast %84 : vector<1x32x64xf32> to vector<32x64xf32>
    %cst_45 = arith.constant dense<0.000000e+00> : vector<16x64xf32>
    %86 = tpu.matmul %83, %85, %cst_45 {dimension_numbers = #tpu.dot_dimension_numbers<[1], [0], [0], [1], [0, 0, 1, 1], [], []>} : vector<16x32xf32>, vector<32x64xf32>, vector<16x64xf32> -> vector<16x64xf32>
    %c0_46 = arith.constant 0 : index
    %c0_47 = arith.constant 0 : index
    %c0_48 = arith.constant 0 : index
    %87 = vector.load %arg10[%c0_46, %c0_47, %c0_48] : memref<2x1x64xf32, #tpu.memory_space<vmem>>, vector<1x1x64xf32>
    %88 = vector.shape_cast %87 : vector<1x1x64xf32> to vector<1x64xf32>
    %89 = vector.broadcast %88 : vector<1x64xf32> to vector<16x64xf32>
    %90 = arith.addf %86, %89 : vector<16x64xf32>
    %cst_49 = arith.constant 5.000000e-01 : f32
    %91 = vector.broadcast %cst_49 : f32 to vector<16x64xf32>
    %92 = arith.mulf %91, %90 : vector<16x64xf32>
    %cst_50 = arith.constant 0.707106769 : f32
    %93 = vector.broadcast %cst_50 : f32 to vector<16x64xf32>
    %94 = arith.mulf %90, %93 : vector<16x64xf32>
    %95 = math.erf %94 : vector<16x64xf32>
    %cst_51 = arith.constant 1.000000e+00 : f32
    %96 = vector.broadcast %cst_51 : f32 to vector<16x64xf32>
    %97 = arith.addf %96, %95 : vector<16x64xf32>
    %98 = arith.mulf %92, %97 : vector<16x64xf32>
    %c0_52 = arith.constant 0 : index
    %c0_53 = arith.constant 0 : index
    %c0_54 = arith.constant 0 : index
    %99 = vector.load %arg11[%c0_52, %c0_53, %c0_54] : memref<2x64x32xf32, #tpu.memory_space<vmem>>, vector<1x64x32xf32>
    %100 = vector.shape_cast %99 : vector<1x64x32xf32> to vector<64x32xf32>
    %cst_55 = arith.constant dense<0.000000e+00> : vector<16x32xf32>
    %101 = tpu.matmul %98, %100, %cst_55 {dimension_numbers = #tpu.dot_dimension_numbers<[1], [0], [0], [1], [0, 0, 1, 1], [], []>} : vector<16x64xf32>, vector<64x32xf32>, vector<16x32xf32> -> vector<16x32xf32>
    %102 = arith.addf %57, %101 : vector<16x32xf32>
    %c0_56 = arith.constant 0 : index
    %c0_57 = arith.constant 0 : index
    %c0_58 = arith.constant 0 : index
    %103 = vector.load %arg12[%c0_56, %c0_57, %c0_58] : memref<2x1x32xf32, #tpu.memory_space<vmem>>, vector<1x1x32xf32>
    %104 = vector.shape_cast %103 : vector<1x1x32xf32> to vector<1x32xf32>
    %105 = vector.broadcast %104 : vector<1x32xf32> to vector<16x32xf32>
    %106 = arith.addf %102, %105 : vector<16x32xf32>
    %c1 = arith.constant 1 : index
    %c0_59 = arith.constant 0 : index
    %c0_60 = arith.constant 0 : index
    %107 = vector.load %arg2[%c1, %c0_59, %c0_60] : memref<2x1x32xf32, #tpu.memory_space<vmem>>, vector<1x1x32xf32>
    %108 = vector.shape_cast %107 : vector<1x1x32xf32> to vector<1x32xf32>
    %c1_61 = arith.constant 1 : index
    %c0_62 = arith.constant 0 : index
    %c0_63 = arith.constant 0 : index
    %109 = vector.load %arg3[%c1_61, %c0_62, %c0_63] : memref<2x1x32xf32, #tpu.memory_space<vmem>>, vector<1x1x32xf32>
    %110 = vector.shape_cast %109 : vector<1x1x32xf32> to vector<1x32xf32>
    %cst_64 = arith.constant dense<0.000000e+00> : vector<16xf32>
    %111 = vector.multi_reduction <add>, %106, %cst_64 [1] : vector<16x32xf32> to vector<16xf32>
    %112 = vector.shape_cast %111 : vector<16xf32> to vector<16x1xf32>
    %cst_65 = arith.constant 3.200000e+01 : f32
    %113 = vector.broadcast %cst_65 : f32 to vector<16x1xf32>
    %114 = arith.divf %112, %113 : vector<16x1xf32>
    %115 = vector.broadcast %114 : vector<16x1xf32> to vector<16x32xf32>
    %116 = arith.subf %106, %115 : vector<16x32xf32>
    %117 = arith.mulf %116, %116 : vector<16x32xf32>
    %cst_66 = arith.constant dense<0.000000e+00> : vector<16xf32>
    %118 = vector.multi_reduction <add>, %117, %cst_66 [1] : vector<16x32xf32> to vector<16xf32>
    %119 = vector.shape_cast %118 : vector<16xf32> to vector<16x1xf32>
    %cst_67 = arith.constant 3.200000e+01 : f32
    %120 = vector.broadcast %cst_67 : f32 to vector<16x1xf32>
    %121 = arith.divf %119, %120 : vector<16x1xf32>
    %122 = vector.broadcast %114 : vector<16x1xf32> to vector<16x32xf32>
    %123 = arith.subf %106, %122 : vector<16x32xf32>
    %cst_68 = arith.constant 9.99999974E-6 : f32
    %124 = vector.broadcast %cst_68 : f32 to vector<16x1xf32>
    %125 = arith.addf %121, %124 : vector<16x1xf32>
    %126 = math.rsqrt %125 : vector<16x1xf32>
    %127 = vector.broadcast %126 : vector<16x1xf32> to vector<16x32xf32>
    %128 = arith.mulf %123, %127 : vector<16x32xf32>
    %129 = vector.broadcast %108 : vector<1x32xf32> to vector<16x32xf32>
    %130 = arith.mulf %128, %129 : vector<16x32xf32>
    %131 = vector.broadcast %110 : vector<1x32xf32> to vector<16x32xf32>
    %132 = arith.addf %130, %131 : vector<16x32xf32>
    %133 = vector.shape_cast %132 : vector<16x32xf32> to vector<1x16x32xf32>
    %134 = vector.shape_cast %133 : vector<1x16x32xf32> to vector<1x16x32xf32>
    %135 = vector.broadcast %134 : vector<1x16x32xf32> to vector<4x16x32xf32>
    %c1_69 = arith.constant 1 : index
    %c0_70 = arith.constant 0 : index
    %c0_71 = arith.constant 0 : index
    %c0_72 = arith.constant 0 : index
    %136 = vector.load %arg4[%c1_69, %c0_70, %c0_71, %c0_72] : memref<2x4x32x32xf32, #tpu.memory_space<vmem>>, vector<1x4x32x32xf32>
    %137 = vector.shape_cast %136 : vector<1x4x32x32xf32> to vector<4x32x32xf32>
    "tpu.trace_start"() <{level = 10 : i32, message = "htd,hde->hte"}> : () -> ()
    %cst_73 = arith.constant dense<0.000000e+00> : vector<4x16x32xf32>
    %138 = tpu.matmul %135, %137, %cst_73 {dimension_numbers = #tpu.dot_dimension_numbers<[2], [1], [1], [2], [0, 0, 0, 1, 1, 2], [0], [0]>} : vector<4x16x32xf32>, vector<4x32x32xf32>, vector<4x16x32xf32> -> vector<4x16x32xf32>
    "tpu.trace_stop"() : () -> ()
    "tpu.trace_start"() <{level = 10 : i32, message = "hte,hme->htm"}> : () -> ()
    %cst_74 = arith.constant dense<0.000000e+00> : vector<4x16x16xf32>
    %139 = tpu.matmul %138, %135, %cst_74 {dimension_numbers = #tpu.dot_dimension_numbers<[2], [2], [1], [1], [0, 0, 0, 1, 1, 1], [0], [0]>} : vector<4x16x32xf32>, vector<4x16x32xf32>, vector<4x16x16xf32> -> vector<4x16x16xf32>
    "tpu.trace_stop"() : () -> ()
    %140 = vector.broadcast %2 : vector<1x16x16xf32> to vector<4x16x16xf32>
    %141 = arith.addf %139, %140 : vector<4x16x16xf32>
    %cst_75 = arith.constant dense<0xFF800000> : vector<4x16xf32>
    %142 = vector.multi_reduction <maximumf>, %141, %cst_75 [2] : vector<4x16x16xf32> to vector<4x16xf32>
    %143 = vector.shape_cast %142 : vector<4x16xf32> to vector<4x16x1xf32>
    %144 = vector.broadcast %143 : vector<4x16x1xf32> to vector<4x16x16xf32>
    %145 = arith.subf %141, %144 : vector<4x16x16xf32>
    %146 = math.exp %145 : vector<4x16x16xf32>
    %cst_76 = arith.constant dense<0.000000e+00> : vector<4x16xf32>
    %147 = vector.multi_reduction <add>, %146, %cst_76 [2] : vector<4x16x16xf32> to vector<4x16xf32>
    %148 = vector.shape_cast %147 : vector<4x16xf32> to vector<4x16x1xf32>
    %149 = tpu.reciprocal %148 {approx = true} : vector<4x16x1xf32> -> vector<4x16x1xf32>
    %150 = vector.broadcast %149 : vector<4x16x1xf32> to vector<4x16x16xf32>
    %151 = arith.mulf %146, %150 : vector<4x16x16xf32>
    "tpu.trace_start"() <{level = 10 : i32, message = "htm,hmd->htd"}> : () -> ()
    %cst_77 = arith.constant dense<0.000000e+00> : vector<4x16x32xf32>
    %152 = tpu.matmul %151, %135, %cst_77 {dimension_numbers = #tpu.dot_dimension_numbers<[2], [1], [1], [2], [0, 0, 0, 1, 1, 2], [0], [0]>} : vector<4x16x16xf32>, vector<4x16x32xf32>, vector<4x16x32xf32> -> vector<4x16x32xf32>
    "tpu.trace_stop"() : () -> ()
    %c1_78 = arith.constant 1 : index
    %c0_79 = arith.constant 0 : index
    %c0_80 = arith.constant 0 : index
    %c0_81 = arith.constant 0 : index
    %153 = vector.load %arg5[%c1_78, %c0_79, %c0_80, %c0_81] : memref<2x4x32x32xf32, #tpu.memory_space<vmem>>, vector<1x4x32x32xf32>
    %154 = vector.shape_cast %153 : vector<1x4x32x32xf32> to vector<4x32x32xf32>
    "tpu.trace_start"() <{level = 10 : i32, message = "htd,hde->hte"}> : () -> ()
    %cst_82 = arith.constant dense<0.000000e+00> : vector<4x16x32xf32>
    %155 = tpu.matmul %152, %154, %cst_82 {dimension_numbers = #tpu.dot_dimension_numbers<[2], [1], [1], [2], [0, 0, 0, 1, 1, 2], [0], [0]>} : vector<4x16x32xf32>, vector<4x32x32xf32>, vector<4x16x32xf32> -> vector<4x16x32xf32>
    "tpu.trace_stop"() : () -> ()
    %cst_83 = arith.constant dense<0.000000e+00> : vector<16x32xf32>
    %156 = vector.multi_reduction <add>, %155, %cst_83 [0] : vector<4x16x32xf32> to vector<16x32xf32>
    %157 = arith.addf %106, %156 : vector<16x32xf32>
    %c1_84 = arith.constant 1 : index
    %c0_85 = arith.constant 0 : index
    %c0_86 = arith.constant 0 : index
    %158 = vector.load %arg6[%c1_84, %c0_85, %c0_86] : memref<2x1x32xf32, #tpu.memory_space<vmem>>, vector<1x1x32xf32>
    %159 = vector.shape_cast %158 : vector<1x1x32xf32> to vector<1x32xf32>
    %160 = vector.broadcast %159 : vector<1x32xf32> to vector<16x32xf32>
    %161 = arith.addf %157, %160 : vector<16x32xf32>
    %c1_87 = arith.constant 1 : index
    %c0_88 = arith.constant 0 : index
    %c0_89 = arith.constant 0 : index
    %162 = vector.load %arg7[%c1_87, %c0_88, %c0_89] : memref<2x1x32xf32, #tpu.memory_space<vmem>>, vector<1x1x32xf32>
    %163 = vector.shape_cast %162 : vector<1x1x32xf32> to vector<1x32xf32>
    %c1_90 = arith.constant 1 : index
    %c0_91 = arith.constant 0 : index
    %c0_92 = arith.constant 0 : index
    %164 = vector.load %arg8[%c1_90, %c0_91, %c0_92] : memref<2x1x32xf32, #tpu.memory_space<vmem>>, vector<1x1x32xf32>
    %165 = vector.shape_cast %164 : vector<1x1x32xf32> to vector<1x32xf32>
    %cst_93 = arith.constant dense<0.000000e+00> : vector<16xf32>
    %166 = vector.multi_reduction <add>, %161, %cst_93 [1] : vector<16x32xf32> to vector<16xf32>
    %167 = vector.shape_cast %166 : vector<16xf32> to vector<16x1xf32>
    %cst_94 = arith.constant 3.200000e+01 : f32
    %168 = vector.broadcast %cst_94 : f32 to vector<16x1xf32>
    %169 = arith.divf %167, %168 : vector<16x1xf32>
    %170 = vector.broadcast %169 : vector<16x1xf32> to vector<16x32xf32>
    %171 = arith.subf %161, %170 : vector<16x32xf32>
    %172 = arith.mulf %171, %171 : vector<16x32xf32>
    %cst_95 = arith.constant dense<0.000000e+00> : vector<16xf32>
    %173 = vector.multi_reduction <add>, %172, %cst_95 [1] : vector<16x32xf32> to vector<16xf32>
    %174 = vector.shape_cast %173 : vector<16xf32> to vector<16x1xf32>
    %cst_96 = arith.constant 3.200000e+01 : f32
    %175 = vector.broadcast %cst_96 : f32 to vector<16x1xf32>
    %176 = arith.divf %174, %175 : vector<16x1xf32>
    %177 = vector.broadcast %169 : vector<16x1xf32> to vector<16x32xf32>
    %178 = arith.subf %161, %177 : vector<16x32xf32>
    %cst_97 = arith.constant 9.99999974E-6 : f32
    %179 = vector.broadcast %cst_97 : f32 to vector<16x1xf32>
    %180 = arith.addf %176, %179 : vector<16x1xf32>
    %181 = math.rsqrt %180 : vector<16x1xf32>
    %182 = vector.broadcast %181 : vector<16x1xf32> to vector<16x32xf32>
    %183 = arith.mulf %178, %182 : vector<16x32xf32>
    %184 = vector.broadcast %163 : vector<1x32xf32> to vector<16x32xf32>
    %185 = arith.mulf %183, %184 : vector<16x32xf32>
    %186 = vector.broadcast %165 : vector<1x32xf32> to vector<16x32xf32>
    %187 = arith.addf %185, %186 : vector<16x32xf32>
    %c1_98 = arith.constant 1 : index
    %c0_99 = arith.constant 0 : index
    %c0_100 = arith.constant 0 : index
    %188 = vector.load %arg9[%c1_98, %c0_99, %c0_100] : memref<2x32x64xf32, #tpu.memory_space<vmem>>, vector<1x32x64xf32>
    %189 = vector.shape_cast %188 : vector<1x32x64xf32> to vector<32x64xf32>
    %cst_101 = arith.constant dense<0.000000e+00> : vector<16x64xf32>
    %190 = tpu.matmul %187, %189, %cst_101 {dimension_numbers = #tpu.dot_dimension_numbers<[1], [0], [0], [1], [0, 0, 1, 1], [], []>} : vector<16x32xf32>, vector<32x64xf32>, vector<16x64xf32> -> vector<16x64xf32>
    %c1_102 = arith.constant 1 : index
    %c0_103 = arith.constant 0 : index
    %c0_104 = arith.constant 0 : index
    %191 = vector.load %arg10[%c1_102, %c0_103, %c0_104] : memref<2x1x64xf32, #tpu.memory_space<vmem>>, vector<1x1x64xf32>
    %192 = vector.shape_cast %191 : vector<1x1x64xf32> to vector<1x64xf32>
    %193 = vector.broadcast %192 : vector<1x64xf32> to vector<16x64xf32>
    %194 = arith.addf %190, %193 : vector<16x64xf32>
    %cst_105 = arith.constant 5.000000e-01 : f32
    %195 = vector.broadcast %cst_105 : f32 to vector<16x64xf32>
    %196 = arith.mulf %195, %194 : vector<16x64xf32>
    %cst_106 = arith.constant 0.707106769 : f32
    %197 = vector.broadcast %cst_106 : f32 to vector<16x64xf32>
    %198 = arith.mulf %194, %197 : vector<16x64xf32>
    %199 = math.erf %198 : vector<16x64xf32>
    %cst_107 = arith.constant 1.000000e+00 : f32
    %200 = vector.broadcast %cst_107 : f32 to vector<16x64xf32>
    %201 = arith.addf %200, %199 : vector<16x64xf32>
    %202 = arith.mulf %196, %201 : vector<16x64xf32>
    %c1_108 = arith.constant 1 : index
    %c0_109 = arith.constant 0 : index
    %c0_110 = arith.constant 0 : index
    %203 = vector.load %arg11[%c1_108, %c0_109, %c0_110] : memref<2x64x32xf32, #tpu.memory_space<vmem>>, vector<1x64x32xf32>
    %204 = vector.shape_cast %203 : vector<1x64x32xf32> to vector<64x32xf32>
    %cst_111 = arith.constant dense<0.000000e+00> : vector<16x32xf32>
    %205 = tpu.matmul %202, %204, %cst_111 {dimension_numbers = #tpu.dot_dimension_numbers<[1], [0], [0], [1], [0, 0, 1, 1], [], []>} : vector<16x64xf32>, vector<64x32xf32>, vector<16x32xf32> -> vector<16x32xf32>
    %206 = arith.addf %161, %205 : vector<16x32xf32>
    %c1_112 = arith.constant 1 : index
    %c0_113 = arith.constant 0 : index
    %c0_114 = arith.constant 0 : index
    %207 = vector.load %arg12[%c1_112, %c0_113, %c0_114] : memref<2x1x32xf32, #tpu.memory_space<vmem>>, vector<1x1x32xf32>
    %208 = vector.shape_cast %207 : vector<1x1x32xf32> to vector<1x32xf32>
    %209 = vector.broadcast %208 : vector<1x32xf32> to vector<16x32xf32>
    %210 = arith.addf %206, %209 : vector<16x32xf32>
    %c0_115 = arith.constant 0 : index
    %c0_116 = arith.constant 0 : index
    %211 = vector.load %arg13[%c0_115, %c0_116] : memref<16x32xf32, #tpu.memory_space<vmem>>, vector<16x32xf32>
    tpu.vector_store %arg13[%c0_115, %c0_116], %210 {strides = array<i32>} : memref<16x32xf32, #tpu.memory_space<vmem>>, vector<16x32xf32>,
    return
  }
}

</mosaic_0001>

<llo_original>
// kernel: eq.8
$region0: #{eq.8}
  %s0 = inlined_call_operand.vmem [shape: s32[2,8], index: 0, kind: input, shape index: {}]
  %s1 = inlined_call_operand.vmem [shape: s32[16], index: 1, kind: output, shape index: {}]
  $region1: #{eq.8} parent=0
    #allocation0 [shape = 'u8[4096]{0}', space=vmem, size = 0x1000, scoped, tag = 'scoped mem for output reshape']
    #allocation1 [shape = 'u8[4096]{0}', space=vmem, size = 0x1000, scoped, tag = 'scoped mem for input reshape']
    %s3 = sshll.u32 1, 2
    %s4 = ssub.s32 %s3, 1
    %v5 = vld [vmem:[%s0] sm:%s4]
    %6 = vst [vmem:[#allocation1] sm:%s4] %v5
    %v7 = vld [vmem:[#allocation1] sm:$0x1]
    %vm8 = vcmask 64512
    %9 = vst.msk [vmem:[#allocation0] sm:$0x1] %vm8, %v7
    %s10 = scalar_lea.vmem [#allocation1], 1
    %v11 = vld [vmem:[%s10] sm:$0x1]
    %12 = vrot.lane.b32.xlu0 %v11, 8
    %v13 = vpop.permute.xlu0 %12
    %vm14 = vcmask 130112
    %15 = vst.msk [vmem:[#allocation0] sm:$0x1] %vm14, %v13
    %s17 = sshll.u32 1, 1
    %s18 = ssub.s32 %s17, 1
    %v20 = vld [vmem:[#allocation0] sm:%s18]
    %s21 = sshll.u32 1, 1
    %s22 = ssub.s32 %s21, 1
    %23 = vst [vmem:[%s1] sm:%s22] %v20

// kernel: transformer_forward.1
$region0: #{transformer_forward.1}
  #allocation0 [shape = 'u32[]', space=smem, size = 0x4, offset = 0x4, fixed_abs, tag = 'smem constant byte address 0x4 - core index']
  #allocation1 [shape = 'u32[144,128]{1,0:T(1,128)}', space=vmem, size = 0x12000, scoped, tag = 'internal scratch']
  %s0 = inlined_call_operand.vmem [shape: f32[16,32], index: 0, kind: input, shape index: {}]
  %s1 = inlined_call_operand.vmem [shape: f32[16,16], index: 1, kind: input, shape index: {}]
  %s2 = inlined_call_operand.vmem [shape: f32[2,1,32], index: 2, kind: input, shape index: {}]
  %s3 = inlined_call_operand.vmem [shape: f32[2,1,32], index: 3, kind: input, shape index: {}]
  %s4 = inlined_call_operand.hbm [shape: f32[2,4,32,32], index: 4, kind: input, shape index: {}]
  %s5 = inlined_call_operand.hbm [shape: f32[2,4,32,32], index: 5, kind: input, shape index: {}]
  %s6 = inlined_call_operand.vmem [shape: f32[2,1,32], index: 6, kind: input, shape index: {}]
  %s7 = inlined_call_operand.vmem [shape: f32[2,1,32], index: 7, kind: input, shape index: {}]
  %s8 = inlined_call_operand.vmem [shape: f32[2,1,32], index: 8, kind: input, shape index: {}]
  %s9 = inlined_call_operand.vmem [shape: f32[2,32,64], index: 9, kind: input, shape index: {}]
  %s10 = inlined_call_operand.vmem [shape: f32[2,1,64], index: 10, kind: input, shape index: {}]
  %s11 = inlined_call_operand.vmem [shape: f32[2,64,32], index: 11, kind: input, shape index: {}]
  %s12 = inlined_call_operand.vmem [shape: f32[2,1,32], index: 12, kind: input, shape index: {}]
  %s13 = inlined_call_operand.hbm [shape: f32[16,32], index: 13, kind: output, shape index: {}]
  %s14 = sld [smem:[#allocation0]]
  $region70: #{transformer_forward.1} parent=0
    _
  %s16 = ssub.s32 1, %s14
  %s17 = scalar_select 0, %s16, %s14
  $region1: #{transformer_forward.1} parent=0
    #allocation2 [shape = 'u8[131072]{0}', space=vmem, size = 0x20000, scoped, tag = 'input window, operand 4, single buffered']
    #allocation3 [shape = 's32[1]{0}', space=sflag, size = 0x4, scoped, tag = 'scoped memory for transformer_forward.1']
    #allocation4 [shape = 's32[1]{0}', space=sflag, size = 0x4, scoped, tag = 'scoped memory for transformer_forward.1']
    #allocation5 [shape = 'u8[131072]{0}', space=vmem, size = 0x20000, scoped, tag = 'input window, operand 5, single buffered']
    #allocation6 [shape = 's32[1]{0}', space=sflag, size = 0x4, scoped, tag = 'scoped memory for transformer_forward.1']
    #allocation7 [shape = 'u8[8192]{0}', space=vmem, size = 0x2000, scoped, tag = 'output window, operand 0, single buffered']
    %18 = vsyncpa [#allocation3], 0
    %19 = vsyncpa [#allocation6], 0
    %20 = vsyncpa [#allocation4], 0
    // Predicated region
    $region2: #{transformer_forward.1} parent=1 // pred_check
      _
    $region3: #{transformer_forward.1} parent=1 // pred_check_branch
      %22 = sbr.rel (0) target = $region5
    $region4: #{transformer_forward.1} parent=1 // pred_region
      _
    $region5: #{transformer_forward.1} parent=1 // pred_fallthru
      _
    // Predicated region
    $region6: #{transformer_forward.1} parent=1 // pred_check
      _
    $region7: #{transformer_forward.1} parent=1 // pred_check_branch
      %24 = sbr.rel (0) target = $region9
    $region8: #{transformer_forward.1} parent=1 // pred_region
      _
    $region9: #{transformer_forward.1} parent=1 // pred_fallthru
      _
    // Predicated region
    $region10: #{transformer_forward.1} parent=1 // pred_check
      _
    $region11: #{transformer_forward.1} parent=1 // pred_check_branch
      %26 = sbr.rel (0) target = $region13
    $region12: #{transformer_forward.1} parent=1 // pred_region
      _
    $region13: #{transformer_forward.1} parent=1 // pred_fallthru
      _
    // Predicated region
    $region14: #{transformer_forward.1} parent=1 // pred_check
      _
    $region15: #{transformer_forward.1} parent=1 // pred_check_branch
      %28 = sbr.rel (0) target = $region17
    $region16: #{transformer_forward.1} parent=1 // pred_region
      _
    $region17: #{transformer_forward.1} parent=1 // pred_fallthru
      _
    // Predicated region
    $region18: #{transformer_forward.1} parent=1 // pred_check
      _
    $region19: #{transformer_forward.1} parent=1 // pred_check_branch
      %30 = sbr.rel (0) target = $region21
    $region20: #{transformer_forward.1} parent=1 // pred_region
      %s32 = ssub.s32 4096, 4096
      %33 = vsyncadd [#allocation3], %s32
      %s34 = sshll.u32 [#allocation2], 4
      %s35 = int_to_ptr.vmem [resolvable:$true] %s34
      %40 = dma.hbm_to_vmem [thread:$0]  %s4, 4096, %s35, [#allocation3], 128, 128, 8
    $region21: #{transformer_forward.1} parent=1 // pred_fallthru
      _
    // Predicated region
    $region22: #{transformer_forward.1} parent=1 // pred_check
      _
    $region23: #{transformer_forward.1} parent=1 // pred_check_branch
      %42 = sbr.rel (0) target = $region25
    $region24: #{transformer_forward.1} parent=1 // pred_region
      %s44 = ssub.s32 4096, 4096
      %45 = vsyncadd [#allocation6], %s44
      %s46 = sshll.u32 [#allocation5], 4
      %s47 = int_to_ptr.vmem [resolvable:$true] %s46
      %52 = dma.hbm_to_vmem [thread:$0]  %s5, 4096, %s47, [#allocation6], 128, 128, 8
    $region25: #{transformer_forward.1} parent=1 // pred_fallthru
      _
    // Predicated region
    $region26: #{transformer_forward.1} parent=1 // pred_check
      _
    $region27: #{transformer_forward.1} parent=1 // pred_check_branch
      %54 = sbr.rel (0) target = $region29
    $region28: #{transformer_forward.1} parent=1 // pred_region
      _
    $region29: #{transformer_forward.1} parent=1 // pred_fallthru
      _
    // Predicated region
    $region30: #{transformer_forward.1} parent=1 // pred_check
      _
    $region31: #{transformer_forward.1} parent=1 // pred_check_branch
      %56 = sbr.rel (0) target = $region33
    $region32: #{transformer_forward.1} parent=1 // pred_region
      _
    $region33: #{transformer_forward.1} parent=1 // pred_fallthru
      _
    // Predicated region
    $region34: #{transformer_forward.1} parent=1 // pred_check
      _
    $region35: #{transformer_forward.1} parent=1 // pred_check_branch
      %58 = sbr.rel (0) target = $region37
    $region36: #{transformer_forward.1} parent=1 // pred_region
      _
    $region37: #{transformer_forward.1} parent=1 // pred_fallthru
      _
    // Predicated region
    $region38: #{transformer_forward.1} parent=1 // pred_check
      _
    $region39: #{transformer_forward.1} parent=1 // pred_check_branch
      %60 = sbr.rel (0) target = $region41
    $region40: #{transformer_forward.1} parent=1 // pred_region
      _
    $region41: #{transformer_forward.1} parent=1 // pred_fallthru
      _
    // Predicated region
    $region42: #{transformer_forward.1} parent=1 // pred_check
      _
    $region43: #{transformer_forward.1} parent=1 // pred_check_branch
      %62 = sbr.rel (0) target = $region45
    $region44: #{transformer_forward.1} parent=1 // pred_region
      _
    $region45: #{transformer_forward.1} parent=1 // pred_fallthru
      _
    // Predicated region
    $region46: #{transformer_forward.1} parent=1 // pred_check
      _
    $region47: #{transformer_forward.1} parent=1 // pred_check_branch
      %64 = sbr.rel (0) target = $region49
    $region48: #{transformer_forward.1} parent=1 // pred_region
      _
    $region49: #{transformer_forward.1} parent=1 // pred_fallthru
      _
    // Predicated region
    $region50: #{transformer_forward.1} parent=1 // pred_check
      _
    $region51: #{transformer_forward.1} parent=1 // pred_check_branch
      %66 = sbr.rel (0) target = $region53
    $region52: #{transformer_forward.1} parent=1 // pred_region
      _
    $region53: #{transformer_forward.1} parent=1 // pred_fallthru
      _
    // Predicated region
    $region54: #{transformer_forward.1} parent=1 // pred_check
      _
    $region55: #{transformer_forward.1} parent=1 // pred_check_branch
      %68 = sbr.rel (0) target = $region57
    $region56: #{transformer_forward.1} parent=1 // pred_region
      %69 = dma.done [#allocation3], 4096
    $region57: #{transformer_forward.1} parent=1 // pred_fallthru
      _
    // Predicated region
    $region58: #{transformer_forward.1} parent=1 // pred_check
      _
    $region59: #{transformer_forward.1} parent=1 // pred_check_branch
      %71 = sbr.rel (0) target = $region61
    $region60: #{transformer_forward.1} parent=1 // pred_region
      %72 = dma.done [#allocation6], 4096
    $region61: #{transformer_forward.1} parent=1 // pred_fallthru
      _
    %v73 = vld [vmem:[%s0] sm:$0xff]
    %v74 = vld [vmem:[%s0 + $0x8] sm:$0xff]
    %v75 = vld [vmem:[%s1] sm:$0xff]
    %v76 = vld [vmem:[%s1 + $0x8] sm:$0xff]
    %v77 = vld [vmem:[%s2] sm:$0x1]
    %v78 = vld [vmem:[%s3] sm:$0x1]
    %vm79 = vcmask 261120
    %v80 = vsel %vm79, %v73, 0.0
    %81 = vadd.xlane.f32.xlu0 %v80
    %v82 = vpop.xlane.xlu0 %81
    %v83 = vsel %vm79, %v74, 0.0
    %84 = vadd.xlane.f32.xlu0 %v83
    %v85 = vpop.xlane.xlu0 %84
    %v86 = vrcp.pop 32.0
    %v87 = vmul.f32 %v82, %v86
    %v88 = vmul.f32 %v85, %v86
    %v89 = vsub.f32 %v73, %v87
    %v90 = vsub.f32 %v74, %v88
    %v91 = vmul.f32 %v89, %v89
    %v92 = vmul.f32 %v90, %v90
    %v93 = vsel %vm79, %v91, 0.0
    %94 = vadd.xlane.f32.xlu0 %v93
    %v95 = vpop.xlane.xlu0 %94
    %v96 = vsel %vm79, %v92, 0.0
    %97 = vadd.xlane.f32.xlu0 %v96
    %v98 = vpop.xlane.xlu0 %97
    %v99 = vmul.f32 %v95, %v86
    %v100 = vmul.f32 %v98, %v86
    %v101 = vadd.f32 %v99, 1e-05
    %v102 = vadd.f32 %v100, 1e-05
    %v103 = vrsqrt.pop %v101
    %v104 = vrsqrt.pop %v102
    %v105 = vmul.f32 %v89, %v103
    %v106 = vmul.f32 %v90, %v104
    %v108 = vlaneseq
    %v109 = vshrl.u32 %v108, 7
    %v110 = vsub.s32 0, %v109
    %v111 = vrot.slane %v77, %v110
    %v113 = vmul.f32 %v105, %v111
    %v114 = vmul.f32 %v106, %v111
    %v116 = vlaneseq
    %v117 = vshrl.u32 %v116, 7
    %v118 = vsub.s32 0, %v117
    %v119 = vrot.slane %v78, %v118
    %v121 = vadd.f32 %v113, %v119
    %v122 = vadd.f32 %v114, %v119
    %v123 = vld [vmem:[#allocation2] sm:$0xff]
    %v124 = vld [vmem:[#allocation2 + $0x8] sm:$0xff]
    %v125 = vld [vmem:[#allocation2 + $0x10] sm:$0xff]
    %v126 = vld [vmem:[#allocation2 + $0x18] sm:$0xff]
    %v127 = vld [vmem:[#allocation2 + $0x20] sm:$0xff]
    %v128 = vld [vmem:[#allocation2 + $0x28] sm:$0xff]
    %v129 = vld [vmem:[#allocation2 + $0x30] sm:$0xff]
    %v130 = vld [vmem:[#allocation2 + $0x38] sm:$0xff]
    %v131 = vld [vmem:[#allocation2 + $0x40] sm:$0xff]
    %v132 = vld [vmem:[#allocation2 + $0x48] sm:$0xff]
    %v133 = vld [vmem:[#allocation2 + $0x50] sm:$0xff]
    %v134 = vld [vmem:[#allocation2 + $0x58] sm:$0xff]
    %v135 = vld [vmem:[#allocation2 + $0x60] sm:$0xff]
    %v136 = vld [vmem:[#allocation2 + $0x68] sm:$0xff]
    %v137 = vld [vmem:[#allocation2 + $0x70] sm:$0xff]
    %v138 = vld [vmem:[#allocation2 + $0x78] sm:$0xff]
    %v140 = vsel %vm79, %v121, 0
    %v143 = vsel %vm79, %v122, 0
    %145 = vmatprep.subr.mxu0 0.0
    %146 = vmatpush1.msra.mxu0 0.0
    %147 = vmatprep.subr.mxu0 0.0
    %148 = vmatpush1.msra.mxu0 0.0
    %149 = vmatprep.subr.mxu0 0.0
    %150 = vmatpush1.msra.mxu0 0.0
    %151 = vmatprep.subr.mxu0 0.0
    %152 = vmatpush1.msra.mxu0 0.0
    %153 = vmatprep.subr.mxu0 0.0
    %154 = vmatpush1.msra.mxu0 0.0
    %155 = vmatprep.subr.mxu0 0.0
    %156 = vmatpush1.msra.mxu0 0.0
    %157 = vmatprep.subr.mxu0 0.0
    %158 = vmatpush1.msra.mxu0 0.0
    %159 = vmatprep.subr.mxu0 0.0
    %160 = vmatpush1.msra.mxu0 0.0
    %161 = vmatprep.subr.mxu0 0.0
    %162 = vmatpush1.msra.mxu0 0.0
    %163 = vmatprep.subr.mxu0 0.0
    %164 = vmatpush1.msra.mxu0 0.0
    %165 = vmatprep.subr.mxu0 0.0
    %166 = vmatpush1.msra.mxu0 0.0
    %167 = vmatprep.subr.mxu0 0.0
    %168 = vmatpush1.msra.mxu0 0.0
    %169 = vmatprep.subr.mxu0 0.0
    %170 = vmatpush1.msra.mxu0 %v126
    %171 = vmatprep.subr.mxu0 0.0
    %172 = vmatpush1.msra.mxu0 %v125
    %173 = vmatprep.subr.mxu0 0.0
    %174 = vmatpush1.msra.mxu0 %v124
    %175 = vmatprep.subr.mxu0 0.0
    %176 = vmatpush1.msra.mxu0 %v123
    %177 = vmatprep.subr.mxu0 0.0
    %178 = vmatpush2.msra.mxu0 0.0
    %179 = vmatprep.subr.mxu0 0.0
    %180 = vmatpush2.msra.mxu0 0.0
    %181 = vmatprep.subr.mxu0 0.0
    %182 = vmatpush2.msra.mxu0 0.0
    %183 = vmatprep.subr.mxu0 0.0
    %184 = vmatpush2.msra.mxu0 0.0
    %185 = vmatprep.subr.mxu0 0.0
    %186 = vmatpush2.msra.mxu0 0.0
    %187 = vmatprep.subr.mxu0 0.0
    %188 = vmatpush2.msra.mxu0 0.0
    %189 = vmatprep.subr.mxu0 0.0
    %190 = vmatpush2.msra.mxu0 0.0
    %191 = vmatprep.subr.mxu0 0.0
    %192 = vmatpush2.msra.mxu0 0.0
    %193 = vmatprep.subr.mxu0 0.0
    %194 = vmatpush2.msra.mxu0 0.0
    %195 = vmatprep.subr.mxu0 0.0
    %196 = vmatpush2.msra.mxu0 0.0
    %197 = vmatprep.subr.mxu0 0.0
    %198 = vmatpush2.msra.mxu0 0.0
    %199 = vmatprep.subr.mxu0 0.0
    %200 = vmatpush2.msra.mxu0 0.0
    %201 = vmatprep.subr.mxu0 0.0
    %202 = vmatpush2.msra.mxu0 0.0
    %203 = vmatprep.subr.mxu0 0.0
    %204 = vmatpush2.msra.mxu0 0.0
    %205 = vmatprep.subr.mxu0 0.0
    %206 = vmatpush2.msra.mxu0 0.0
    %207 = vmatprep.subr.mxu0 0.0
    %208 = vmatpush2.msra.mxu0 0.0
    %209 = vmatprep.mubr.f32.mxu0 0.0
    %210 = vmatmul.mubr.f32.gmra.mxu0 %v140
    %v211 = vpop.f32.mrf.mxu0
    %v212 = vadd.f32 0.0, %v211
    %v213 = vpop.f32.mrf.mxu0
    %214 = vmatprep.mubr.f32.mxu0 0.0
    %215 = vmatmul.mubr.f32.gmra.mxu0 %v143
    %v216 = vpop.f32.mrf.mxu0
    %v217 = vadd.f32 0.0, %v216
    %v218 = vpop.f32.mrf.mxu0
    %219 = vdwg.mxu0
    %220 = vmatprep.subr.mxu0 0.0
    %221 = vmatpush1.msra.mxu0 0.0
    %222 = vmatprep.subr.mxu0 0.0
    %223 = vmatpush1.msra.mxu0 0.0
    %224 = vmatprep.subr.mxu0 0.0
    %225 = vmatpush1.msra.mxu0 0.0
    %226 = vmatprep.subr.mxu0 0.0
    %227 = vmatpush1.msra.mxu0 0.0
    %228 = vmatprep.subr.mxu0 0.0
    %229 = vmatpush1.msra.mxu0 0.0
    %230 = vmatprep.subr.mxu0 0.0
    %231 = vmatpush1.msra.mxu0 0.0
    %232 = vmatprep.subr.mxu0 0.0
    %233 = vmatpush1.msra.mxu0 0.0
    %234 = vmatprep.subr.mxu0 0.0
    %235 = vmatpush1.msra.mxu0 0.0
    %236 = vmatprep.subr.mxu0 0.0
    %237 = vmatpush1.msra.mxu0 0.0
    %238 = vmatprep.subr.mxu0 0.0
    %239 = vmatpush1.msra.mxu0 0.0
    %240 = vmatprep.subr.mxu0 0.0
    %241 = vmatpush1.msra.mxu0 0.0
    %242 = vmatprep.subr.mxu0 0.0
    %243 = vmatpush1.msra.mxu0 0.0
    %244 = vmatprep.subr.mxu0 0.0
    %245 = vmatpush1.msra.mxu0 %v130
    %246 = vmatprep.subr.mxu0 0.0
    %247 = vmatpush1.msra.mxu0 %v129
    %248 = vmatprep.subr.mxu0 0.0
    %249 = vmatpush1.msra.mxu0 %v128
    %250 = vmatprep.subr.mxu0 0.0
    %251 = vmatpush1.msra.mxu0 %v127
    %252 = vmatprep.subr.mxu0 0.0
    %253 = vmatpush2.msra.mxu0 0.0
    %254 = vmatprep.subr.mxu0 0.0
    %255 = vmatpush2.msra.mxu0 0.0
    %256 = vmatprep.subr.mxu0 0.0
    %257 = vmatpush2.msra.mxu0 0.0
    %258 = vmatprep.subr.mxu0 0.0
    %259 = vmatpush2.msra.mxu0 0.0
    %260 = vmatprep.subr.mxu0 0.0
    %261 = vmatpush2.msra.mxu0 0.0
    %262 = vmatprep.subr.mxu0 0.0
    %263 = vmatpush2.msra.mxu0 0.0
    %264 = vmatprep.subr.mxu0 0.0
    %265 = vmatpush2.msra.mxu0 0.0
    %266 = vmatprep.subr.mxu0 0.0
    %267 = vmatpush2.msra.mxu0 0.0
    %268 = vmatprep.subr.mxu0 0.0
    %269 = vmatpush2.msra.mxu0 0.0
    %270 = vmatprep.subr.mxu0 0.0
    %271 = vmatpush2.msra.mxu0 0.0
    %272 = vmatprep.subr.mxu0 0.0
    %273 = vmatpush2.msra.mxu0 0.0
    %274 = vmatprep.subr.mxu0 0.0
    %275 = vmatpush2.msra.mxu0 0.0
    %276 = vmatprep.subr.mxu0 0.0
    %277 = vmatpush2.msra.mxu0 0.0
    %278 = vmatprep.subr.mxu0 0.0
    %279 = vmatpush2.msra.mxu0 0.0
    %280 = vmatprep.subr.mxu0 0.0
    %281 = vmatpush2.msra.mxu0 0.0
    %282 = vmatprep.subr.mxu0 0.0
    %283 = vmatpush2.msra.mxu0 0.0
    %284 = vmatprep.mubr.f32.mxu0 0.0
    %285 = vmatmul.mubr.f32.gmra.mxu0 %v140
    %v286 = vpop.f32.mrf.mxu0
    %v287 = vadd.f32 0.0, %v286
    %v288 = vpop.f32.mrf.mxu0
    %289 = vmatprep.mubr.f32.mxu0 0.0
    %290 = vmatmul.mubr.f32.gmra.mxu0 %v143
    %v291 = vpop.f32.mrf.mxu0
    %v292 = vadd.f32 0.0, %v291
    %v293 = vpop.f32.mrf.mxu0
    %294 = vdwg.mxu0
    %295 = vmatprep.subr.mxu0 0.0
    %296 = vmatpush1.msra.mxu0 0.0
    %297 = vmatprep.subr.mxu0 0.0
    %298 = vmatpush1.msra.mxu0 0.0
    %299 = vmatprep.subr.mxu0 0.0
    %300 = vmatpush1.msra.mxu0 0.0
    %301 = vmatprep.subr.mxu0 0.0
    %302 = vmatpush1.msra.mxu0 0.0
    %303 = vmatprep.subr.mxu0 0.0
    %304 = vmatpush1.msra.mxu0 0.0
    %305 = vmatprep.subr.mxu0 0.0
    %306 = vmatpush1.msra.mxu0 0.0
    %307 = vmatprep.subr.mxu0 0.0
    %308 = vmatpush1.msra.mxu0 0.0
    %309 = vmatprep.subr.mxu0 0.0
    %310 = vmatpush1.msra.mxu0 0.0
    %311 = vmatprep.subr.mxu0 0.0
    %312 = vmatpush1.msra.mxu0 0.0
    %313 = vmatprep.subr.mxu0 0.0
    %314 = vmatpush1.msra.mxu0 0.0
    %315 = vmatprep.subr.mxu0 0.0
    %316 = vmatpush1.msra.mxu0 0.0
    %317 = vmatprep.subr.mxu0 0.0
    %318 = vmatpush1.msra.mxu0 0.0
    %319 = vmatprep.subr.mxu0 0.0
    %320 = vmatpush1.msra.mxu0 %v134
    %321 = vmatprep.subr.mxu0 0.0
    %322 = vmatpush1.msra.mxu0 %v133
    %323 = vmatprep.subr.mxu0 0.0
    %324 = vmatpush1.msra.mxu0 %v132
    %325 = vmatprep.subr.mxu0 0.0
    %326 = vmatpush1.msra.mxu0 %v131
    %327 = vmatprep.subr.mxu0 0.0
    %328 = vmatpush2.msra.mxu0 0.0
    %329 = vmatprep.subr.mxu0 0.0
    %330 = vmatpush2.msra.mxu0 0.0
    %331 = vmatprep.subr.mxu0 0.0
    %332 = vmatpush2.msra.mxu0 0.0
    %333 = vmatprep.subr.mxu0 0.0
    %334 = vmatpush2.msra.mxu0 0.0
    %335 = vmatprep.subr.mxu0 0.0
    %336 = vmatpush2.msra.mxu0 0.0
    %337 = vmatprep.subr.mxu0 0.0
    %338 = vmatpush2.msra.mxu0 0.0
    %339 = vmatprep.subr.mxu0 0.0
    %340 = vmatpush2.msra.mxu0 0.0
    %341 = vmatprep.subr.mxu0 0.0
    %342 = vmatpush2.msra.mxu0 0.0
    %343 = vmatprep.subr.mxu0 0.0
    %344 = vmatpush2.msra.mxu0 0.0
    %345 = vmatprep.subr.mxu0 0.0
    %346 = vmatpush2.msra.mxu0 0.0
    %347 = vmatprep.subr.mxu0 0.0
    %348 = vmatpush2.msra.mxu0 0.0
    %349 = vmatprep.subr.mxu0 0.0
    %350 = vmatpush2.msra.mxu0 0.0
    %351 = vmatprep.subr.mxu0 0.0
    %352 = vmatpush2.msra.mxu0 0.0
    %353 = vmatprep.subr.mxu0 0.0
    %354 = vmatpush2.msra.mxu0 0.0
    %355 = vmatprep.subr.mxu0 0.0
    %356 = vmatpush2.msra.mxu0 0.0
    %357 = vmatprep.subr.mxu0 0.0
    %358 = vmatpush2.msra.mxu0 0.0
    %359 = vmatprep.mubr.f32.mxu0 0.0
    %360 = vmatmul.mubr.f32.gmra.mxu0 %v140
    %v361 = vpop.f32.mrf.mxu0
    %v362 = vadd.f32 0.0, %v361
    %v363 = vpop.f32.mrf.mxu0
    %364 = vmatprep.mubr.f32.mxu0 0.0
    %365 = vmatmul.mubr.f32.gmra.mxu0 %v143
    %v366 = vpop.f32.mrf.mxu0
    %v367 = vadd.f32 0.0, %v366
    %v368 = vpop.f32.mrf.mxu0
    %369 = vdwg.mxu0
    %370 = vmatprep.subr.mxu0 0.0
    %371 = vmatpush1.msra.mxu0 0.0
    %372 = vmatprep.subr.mxu0 0.0
    %373 = vmatpush1.msra.mxu0 0.0
    %374 = vmatprep.subr.mxu0 0.0
    %375 = vmatpush1.msra.mxu0 0.0
    %376 = vmatprep.subr.mxu0 0.0
    %377 = vmatpush1.msra.mxu0 0.0
    %378 = vmatprep.subr.mxu0 0.0
    %379 = vmatpush1.msra.mxu0 0.0
    %380 = vmatprep.subr.mxu0 0.0
    %381 = vmatpush1.msra.mxu0 0.0
    %382 = vmatprep.subr.mxu0 0.0
    %383 = vmatpush1.msra.mxu0 0.0
    %384 = vmatprep.subr.mxu0 0.0
    %385 = vmatpush1.msra.mxu0 0.0
    %386 = vmatprep.subr.mxu0 0.0
    %387 = vmatpush1.msra.mxu0 0.0
    %388 = vmatprep.subr.mxu0 0.0
    %389 = vmatpush1.msra.mxu0 0.0
    %390 = vmatprep.subr.mxu0 0.0
    %391 = vmatpush1.msra.mxu0 0.0
    %392 = vmatprep.subr.mxu0 0.0
    %393 = vmatpush1.msra.mxu0 0.0
    %394 = vmatprep.subr.mxu0 0.0
    %395 = vmatpush1.msra.mxu0 %v138
    %396 = vmatprep.subr.mxu0 0.0
    %397 = vmatpush1.msra.mxu0 %v137
    %398 = vmatprep.subr.mxu0 0.0
    %399 = vmatpush1.msra.mxu0 %v136
    %400 = vmatprep.subr.mxu0 0.0
    %401 = vmatpush1.msra.mxu0 %v135
    %402 = vmatprep.subr.mxu0 0.0
    %403 = vmatpush2.msra.mxu0 0.0
    %404 = vmatprep.subr.mxu0 0.0
    %405 = vmatpush2.msra.mxu0 0.0
    %406 = vmatprep.subr.mxu0 0.0
    %407 = vmatpush2.msra.mxu0 0.0
    %408 = vmatprep.subr.mxu0 0.0
    %409 = vmatpush2.msra.mxu0 0.0
    %410 = vmatprep.subr.mxu0 0.0
    %411 = vmatpush2.msra.mxu0 0.0
    %412 = vmatprep.subr.mxu0 0.0
    %413 = vmatpush2.msra.mxu0 0.0
    %414 = vmatprep.subr.mxu0 0.0
    %415 = vmatpush2.msra.mxu0 0.0
    %416 = vmatprep.subr.mxu0 0.0
    %417 = vmatpush2.msra.mxu0 0.0
    %418 = vmatprep.subr.mxu0 0.0
    %419 = vmatpush2.msra.mxu0 0.0
    %420 = vmatprep.subr.mxu0 0.0
    %421 = vmatpush2.msra.mxu0 0.0
    %422 = vmatprep.subr.mxu0 0.0
    %423 = vmatpush2.msra.mxu0 0.0
    %424 = vmatprep.subr.mxu0 0.0
    %425 = vmatpush2.msra.mxu0 0.0
    %426 = vmatprep.subr.mxu0 0.0
    %427 = vmatpush2.msra.mxu0 0.0
    %428 = vmatprep.subr.mxu0 0.0
    %429 = vmatpush2.msra.mxu0 0.0
    %430 = vmatprep.subr.mxu0 0.0
    %431 = vmatpush2.msra.mxu0 0.0
    %432 = vmatprep.subr.mxu0 0.0
    %433 = vmatpush2.msra.mxu0 0.0
    %434 = vmatprep.mubr.f32.mxu0 0.0
    %435 = vmatmul.mubr.f32.gmra.mxu0 %v140
    %v436 = vpop.f32.mrf.mxu0
    %v437 = vadd.f32 0.0, %v436
    %v438 = vpop.f32.mrf.mxu0
    %439 = vmatprep.mubr.f32.mxu0 0.0
    %440 = vmatmul.mubr.f32.gmra.mxu0 %v143
    %v441 = vpop.f32.mrf.mxu0
    %v442 = vadd.f32 0.0, %v441
    %v443 = vpop.f32.mrf.mxu0
    %444 = vdwg.mxu0
    %v446 = vsel %vm79, %v212, 0
    %v449 = vsel %vm79, %v217, 0
    %451 = vmatprep.subr.mxu0 0.0
    %452 = vmatpush1.xpose.msra.mxu0 0.0
    %453 = vmatprep.subr.mxu0 0.0
    %454 = vmatpush1.xpose.msra.mxu0 0.0
    %455 = vmatprep.subr.mxu0 0.0
    %456 = vmatpush1.xpose.msra.mxu0 0.0
    %457 = vmatprep.subr.mxu0 0.0
    %458 = vmatpush1.xpose.msra.mxu0 0.0
    %459 = vmatprep.subr.mxu0 0.0
    %460 = vmatpush1.xpose.msra.mxu0 0.0
    %461 = vmatprep.subr.mxu0 0.0
    %462 = vmatpush1.xpose.msra.mxu0 0.0
    %463 = vmatprep.subr.mxu0 0.0
    %464 = vmatpush1.xpose.msra.mxu0 0.0
    %465 = vmatprep.subr.mxu0 0.0
    %466 = vmatpush1.xpose.msra.mxu0 0.0
    %467 = vmatprep.subr.mxu0 0.0
    %468 = vmatpush1.xpose.msra.mxu0 0.0
    %469 = vmatprep.subr.mxu0 0.0
    %470 = vmatpush1.xpose.msra.mxu0 0.0
    %471 = vmatprep.subr.mxu0 0.0
    %472 = vmatpush1.xpose.msra.mxu0 0.0
    %473 = vmatprep.subr.mxu0 0.0
    %474 = vmatpush1.xpose.msra.mxu0 0.0
    %475 = vmatprep.subr.mxu0 0.0
    %476 = vmatpush1.xpose.msra.mxu0 0.0
    %477 = vmatprep.subr.mxu0 0.0
    %478 = vmatpush1.xpose.msra.mxu0 0.0
    %479 = vmatprep.subr.mxu0 0.0
    %480 = vmatpush1.xpose.msra.mxu0 %v143
    %481 = vmatprep.subr.mxu0 0.0
    %482 = vmatpush1.xpose.msra.mxu0 %v140
    %483 = vmatprep.subr.mxu0 0.0
    %484 = vmatpush2.xpose.msra.mxu0 0.0
    %485 = vmatprep.subr.mxu0 0.0
    %486 = vmatpush2.xpose.msra.mxu0 0.0
    %487 = vmatprep.subr.mxu0 0.0
    %488 = vmatpush2.xpose.msra.mxu0 0.0
    %489 = vmatprep.subr.mxu0 0.0
    %490 = vmatpush2.xpose.msra.mxu0 0.0
    %491 = vmatprep.subr.mxu0 0.0
    %492 = vmatpush2.xpose.msra.mxu0 0.0
    %493 = vmatprep.subr.mxu0 0.0
    %494 = vmatpush2.xpose.msra.mxu0 0.0
    %495 = vmatprep.subr.mxu0 0.0
    %496 = vmatpush2.xpose.msra.mxu0 0.0
    %497 = vmatprep.subr.mxu0 0.0
    %498 = vmatpush2.xpose.msra.mxu0 0.0
    %499 = vmatprep.subr.mxu0 0.0
    %500 = vmatpush2.xpose.msra.mxu0 0.0
    %501 = vmatprep.subr.mxu0 0.0
    %502 = vmatpush2.xpose.msra.mxu0 0.0
    %503 = vmatprep.subr.mxu0 0.0
    %504 = vmatpush2.xpose.msra.mxu0 0.0
    %505 = vmatprep.subr.mxu0 0.0
    %506 = vmatpush2.xpose.msra.mxu0 0.0
    %507 = vmatprep.subr.mxu0 0.0
    %508 = vmatpush2.xpose.msra.mxu0 0.0
    %509 = vmatprep.subr.mxu0 0.0
    %510 = vmatpush2.xpose.msra.mxu0 0.0
    %511 = vmatprep.subr.mxu0 0.0
    %512 = vmatpush2.xpose.msra.mxu0 0.0
    %513 = vmatprep.subr.mxu0 0.0
    %514 = vmatpush2.xpose.msra.mxu0 0.0
    %515 = vmatprep.mubr.f32.mxu0 0.0
    %516 = vmatmul.mubr.f32.gmra.mxu0 %v446
    %v517 = vpop.f32.mrf.mxu0
    %v518 = vadd.f32 %v75, %v517
    %v519 = vpop.f32.mrf.mxu0
    %520 = vmatprep.mubr.f32.mxu0 0.0
    %521 = vmatmul.mubr.f32.gmra.mxu0 %v449
    %v522 = vpop.f32.mrf.mxu0
    %v523 = vadd.f32 %v76, %v522
    %v524 = vpop.f32.mrf.mxu0
    %525 = vdwg.mxu0
    %v527 = vsel %vm79, %v287, 0
    %v530 = vsel %vm79, %v292, 0
    %532 = vmatprep.subr.mxu0 0.0
    %533 = vmatpush1.xpose.msra.mxu0 0.0
    %534 = vmatprep.subr.mxu0 0.0
    %535 = vmatpush1.xpose.msra.mxu0 0.0
    %536 = vmatprep.subr.mxu0 0.0
    %537 = vmatpush1.xpose.msra.mxu0 0.0
    %538 = vmatprep.subr.mxu0 0.0
    %539 = vmatpush1.xpose.msra.mxu0 0.0
    %540 = vmatprep.subr.mxu0 0.0
    %541 = vmatpush1.xpose.msra.mxu0 0.0
    %542 = vmatprep.subr.mxu0 0.0
    %543 = vmatpush1.xpose.msra.mxu0 0.0
    %544 = vmatprep.subr.mxu0 0.0
    %545 = vmatpush1.xpose.msra.mxu0 0.0
    %546 = vmatprep.subr.mxu0 0.0
    %547 = vmatpush1.xpose.msra.mxu0 0.0
    %548 = vmatprep.subr.mxu0 0.0
    %549 = vmatpush1.xpose.msra.mxu0 0.0
    %550 = vmatprep.subr.mxu0 0.0
    %551 = vmatpush1.xpose.msra.mxu0 0.0
    %552 = vmatprep.subr.mxu0 0.0
    %553 = vmatpush1.xpose.msra.mxu0 0.0
    %554 = vmatprep.subr.mxu0 0.0
    %555 = vmatpush1.xpose.msra.mxu0 0.0
    %556 = vmatprep.subr.mxu0 0.0
    %557 = vmatpush1.xpose.msra.mxu0 0.0
    %558 = vmatprep.subr.mxu0 0.0
    %559 = vmatpush1.xpose.msra.mxu0 0.0
    %560 = vmatprep.subr.mxu0 0.0
    %561 = vmatpush1.xpose.msra.mxu0 %v143
    %562 = vmatprep.subr.mxu0 0.0
    %563 = vmatpush1.xpose.msra.mxu0 %v140
    %564 = vmatprep.subr.mxu0 0.0
    %565 = vmatpush2.xpose.msra.mxu0 0.0
    %566 = vmatprep.subr.mxu0 0.0
    %567 = vmatpush2.xpose.msra.mxu0 0.0
    %568 = vmatprep.subr.mxu0 0.0
    %569 = vmatpush2.xpose.msra.mxu0 0.0
    %570 = vmatprep.subr.mxu0 0.0
    %571 = vmatpush2.xpose.msra.mxu0 0.0
    %572 = vmatprep.subr.mxu0 0.0
    %573 = vmatpush2.xpose.msra.mxu0 0.0
    %574 = vmatprep.subr.mxu0 0.0
    %575 = vmatpush2.xpose.msra.mxu0 0.0
    %576 = vmatprep.subr.mxu0 0.0
    %577 = vmatpush2.xpose.msra.mxu0 0.0
    %578 = vmatprep.subr.mxu0 0.0
    %579 = vmatpush2.xpose.msra.mxu0 0.0
    %580 = vmatprep.subr.mxu0 0.0
    %581 = vmatpush2.xpose.msra.mxu0 0.0
    %582 = vmatprep.subr.mxu0 0.0
    %583 = vmatpush2.xpose.msra.mxu0 0.0
    %584 = vmatprep.subr.mxu0 0.0
    %585 = vmatpush2.xpose.msra.mxu0 0.0
    %586 = vmatprep.subr.mxu0 0.0
    %587 = vmatpush2.xpose.msra.mxu0 0.0
    %588 = vmatprep.subr.mxu0 0.0
    %589 = vmatpush2.xpose.msra.mxu0 0.0
    %590 = vmatprep.subr.mxu0 0.0
    %591 = vmatpush2.xpose.msra.mxu0 0.0
    %592 = vmatprep.subr.mxu0 0.0
    %593 = vmatpush2.xpose.msra.mxu0 0.0
    %594 = vmatprep.subr.mxu0 0.0
    %595 = vmatpush2.xpose.msra.mxu0 0.0
    %596 = vmatprep.mubr.f32.mxu0 0.0
    %597 = vmatmul.mubr.f32.gmra.mxu0 %v527
    %v598 = vpop.f32.mrf.mxu0
    %v599 = vadd.f32 %v75, %v598
    %v600 = vpop.f32.mrf.mxu0
    %601 = vmatprep.mubr.f32.mxu0 0.0
    %602 = vmatmul.mubr.f32.gmra.mxu0 %v530
    %v603 = vpop.f32.mrf.mxu0
    %v604 = vadd.f32 %v76, %v603
    %v605 = vpop.f32.mrf.mxu0
    %606 = vdwg.mxu0
    %v608 = vsel %vm79, %v362, 0
    %v611 = vsel %vm79, %v367, 0
    %613 = vmatprep.subr.mxu0 0.0
    %614 = vmatpush1.xpose.msra.mxu0 0.0
    %615 = vmatprep.subr.mxu0 0.0
    %616 = vmatpush1.xpose.msra.mxu0 0.0
    %617 = vmatprep.subr.mxu0 0.0
    %618 = vmatpush1.xpose.msra.mxu0 0.0
    %619 = vmatprep.subr.mxu0 0.0
    %620 = vmatpush1.xpose.msra.mxu0 0.0
    %621 = vmatprep.subr.mxu0 0.0
    %622 = vmatpush1.xpose.msra.mxu0 0.0
    %623 = vmatprep.subr.mxu0 0.0
    %624 = vmatpush1.xpose.msra.mxu0 0.0
    %625 = vmatprep.subr.mxu0 0.0
    %626 = vmatpush1.xpose.msra.mxu0 0.0
    %627 = vmatprep.subr.mxu0 0.0
    %628 = vmatpush1.xpose.msra.mxu0 0.0
    %629 = vmatprep.subr.mxu0 0.0
    %630 = vmatpush1.xpose.msra.mxu0 0.0
    %631 = vmatprep.subr.mxu0 0.0
    %632 = vmatpush1.xpose.msra.mxu0 0.0
    %633 = vmatprep.subr.mxu0 0.0
    %634 = vmatpush1.xpose.msra.mxu0 0.0
    %635 = vmatprep.subr.mxu0 0.0
    %636 = vmatpush1.xpose.msra.mxu0 0.0
    %637 = vmatprep.subr.mxu0 0.0
    %638 = vmatpush1.xpose.msra.mxu0 0.0
    %639 = vmatprep.subr.mxu0 0.0
    %640 = vmatpush1.xpose.msra.mxu0 0.0
    %641 = vmatprep.subr.mxu0 0.0
    %642 = vmatpush1.xpose.msra.mxu0 %v143
    %643 = vmatprep.subr.mxu0 0.0
    %644 = vmatpush1.xpose.msra.mxu0 %v140
    %645 = vmatprep.subr.mxu0 0.0
    %646 = vmatpush2.xpose.msra.mxu0 0.0
    %647 = vmatprep.subr.mxu0 0.0
    %648 = vmatpush2.xpose.msra.mxu0 0.0
    %649 = vmatprep.subr.mxu0 0.0
    %650 = vmatpush2.xpose.msra.mxu0 0.0
    %651 = vmatprep.subr.mxu0 0.0
    %652 = vmatpush2.xpose.msra.mxu0 0.0
    %653 = vmatprep.subr.mxu0 0.0
    %654 = vmatpush2.xpose.msra.mxu0 0.0
    %655 = vmatprep.subr.mxu0 0.0
    %656 = vmatpush2.xpose.msra.mxu0 0.0
    %657 = vmatprep.subr.mxu0 0.0
    %658 = vmatpush2.xpose.msra.mxu0 0.0
    %659 = vmatprep.subr.mxu0 0.0
    %660 = vmatpush2.xpose.msra.mxu0 0.0
    %661 = vmatprep.subr.mxu0 0.0
    %662 = vmatpush2.xpose.msra.mxu0 0.0
    %663 = vmatprep.subr.mxu0 0.0
    %664 = vmatpush2.xpose.msra.mxu0 0.0
    %665 = vmatprep.subr.mxu0 0.0
    %666 = vmatpush2.xpose.msra.mxu0 0.0
    %667 = vmatprep.subr.mxu0 0.0
    %668 = vmatpush2.xpose.msra.mxu0 0.0
    %669 = vmatprep.subr.mxu0 0.0
    %670 = vmatpush2.xpose.msra.mxu0 0.0
    %671 = vmatprep.subr.mxu0 0.0
    %672 = vmatpush2.xpose.msra.mxu0 0.0
    %673 = vmatprep.subr.mxu0 0.0
    %674 = vmatpush2.xpose.msra.mxu0 0.0
    %675 = vmatprep.subr.mxu0 0.0
    %676 = vmatpush2.xpose.msra.mxu0 0.0
    %677 = vmatprep.mubr.f32.mxu0 0.0
    %678 = vmatmul.mubr.f32.gmra.mxu0 %v608
    %v679 = vpop.f32.mrf.mxu0
    %v680 = vadd.f32 %v75, %v679
    %v681 = vpop.f32.mrf.mxu0
    %682 = vmatprep.mubr.f32.mxu0 0.0
    %683 = vmatmul.mubr.f32.gmra.mxu0 %v611
    %v684 = vpop.f32.mrf.mxu0
    %v685 = vadd.f32 %v76, %v684
    %v686 = vpop.f32.mrf.mxu0
    %687 = vdwg.mxu0
    %v689 = vsel %vm79, %v437, 0
    %v692 = vsel %vm79, %v442, 0
    %694 = vmatprep.subr.mxu0 0.0
    %695 = vmatpush1.xpose.msra.mxu0 0.0
    %696 = vmatprep.subr.mxu0 0.0
    %697 = vmatpush1.xpose.msra.mxu0 0.0
    %698 = vmatprep.subr.mxu0 0.0
    %699 = vmatpush1.xpose.msra.mxu0 0.0
    %700 = vmatprep.subr.mxu0 0.0
    %701 = vmatpush1.xpose.msra.mxu0 0.0
    %702 = vmatprep.subr.mxu0 0.0
    %703 = vmatpush1.xpose.msra.mxu0 0.0
    %704 = vmatprep.subr.mxu0 0.0
    %705 = vmatpush1.xpose.msra.mxu0 0.0
    %706 = vmatprep.subr.mxu0 0.0
    %707 = vmatpush1.xpose.msra.mxu0 0.0
    %708 = vmatprep.subr.mxu0 0.0
    %709 = vmatpush1.xpose.msra.mxu0 0.0
    %710 = vmatprep.subr.mxu0 0.0
    %711 = vmatpush1.xpose.msra.mxu0 0.0
    %712 = vmatprep.subr.mxu0 0.0
    %713 = vmatpush1.xpose.msra.mxu0 0.0
    %714 = vmatprep.subr.mxu0 0.0
    %715 = vmatpush1.xpose.msra.mxu0 0.0
    %716 = vmatprep.subr.mxu0 0.0
    %717 = vmatpush1.xpose.msra.mxu0 0.0
    %718 = vmatprep.subr.mxu0 0.0
    %719 = vmatpush1.xpose.msra.mxu0 0.0
    %720 = vmatprep.subr.mxu0 0.0
    %721 = vmatpush1.xpose.msra.mxu0 0.0
    %722 = vmatprep.subr.mxu0 0.0
    %723 = vmatpush1.xpose.msra.mxu0 %v143
    %724 = vmatprep.subr.mxu0 0.0
    %725 = vmatpush1.xpose.msra.mxu0 %v140
    %726 = vmatprep.subr.mxu0 0.0
    %727 = vmatpush2.xpose.msra.mxu0 0.0
    %728 = vmatprep.subr.mxu0 0.0
    %729 = vmatpush2.xpose.msra.mxu0 0.0
    %730 = vmatprep.subr.mxu0 0.0
    %731 = vmatpush2.xpose.msra.mxu0 0.0
    %732 = vmatprep.subr.mxu0 0.0
    %733 = vmatpush2.xpose.msra.mxu0 0.0
    %734 = vmatprep.subr.mxu0 0.0
    %735 = vmatpush2.xpose.msra.mxu0 0.0
    %736 = vmatprep.subr.mxu0 0.0
    %737 = vmatpush2.xpose.msra.mxu0 0.0
    %738 = vmatprep.subr.mxu0 0.0
    %739 = vmatpush2.xpose.msra.mxu0 0.0
    %740 = vmatprep.subr.mxu0 0.0
    %741 = vmatpush2.xpose.msra.mxu0 0.0
    %742 = vmatprep.subr.mxu0 0.0
    %743 = vmatpush2.xpose.msra.mxu0 0.0
    %744 = vmatprep.subr.mxu0 0.0
    %745 = vmatpush2.xpose.msra.mxu0 0.0
    %746 = vmatprep.subr.mxu0 0.0
    %747 = vmatpush2.xpose.msra.mxu0 0.0
    %748 = vmatprep.subr.mxu0 0.0
    %749 = vmatpush2.xpose.msra.mxu0 0.0
    %750 = vmatprep.subr.mxu0 0.0
    %751 = vmatpush2.xpose.msra.mxu0 0.0
    %752 = vmatprep.subr.mxu0 0.0
    %753 = vmatpush2.xpose.msra.mxu0 0.0
    %754 = vmatprep.subr.mxu0 0.0
    %755 = vmatpush2.xpose.msra.mxu0 0.0
    %756 = vmatprep.subr.mxu0 0.0
    %757 = vmatpush2.xpose.msra.mxu0 0.0
    %758 = vmatprep.mubr.f32.mxu0 0.0
    %759 = vmatmul.mubr.f32.gmra.mxu0 %v689
    %v760 = vpop.f32.mrf.mxu0
    %v761 = vadd.f32 %v75, %v760
    %v762 = vpop.f32.mrf.mxu0
    %763 = vmatprep.mubr.f32.mxu0 0.0
    %764 = vmatmul.mubr.f32.gmra.mxu0 %v692
    %v765 = vpop.f32.mrf.mxu0
    %v766 = vadd.f32 %v76, %v765
    %v767 = vpop.f32.mrf.mxu0
    %768 = vdwg.mxu0
    %vm769 = vcmask 130048
    %v770 = vsel %vm769, %v518, -inf
    %771 = vmax.xlane.f32.xlu0 %v770
    %v772 = vpop.xlane.xlu0 %771
    %v773 = vsel %vm769, %v523, -inf
    %774 = vmax.xlane.f32.xlu0 %v773
    %v775 = vpop.xlane.xlu0 %774
    %v776 = vsel %vm769, %v599, -inf
    %777 = vmax.xlane.f32.xlu0 %v776
    %v778 = vpop.xlane.xlu0 %777
    %v779 = vsel %vm769, %v604, -inf
    %780 = vmax.xlane.f32.xlu0 %v779
    %v781 = vpop.xlane.xlu0 %780
    %v782 = vsel %vm769, %v680, -inf
    %783 = vmax.xlane.f32.xlu0 %v782
    %v784 = vpop.xlane.xlu0 %783
    %v785 = vsel %vm769, %v685, -inf
    %786 = vmax.xlane.f32.xlu0 %v785
    %v787 = vpop.xlane.xlu0 %786
    %v788 = vsel %vm769, %v761, -inf
    %789 = vmax.xlane.f32.xlu0 %v788
    %v790 = vpop.xlane.xlu0 %789
    %v791 = vsel %vm769, %v766, -inf
    %792 = vmax.xlane.f32.xlu0 %v791
    %v793 = vpop.xlane.xlu0 %792
    %v794 = vsub.f32 %v518, %v772
    %v795 = vsub.f32 %v523, %v775
    %v796 = vsub.f32 %v599, %v778
    %v797 = vsub.f32 %v604, %v781
    %v798 = vsub.f32 %v680, %v784
    %v799 = vsub.f32 %v685, %v787
    %v800 = vsub.f32 %v761, %v790
    %v801 = vsub.f32 %v766, %v793
    %v802 = vmul.f32 %v794, 1.442695
    %v803 = vpow.pop %v802
    %v804 = vmul.f32 %v795, 1.442695
    %v805 = vpow.pop %v804
    %v806 = vmul.f32 %v796, 1.442695
    %v807 = vpow.pop %v806
    %v808 = vmul.f32 %v797, 1.442695
    %v809 = vpow.pop %v808
    %v810 = vmul.f32 %v798, 1.442695
    %v811 = vpow.pop %v810
    %v812 = vmul.f32 %v799, 1.442695
    %v813 = vpow.pop %v812
    %v814 = vmul.f32 %v800, 1.442695
    %v815 = vpow.pop %v814
    %v816 = vmul.f32 %v801, 1.442695
    %v817 = vpow.pop %v816
    %v818 = vsel %vm769, %v803, 0.0
    %819 = vadd.xlane.f32.xlu0 %v818
    %v820 = vpop.xlane.xlu0 %819
    %v821 = vsel %vm769, %v805, 0.0
    %822 = vadd.xlane.f32.xlu0 %v821
    %v823 = vpop.xlane.xlu0 %822
    %v824 = vsel %vm769, %v807, 0.0
    %825 = vadd.xlane.f32.xlu0 %v824
    %v826 = vpop.xlane.xlu0 %825
    %v827 = vsel %vm769, %v809, 0.0
    %828 = vadd.xlane.f32.xlu0 %v827
    %v829 = vpop.xlane.xlu0 %828
    %v830 = vsel %vm769, %v811, 0.0
    %831 = vadd.xlane.f32.xlu0 %v830
    %v832 = vpop.xlane.xlu0 %831
    %v833 = vsel %vm769, %v813, 0.0
    %834 = vadd.xlane.f32.xlu0 %v833
    %v835 = vpop.xlane.xlu0 %834
    %v836 = vsel %vm769, %v815, 0.0
    %837 = vadd.xlane.f32.xlu0 %v836
    %v838 = vpop.xlane.xlu0 %837
    %v839 = vsel %vm769, %v817, 0.0
    %840 = vadd.xlane.f32.xlu0 %v839
    %v841 = vpop.xlane.xlu0 %840
    %v842 = vrcp.pop %v820
    %v843 = vrcp.pop %v823
    %v844 = vrcp.pop %v826
    %v845 = vrcp.pop %v829
    %v846 = vrcp.pop %v832
    %v847 = vrcp.pop %v835
    %v848 = vrcp.pop %v838
    %v849 = vrcp.pop %v841
    %v850 = vmul.f32 %v803, %v842
    %v851 = vmul.f32 %v805, %v843
    %v852 = vmul.f32 %v807, %v844
    %v853 = vmul.f32 %v809, %v845
    %v854 = vmul.f32 %v811, %v846
    %v855 = vmul.f32 %v813, %v847
    %v856 = vmul.f32 %v815, %v848
    %v857 = vmul.f32 %v817, %v849
    %v859 = vsel %vm769, %v850, 0
    %v862 = vsel %vm769, %v851, 0
    %864 = vmatprep.subr.mxu0 0.0
    %865 = vmatpush1.msra.mxu0 0.0
    %866 = vmatprep.subr.mxu0 0.0
    %867 = vmatpush1.msra.mxu0 0.0
    %868 = vmatprep.subr.mxu0 0.0
    %869 = vmatpush1.msra.mxu0 0.0
    %870 = vmatprep.subr.mxu0 0.0
    %871 = vmatpush1.msra.mxu0 0.0
    %872 = vmatprep.subr.mxu0 0.0
    %873 = vmatpush1.msra.mxu0 0.0
    %874 = vmatprep.subr.mxu0 0.0
    %875 = vmatpush1.msra.mxu0 0.0
    %876 = vmatprep.subr.mxu0 0.0
    %877 = vmatpush1.msra.mxu0 0.0
    %878 = vmatprep.subr.mxu0 0.0
    %879 = vmatpush1.msra.mxu0 0.0
    %880 = vmatprep.subr.mxu0 0.0
    %881 = vmatpush1.msra.mxu0 0.0
    %882 = vmatprep.subr.mxu0 0.0
    %883 = vmatpush1.msra.mxu0 0.0
    %884 = vmatprep.subr.mxu0 0.0
    %885 = vmatpush1.msra.mxu0 0.0
    %886 = vmatprep.subr.mxu0 0.0
    %887 = vmatpush1.msra.mxu0 0.0
    %888 = vmatprep.subr.mxu0 0.0
    %889 = vmatpush1.msra.mxu0 0.0
    %890 = vmatprep.subr.mxu0 0.0
    %891 = vmatpush1.msra.mxu0 0.0
    %892 = vmatprep.subr.mxu0 0.0
    %893 = vmatpush1.msra.mxu0 %v122
    %894 = vmatprep.subr.mxu0 0.0
    %895 = vmatpush1.msra.mxu0 %v121
    %896 = vmatprep.subr.mxu0 0.0
    %897 = vmatpush2.msra.mxu0 0.0
    %898 = vmatprep.subr.mxu0 0.0
    %899 = vmatpush2.msra.mxu0 0.0
    %900 = vmatprep.subr.mxu0 0.0
    %901 = vmatpush2.msra.mxu0 0.0
    %902 = vmatprep.subr.mxu0 0.0
    %903 = vmatpush2.msra.mxu0 0.0
    %904 = vmatprep.subr.mxu0 0.0
    %905 = vmatpush2.msra.mxu0 0.0
    %906 = vmatprep.subr.mxu0 0.0
    %907 = vmatpush2.msra.mxu0 0.0
    %908 = vmatprep.subr.mxu0 0.0
    %909 = vmatpush2.msra.mxu0 0.0
    %910 = vmatprep.subr.mxu0 0.0
    %911 = vmatpush2.msra.mxu0 0.0
    %912 = vmatprep.subr.mxu0 0.0
    %913 = vmatpush2.msra.mxu0 0.0
    %914 = vmatprep.subr.mxu0 0.0
    %915 = vmatpush2.msra.mxu0 0.0
    %916 = vmatprep.subr.mxu0 0.0
    %917 = vmatpush2.msra.mxu0 0.0
    %918 = vmatprep.subr.mxu0 0.0
    %919 = vmatpush2.msra.mxu0 0.0
    %920 = vmatprep.subr.mxu0 0.0
    %921 = vmatpush2.msra.mxu0 0.0
    %922 = vmatprep.subr.mxu0 0.0
    %923 = vmatpush2.msra.mxu0 0.0
    %924 = vmatprep.subr.mxu0 0.0
    %925 = vmatpush2.msra.mxu0 0.0
    %926 = vmatprep.subr.mxu0 0.0
    %927 = vmatpush2.msra.mxu0 0.0
    %928 = vmatprep.mubr.f32.mxu0 0.0
    %929 = vmatmul.mubr.f32.gmra.mxu0 %v859
    %v930 = vpop.f32.mrf.mxu0
    %v931 = vadd.f32 0.0, %v930
    %v932 = vpop.f32.mrf.mxu0
    %933 = vmatprep.mubr.f32.mxu0 0.0
    %934 = vmatmul.mubr.f32.gmra.mxu0 %v862
    %v935 = vpop.f32.mrf.mxu0
    %v936 = vadd.f32 0.0, %v935
    %v937 = vpop.f32.mrf.mxu0
    %938 = vdwg.mxu0
    %v940 = vsel %vm769, %v852, 0
    %v943 = vsel %vm769, %v853, 0
    %945 = vmatprep.subr.mxu0 0.0
    %946 = vmatpush1.msra.mxu0 0.0
    %947 = vmatprep.subr.mxu0 0.0
    %948 = vmatpush1.msra.mxu0 0.0
    %949 = vmatprep.subr.mxu0 0.0
    %950 = vmatpush1.msra.mxu0 0.0
    %951 = vmatprep.subr.mxu0 0.0
    %952 = vmatpush1.msra.mxu0 0.0
    %953 = vmatprep.subr.mxu0 0.0
    %954 = vmatpush1.msra.mxu0 0.0
    %955 = vmatprep.subr.mxu0 0.0
    %956 = vmatpush1.msra.mxu0 0.0
    %957 = vmatprep.subr.mxu0 0.0
    %958 = vmatpush1.msra.mxu0 0.0
    %959 = vmatprep.subr.mxu0 0.0
    %960 = vmatpush1.msra.mxu0 0.0
    %961 = vmatprep.subr.mxu0 0.0
    %962 = vmatpush1.msra.mxu0 0.0
    %963 = vmatprep.subr.mxu0 0.0
    %964 = vmatpush1.msra.mxu0 0.0
    %965 = vmatprep.subr.mxu0 0.0
    %966 = vmatpush1.msra.mxu0 0.0
    %967 = vmatprep.subr.mxu0 0.0
    %968 = vmatpush1.msra.mxu0 0.0
    %969 = vmatprep.subr.mxu0 0.0
    %970 = vmatpush1.msra.mxu0 0.0
    %971 = vmatprep.subr.mxu0 0.0
    %972 = vmatpush1.msra.mxu0 0.0
    %973 = vmatprep.subr.mxu0 0.0
    %974 = vmatpush1.msra.mxu0 %v122
    %975 = vmatprep.subr.mxu0 0.0
    %976 = vmatpush1.msra.mxu0 %v121
    %977 = vmatprep.subr.mxu0 0.0
    %978 = vmatpush2.msra.mxu0 0.0
    %979 = vmatprep.subr.mxu0 0.0
    %980 = vmatpush2.msra.mxu0 0.0
    %981 = vmatprep.subr.mxu0 0.0
    %982 = vmatpush2.msra.mxu0 0.0
    %983 = vmatprep.subr.mxu0 0.0
    %984 = vmatpush2.msra.mxu0 0.0
    %985 = vmatprep.subr.mxu0 0.0
    %986 = vmatpush2.msra.mxu0 0.0
    %987 = vmatprep.subr.mxu0 0.0
    %988 = vmatpush2.msra.mxu0 0.0
    %989 = vmatprep.subr.mxu0 0.0
    %990 = vmatpush2.msra.mxu0 0.0
    %991 = vmatprep.subr.mxu0 0.0
    %992 = vmatpush2.msra.mxu0 0.0
    %993 = vmatprep.subr.mxu0 0.0
    %994 = vmatpush2.msra.mxu0 0.0
    %995 = vmatprep.subr.mxu0 0.0
    %996 = vmatpush2.msra.mxu0 0.0
    %997 = vmatprep.subr.mxu0 0.0
    %998 = vmatpush2.msra.mxu0 0.0
    %999 = vmatprep.subr.mxu0 0.0
    %1000 = vmatpush2.msra.mxu0 0.0
    %1001 = vmatprep.subr.mxu0 0.0
    %1002 = vmatpush2.msra.mxu0 0.0
    %1003 = vmatprep.subr.mxu0 0.0
    %1004 = vmatpush2.msra.mxu0 0.0
    %1005 = vmatprep.subr.mxu0 0.0
    %1006 = vmatpush2.msra.mxu0 0.0
    %1007 = vmatprep.subr.mxu0 0.0
    %1008 = vmatpush2.msra.mxu0 0.0
    %1009 = vmatprep.mubr.f32.mxu0 0.0
    %1010 = vmatmul.mubr.f32.gmra.mxu0 %v940
    %v1011 = vpop.f32.mrf.mxu0
    %v1012 = vadd.f32 0.0, %v1011
    %v1013 = vpop.f32.mrf.mxu0
    %1014 = vmatprep.mubr.f32.mxu0 0.0
    %1015 = vmatmul.mubr.f32.gmra.mxu0 %v943
    %v1016 = vpop.f32.mrf.mxu0
    %v1017 = vadd.f32 0.0, %v1016
    %v1018 = vpop.f32.mrf.mxu0
    %1019 = vdwg.mxu0
    %v1021 = vsel %vm769, %v854, 0
    %v1024 = vsel %vm769, %v855, 0
    %1026 = vmatprep.subr.mxu0 0.0
    %1027 = vmatpush1.msra.mxu0 0.0
    %1028 = vmatprep.subr.mxu0 0.0
    %1029 = vmatpush1.msra.mxu0 0.0
    %1030 = vmatprep.subr.mxu0 0.0
    %1031 = vmatpush1.msra.mxu0 0.0
    %1032 = vmatprep.subr.mxu0 0.0
    %1033 = vmatpush1.msra.mxu0 0.0
    %1034 = vmatprep.subr.mxu0 0.0
    %1035 = vmatpush1.msra.mxu0 0.0
    %1036 = vmatprep.subr.mxu0 0.0
    %1037 = vmatpush1.msra.mxu0 0.0
    %1038 = vmatprep.subr.mxu0 0.0
    %1039 = vmatpush1.msra.mxu0 0.0
    %1040 = vmatprep.subr.mxu0 0.0
    %1041 = vmatpush1.msra.mxu0 0.0
    %1042 = vmatprep.subr.mxu0 0.0
    %1043 = vmatpush1.msra.mxu0 0.0
    %1044 = vmatprep.subr.mxu0 0.0
    %1045 = vmatpush1.msra.mxu0 0.0
    %1046 = vmatprep.subr.mxu0 0.0
    %1047 = vmatpush1.msra.mxu0 0.0
    %1048 = vmatprep.subr.mxu0 0.0
    %1049 = vmatpush1.msra.mxu0 0.0
    %1050 = vmatprep.subr.mxu0 0.0
    %1051 = vmatpush1.msra.mxu0 0.0
    %1052 = vmatprep.subr.mxu0 0.0
    %1053 = vmatpush1.msra.mxu0 0.0
    %1054 = vmatprep.subr.mxu0 0.0
    %1055 = vmatpush1.msra.mxu0 %v122
    %1056 = vmatprep.subr.mxu0 0.0
    %1057 = vmatpush1.msra.mxu0 %v121
    %1058 = vmatprep.subr.mxu0 0.0
    %1059 = vmatpush2.msra.mxu0 0.0
    %1060 = vmatprep.subr.mxu0 0.0
    %1061 = vmatpush2.msra.mxu0 0.0
    %1062 = vmatprep.subr.mxu0 0.0
    %1063 = vmatpush2.msra.mxu0 0.0
    %1064 = vmatprep.subr.mxu0 0.0
    %1065 = vmatpush2.msra.mxu0 0.0
    %1066 = vmatprep.subr.mxu0 0.0
    %1067 = vmatpush2.msra.mxu0 0.0
    %1068 = vmatprep.subr.mxu0 0.0
    %1069 = vmatpush2.msra.mxu0 0.0
    %1070 = vmatprep.subr.mxu0 0.0
    %1071 = vmatpush2.msra.mxu0 0.0
    %1072 = vmatprep.subr.mxu0 0.0
    %1073 = vmatpush2.msra.mxu0 0.0
    %1074 = vmatprep.subr.mxu0 0.0
    %1075 = vmatpush2.msra.mxu0 0.0
    %1076 = vmatprep.subr.mxu0 0.0
    %1077 = vmatpush2.msra.mxu0 0.0
    %1078 = vmatprep.subr.mxu0 0.0
    %1079 = vmatpush2.msra.mxu0 0.0
    %1080 = vmatprep.subr.mxu0 0.0
    %1081 = vmatpush2.msra.mxu0 0.0
    %1082 = vmatprep.subr.mxu0 0.0
    %1083 = vmatpush2.msra.mxu0 0.0
    %1084 = vmatprep.subr.mxu0 0.0
    %1085 = vmatpush2.msra.mxu0 0.0
    %1086 = vmatprep.subr.mxu0 0.0
    %1087 = vmatpush2.msra.mxu0 0.0
    %1088 = vmatprep.subr.mxu0 0.0
    %1089 = vmatpush2.msra.mxu0 0.0
    %1090 = vmatprep.mubr.f32.mxu0 0.0
    %1091 = vmatmul.mubr.f32.gmra.mxu0 %v1021
    %v1092 = vpop.f32.mrf.mxu0
    %v1093 = vadd.f32 0.0, %v1092
    %v1094 = vpop.f32.mrf.mxu0
    %1095 = vmatprep.mubr.f32.mxu0 0.0
    %1096 = vmatmul.mubr.f32.gmra.mxu0 %v1024
    %v1097 = vpop.f32.mrf.mxu0
    %v1098 = vadd.f32 0.0, %v1097
    %v1099 = vpop.f32.mrf.mxu0
    %1100 = vdwg.mxu0
    %v1102 = vsel %vm769, %v856, 0
    %v1105 = vsel %vm769, %v857, 0
    %1107 = vmatprep.subr.mxu0 0.0
    %1108 = vmatpush1.msra.mxu0 0.0
    %1109 = vmatprep.subr.mxu0 0.0
    %1110 = vmatpush1.msra.mxu0 0.0
    %1111 = vmatprep.subr.mxu0 0.0
    %1112 = vmatpush1.msra.mxu0 0.0
    %1113 = vmatprep.subr.mxu0 0.0
    %1114 = vmatpush1.msra.mxu0 0.0
    %1115 = vmatprep.subr.mxu0 0.0
    %1116 = vmatpush1.msra.mxu0 0.0
    %1117 = vmatprep.subr.mxu0 0.0
    %1118 = vmatpush1.msra.mxu0 0.0
    %1119 = vmatprep.subr.mxu0 0.0
    %1120 = vmatpush1.msra.mxu0 0.0
    %1121 = vmatprep.subr.mxu0 0.0
    %1122 = vmatpush1.msra.mxu0 0.0
    %1123 = vmatprep.subr.mxu0 0.0
    %1124 = vmatpush1.msra.mxu0 0.0
    %1125 = vmatprep.subr.mxu0 0.0
    %1126 = vmatpush1.msra.mxu0 0.0
    %1127 = vmatprep.subr.mxu0 0.0
    %1128 = vmatpush1.msra.mxu0 0.0
    %1129 = vmatprep.subr.mxu0 0.0
    %1130 = vmatpush1.msra.mxu0 0.0
    %1131 = vmatprep.subr.mxu0 0.0
    %1132 = vmatpush1.msra.mxu0 0.0
    %1133 = vmatprep.subr.mxu0 0.0
    %1134 = vmatpush1.msra.mxu0 0.0
    %1135 = vmatprep.subr.mxu0 0.0
    %1136 = vmatpush1.msra.mxu0 %v122
    %1137 = vmatprep.subr.mxu0 0.0
    %1138 = vmatpush1.msra.mxu0 %v121
    %1139 = vmatprep.subr.mxu0 0.0
    %1140 = vmatpush2.msra.mxu0 0.0
    %1141 = vmatprep.subr.mxu0 0.0
    %1142 = vmatpush2.msra.mxu0 0.0
    %1143 = vmatprep.subr.mxu0 0.0
    %1144 = vmatpush2.msra.mxu0 0.0
    %1145 = vmatprep.subr.mxu0 0.0
    %1146 = vmatpush2.msra.mxu0 0.0
    %1147 = vmatprep.subr.mxu0 0.0
    %1148 = vmatpush2.msra.mxu0 0.0
    %1149 = vmatprep.subr.mxu0 0.0
    %1150 = vmatpush2.msra.mxu0 0.0
    %1151 = vmatprep.subr.mxu0 0.0
    %1152 = vmatpush2.msra.mxu0 0.0
    %1153 = vmatprep.subr.mxu0 0.0
    %1154 = vmatpush2.msra.mxu0 0.0
    %1155 = vmatprep.subr.mxu0 0.0
    %1156 = vmatpush2.msra.mxu0 0.0
    %1157 = vmatprep.subr.mxu0 0.0
    %1158 = vmatpush2.msra.mxu0 0.0
    %1159 = vmatprep.subr.mxu0 0.0
    %1160 = vmatpush2.msra.mxu0 0.0
    %1161 = vmatprep.subr.mxu0 0.0
    %1162 = vmatpush2.msra.mxu0 0.0
    %1163 = vmatprep.subr.mxu0 0.0
    %1164 = vmatpush2.msra.mxu0 0.0
    %1165 = vmatprep.subr.mxu0 0.0
    %1166 = vmatpush2.msra.mxu0 0.0
    %1167 = vmatprep.subr.mxu0 0.0
    %1168 = vmatpush2.msra.mxu0 0.0
    %1169 = vmatprep.subr.mxu0 0.0
    %1170 = vmatpush2.msra.mxu0 0.0
    %1171 = vmatprep.mubr.f32.mxu0 0.0
    %1172 = vmatmul.mubr.f32.gmra.mxu0 %v1102
    %v1173 = vpop.f32.mrf.mxu0
    %v1174 = vadd.f32 0.0, %v1173
    %v1175 = vpop.f32.mrf.mxu0
    %1176 = vmatprep.mubr.f32.mxu0 0.0
    %1177 = vmatmul.mubr.f32.gmra.mxu0 %v1105
    %v1178 = vpop.f32.mrf.mxu0
    %v1179 = vadd.f32 0.0, %v1178
    %v1180 = vpop.f32.mrf.mxu0
    %1181 = vdwg.mxu0
    %v1182 = vld [vmem:[#allocation5] sm:$0xff]
    %v1183 = vld [vmem:[#allocation5 + $0x8] sm:$0xff]
    %v1184 = vld [vmem:[#allocation5 + $0x10] sm:$0xff]
    %v1185 = vld [vmem:[#allocation5 + $0x18] sm:$0xff]
    %v1186 = vld [vmem:[#allocation5 + $0x20] sm:$0xff]
    %v1187 = vld [vmem:[#allocation5 + $0x28] sm:$0xff]
    %v1188 = vld [vmem:[#allocation5 + $0x30] sm:$0xff]
    %v1189 = vld [vmem:[#allocation5 + $0x38] sm:$0xff]
    %v1190 = vld [vmem:[#allocation5 + $0x40] sm:$0xff]
    %v1191 = vld [vmem:[#allocation5 + $0x48] sm:$0xff]
    %v1192 = vld [vmem:[#allocation5 + $0x50] sm:$0xff]
    %v1193 = vld [vmem:[#allocation5 + $0x58] sm:$0xff]
    %v1194 = vld [vmem:[#allocation5 + $0x60] sm:$0xff]
    %v1195 = vld [vmem:[#allocation5 + $0x68] sm:$0xff]
    %v1196 = vld [vmem:[#allocation5 + $0x70] sm:$0xff]
    %v1197 = vld [vmem:[#allocation5 + $0x78] sm:$0xff]
    %v1199 = vsel %vm79, %v931, 0
    %v1202 = vsel %vm79, %v936, 0
    %1204 = vmatprep.subr.mxu0 0.0
    %1205 = vmatpush1.msra.mxu0 0.0
    %1206 = vmatprep.subr.mxu0 0.0
    %1207 = vmatpush1.msra.mxu0 0.0
    %1208 = vmatprep.subr.mxu0 0.0
    %1209 = vmatpush1.msra.mxu0 0.0
    %1210 = vmatprep.subr.mxu0 0.0
    %1211 = vmatpush1.msra.mxu0 0.0
    %1212 = vmatprep.subr.mxu0 0.0
    %1213 = vmatpush1.msra.mxu0 0.0
    %1214 = vmatprep.subr.mxu0 0.0
    %1215 = vmatpush1.msra.mxu0 0.0
    %1216 = vmatprep.subr.mxu0 0.0
    %1217 = vmatpush1.msra.mxu0 0.0
    %1218 = vmatprep.subr.mxu0 0.0
    %1219 = vmatpush1.msra.mxu0 0.0
    %1220 = vmatprep.subr.mxu0 0.0
    %1221 = vmatpush1.msra.mxu0 0.0
    %1222 = vmatprep.subr.mxu0 0.0
    %1223 = vmatpush1.msra.mxu0 0.0
    %1224 = vmatprep.subr.mxu0 0.0
    %1225 = vmatpush1.msra.mxu0 0.0
    %1226 = vmatprep.subr.mxu0 0.0
    %1227 = vmatpush1.msra.mxu0 0.0
    %1228 = vmatprep.subr.mxu0 0.0
    %1229 = vmatpush1.msra.mxu0 %v1185
    %1230 = vmatprep.subr.mxu0 0.0
    %1231 = vmatpush1.msra.mxu0 %v1184
    %1232 = vmatprep.subr.mxu0 0.0
    %1233 = vmatpush1.msra.mxu0 %v1183
    %1234 = vmatprep.subr.mxu0 0.0
    %1235 = vmatpush1.msra.mxu0 %v1182
    %1236 = vmatprep.subr.mxu0 0.0
    %1237 = vmatpush2.msra.mxu0 0.0
    %1238 = vmatprep.subr.mxu0 0.0
    %1239 = vmatpush2.msra.mxu0 0.0
    %1240 = vmatprep.subr.mxu0 0.0
    %1241 = vmatpush2.msra.mxu0 0.0
    %1242 = vmatprep.subr.mxu0 0.0
    %1243 = vmatpush2.msra.mxu0 0.0
    %1244 = vmatprep.subr.mxu0 0.0
    %1245 = vmatpush2.msra.mxu0 0.0
    %1246 = vmatprep.subr.mxu0 0.0
    %1247 = vmatpush2.msra.mxu0 0.0
    %1248 = vmatprep.subr.mxu0 0.0
    %1249 = vmatpush2.msra.mxu0 0.0
    %1250 = vmatprep.subr.mxu0 0.0
    %1251 = vmatpush2.msra.mxu0 0.0
    %1252 = vmatprep.subr.mxu0 0.0
    %1253 = vmatpush2.msra.mxu0 0.0
    %1254 = vmatprep.subr.mxu0 0.0
    %1255 = vmatpush2.msra.mxu0 0.0
    %1256 = vmatprep.subr.mxu0 0.0
    %1257 = vmatpush2.msra.mxu0 0.0
    %1258 = vmatprep.subr.mxu0 0.0
    %1259 = vmatpush2.msra.mxu0 0.0
    %1260 = vmatprep.subr.mxu0 0.0
    %1261 = vmatpush2.msra.mxu0 0.0
    %1262 = vmatprep.subr.mxu0 0.0
    %1263 = vmatpush2.msra.mxu0 0.0
    %1264 = vmatprep.subr.mxu0 0.0
    %1265 = vmatpush2.msra.mxu0 0.0
    %1266 = vmatprep.subr.mxu0 0.0
    %1267 = vmatpush2.msra.mxu0 0.0
    %1268 = vmatprep.mubr.f32.mxu0 0.0
    %1269 = vmatmul.mubr.f32.gmra.mxu0 %v1199
    %v1270 = vpop.f32.mrf.mxu0
    %v1271 = vadd.f32 0.0, %v1270
    %v1272 = vpop.f32.mrf.mxu0
    %1273 = vmatprep.mubr.f32.mxu0 0.0
    %1274 = vmatmul.mubr.f32.gmra.mxu0 %v1202
    %v1275 = vpop.f32.mrf.mxu0
    %v1276 = vadd.f32 0.0, %v1275
    %v1277 = vpop.f32.mrf.mxu0
    %1278 = vdwg.mxu0
    %v1280 = vsel %vm79, %v1012, 0
    %v1283 = vsel %vm79, %v1017, 0
    %1285 = vmatprep.subr.mxu0 0.0
    %1286 = vmatpush1.msra.mxu0 0.0
    %1287 = vmatprep.subr.mxu0 0.0
    %1288 = vmatpush1.msra.mxu0 0.0
    %1289 = vmatprep.subr.mxu0 0.0
    %1290 = vmatpush1.msra.mxu0 0.0
    %1291 = vmatprep.subr.mxu0 0.0
    %1292 = vmatpush1.msra.mxu0 0.0
    %1293 = vmatprep.subr.mxu0 0.0
    %1294 = vmatpush1.msra.mxu0 0.0
    %1295 = vmatprep.subr.mxu0 0.0
    %1296 = vmatpush1.msra.mxu0 0.0
    %1297 = vmatprep.subr.mxu0 0.0
    %1298 = vmatpush1.msra.mxu0 0.0
    %1299 = vmatprep.subr.mxu0 0.0
    %1300 = vmatpush1.msra.mxu0 0.0
    %1301 = vmatprep.subr.mxu0 0.0
    %1302 = vmatpush1.msra.mxu0 0.0
    %1303 = vmatprep.subr.mxu0 0.0
    %1304 = vmatpush1.msra.mxu0 0.0
    %1305 = vmatprep.subr.mxu0 0.0
    %1306 = vmatpush1.msra.mxu0 0.0
    %1307 = vmatprep.subr.mxu0 0.0
    %1308 = vmatpush1.msra.mxu0 0.0
    %1309 = vmatprep.subr.mxu0 0.0
    %1310 = vmatpush1.msra.mxu0 %v1189
    %1311 = vmatprep.subr.mxu0 0.0
    %1312 = vmatpush1.msra.mxu0 %v1188
    %1313 = vmatprep.subr.mxu0 0.0
    %1314 = vmatpush1.msra.mxu0 %v1187
    %1315 = vmatprep.subr.mxu0 0.0
    %1316 = vmatpush1.msra.mxu0 %v1186
    %1317 = vmatprep.subr.mxu0 0.0
    %1318 = vmatpush2.msra.mxu0 0.0
    %1319 = vmatprep.subr.mxu0 0.0
    %1320 = vmatpush2.msra.mxu0 0.0
    %1321 = vmatprep.subr.mxu0 0.0
    %1322 = vmatpush2.msra.mxu0 0.0
    %1323 = vmatprep.subr.mxu0 0.0
    %1324 = vmatpush2.msra.mxu0 0.0
    %1325 = vmatprep.subr.mxu0 0.0
    %1326 = vmatpush2.msra.mxu0 0.0
    %1327 = vmatprep.subr.mxu0 0.0
    %1328 = vmatpush2.msra.mxu0 0.0
    %1329 = vmatprep.subr.mxu0 0.0
    %1330 = vmatpush2.msra.mxu0 0.0
    %1331 = vmatprep.subr.mxu0 0.0
    %1332 = vmatpush2.msra.mxu0 0.0
    %1333 = vmatprep.subr.mxu0 0.0
    %1334 = vmatpush2.msra.mxu0 0.0
    %1335 = vmatprep.subr.mxu0 0.0
    %1336 = vmatpush2.msra.mxu0 0.0
    %1337 = vmatprep.subr.mxu0 0.0
    %1338 = vmatpush2.msra.mxu0 0.0
    %1339 = vmatprep.subr.mxu0 0.0
    %1340 = vmatpush2.msra.mxu0 0.0
    %1341 = vmatprep.subr.mxu0 0.0
    %1342 = vmatpush2.msra.mxu0 0.0
    %1343 = vmatprep.subr.mxu0 0.0
    %1344 = vmatpush2.msra.mxu0 0.0
    %1345 = vmatprep.subr.mxu0 0.0
    %1346 = vmatpush2.msra.mxu0 0.0
    %1347 = vmatprep.subr.mxu0 0.0
    %1348 = vmatpush2.msra.mxu0 0.0
    %1349 = vmatprep.mubr.f32.mxu0 0.0
    %1350 = vmatmul.mubr.f32.gmra.mxu0 %v1280
    %v1351 = vpop.f32.mrf.mxu0
    %v1352 = vadd.f32 0.0, %v1351
    %v1353 = vpop.f32.mrf.mxu0
    %1354 = vmatprep.mubr.f32.mxu0 0.0
    %1355 = vmatmul.mubr.f32.gmra.mxu0 %v1283
    %v1356 = vpop.f32.mrf.mxu0
    %v1357 = vadd.f32 0.0, %v1356
    %v1358 = vpop.f32.mrf.mxu0
    %1359 = vdwg.mxu0
    %v1361 = vsel %vm79, %v1093, 0
    %v1364 = vsel %vm79, %v1098, 0
    %1366 = vmatprep.subr.mxu0 0.0
    %1367 = vmatpush1.msra.mxu0 0.0
    %1368 = vmatprep.subr.mxu0 0.0
    %1369 = vmatpush1.msra.mxu0 0.0
    %1370 = vmatprep.subr.mxu0 0.0
    %1371 = vmatpush1.msra.mxu0 0.0
    %1372 = vmatprep.subr.mxu0 0.0
    %1373 = vmatpush1.msra.mxu0 0.0
    %1374 = vmatprep.subr.mxu0 0.0
    %1375 = vmatpush1.msra.mxu0 0.0
    %1376 = vmatprep.subr.mxu0 0.0
    %1377 = vmatpush1.msra.mxu0 0.0
    %1378 = vmatprep.subr.mxu0 0.0
    %1379 = vmatpush1.msra.mxu0 0.0
    %1380 = vmatprep.subr.mxu0 0.0
    %1381 = vmatpush1.msra.mxu0 0.0
    %1382 = vmatprep.subr.mxu0 0.0
    %1383 = vmatpush1.msra.mxu0 0.0
    %1384 = vmatprep.subr.mxu0 0.0
    %1385 = vmatpush1.msra.mxu0 0.0
    %1386 = vmatprep.subr.mxu0 0.0
    %1387 = vmatpush1.msra.mxu0 0.0
    %1388 = vmatprep.subr.mxu0 0.0
    %1389 = vmatpush1.msra.mxu0 0.0
    %1390 = vmatprep.subr.mxu0 0.0
    %1391 = vmatpush1.msra.mxu0 %v1193
    %1392 = vmatprep.subr.mxu0 0.0
    %1393 = vmatpush1.msra.mxu0 %v1192
    %1394 = vmatprep.subr.mxu0 0.0
    %1395 = vmatpush1.msra.mxu0 %v1191
    %1396 = vmatprep.subr.mxu0 0.0
    %1397 = vmatpush1.msra.mxu0 %v1190
    %1398 = vmatprep.subr.mxu0 0.0
    %1399 = vmatpush2.msra.mxu0 0.0
    %1400 = vmatprep.subr.mxu0 0.0
    %1401 = vmatpush2.msra.mxu0 0.0
    %1402 = vmatprep.subr.mxu0 0.0
    %1403 = vmatpush2.msra.mxu0 0.0
    %1404 = vmatprep.subr.mxu0 0.0
    %1405 = vmatpush2.msra.mxu0 0.0
    %1406 = vmatprep.subr.mxu0 0.0
    %1407 = vmatpush2.msra.mxu0 0.0
    %1408 = vmatprep.subr.mxu0 0.0
    %1409 = vmatpush2.msra.mxu0 0.0
    %1410 = vmatprep.subr.mxu0 0.0
    %1411 = vmatpush2.msra.mxu0 0.0
    %1412 = vmatprep.subr.mxu0 0.0
    %1413 = vmatpush2.msra.mxu0 0.0
    %1414 = vmatprep.subr.mxu0 0.0
    %1415 = vmatpush2.msra.mxu0 0.0
    %1416 = vmatprep.subr.mxu0 0.0
    %1417 = vmatpush2.msra.mxu0 0.0
    %1418 = vmatprep.subr.mxu0 0.0
    %1419 = vmatpush2.msra.mxu0 0.0
    %1420 = vmatprep.subr.mxu0 0.0
    %1421 = vmatpush2.msra.mxu0 0.0
    %1422 = vmatprep.subr.mxu0 0.0
    %1423 = vmatpush2.msra.mxu0 0.0
    %1424 = vmatprep.subr.mxu0 0.0
    %1425 = vmatpush2.msra.mxu0 0.0
    %1426 = vmatprep.subr.mxu0 0.0
    %1427 = vmatpush2.msra.mxu0 0.0
    %1428 = vmatprep.subr.mxu0 0.0
    %1429 = vmatpush2.msra.mxu0 0.0
    %1430 = vmatprep.mubr.f32.mxu0 0.0
    %1431 = vmatmul.mubr.f32.gmra.mxu0 %v1361
    %v1432 = vpop.f32.mrf.mxu0
    %v1433 = vadd.f32 0.0, %v1432
    %v1434 = vpop.f32.mrf.mxu0
    %1435 = vmatprep.mubr.f32.mxu0 0.0
    %1436 = vmatmul.mubr.f32.gmra.mxu0 %v1364
    %v1437 = vpop.f32.mrf.mxu0
    %v1438 = vadd.f32 0.0, %v1437
    %v1439 = vpop.f32.mrf.mxu0
    %1440 = vdwg.mxu0
    %v1442 = vsel %vm79, %v1174, 0
    %v1445 = vsel %vm79, %v1179, 0
    %1447 = vmatprep.subr.mxu0 0.0
    %1448 = vmatpush1.msra.mxu0 0.0
    %1449 = vmatprep.subr.mxu0 0.0
    %1450 = vmatpush1.msra.mxu0 0.0
    %1451 = vmatprep.subr.mxu0 0.0
    %1452 = vmatpush1.msra.mxu0 0.0
    %1453 = vmatprep.subr.mxu0 0.0
    %1454 = vmatpush1.msra.mxu0 0.0
    %1455 = vmatprep.subr.mxu0 0.0
    %1456 = vmatpush1.msra.mxu0 0.0
    %1457 = vmatprep.subr.mxu0 0.0
    %1458 = vmatpush1.msra.mxu0 0.0
    %1459 = vmatprep.subr.mxu0 0.0
    %1460 = vmatpush1.msra.mxu0 0.0
    %1461 = vmatprep.subr.mxu0 0.0
    %1462 = vmatpush1.msra.mxu0 0.0
    %1463 = vmatprep.subr.mxu0 0.0
    %1464 = vmatpush1.msra.mxu0 0.0
    %1465 = vmatprep.subr.mxu0 0.0
    %1466 = vmatpush1.msra.mxu0 0.0
    %1467 = vmatprep.subr.mxu0 0.0
    %1468 = vmatpush1.msra.mxu0 0.0
    %1469 = vmatprep.subr.mxu0 0.0
    %1470 = vmatpush1.msra.mxu0 0.0
    %1471 = vmatprep.subr.mxu0 0.0
    %1472 = vmatpush1.msra.mxu0 %v1197
    %1473 = vmatprep.subr.mxu0 0.0
    %1474 = vmatpush1.msra.mxu0 %v1196
    %1475 = vmatprep.subr.mxu0 0.0
    %1476 = vmatpush1.msra.mxu0 %v1195
    %1477 = vmatprep.subr.mxu0 0.0
    %1478 = vmatpush1.msra.mxu0 %v1194
    %1479 = vmatprep.subr.mxu0 0.0
    %1480 = vmatpush2.msra.mxu0 0.0
    %1481 = vmatprep.subr.mxu0 0.0
    %1482 = vmatpush2.msra.mxu0 0.0
    %1483 = vmatprep.subr.mxu0 0.0
    %1484 = vmatpush2.msra.mxu0 0.0
    %1485 = vmatprep.subr.mxu0 0.0
    %1486 = vmatpush2.msra.mxu0 0.0
    %1487 = vmatprep.subr.mxu0 0.0
    %1488 = vmatpush2.msra.mxu0 0.0
    %1489 = vmatprep.subr.mxu0 0.0
    %1490 = vmatpush2.msra.mxu0 0.0
    %1491 = vmatprep.subr.mxu0 0.0
    %1492 = vmatpush2.msra.mxu0 0.0
    %1493 = vmatprep.subr.mxu0 0.0
    %1494 = vmatpush2.msra.mxu0 0.0
    %1495 = vmatprep.subr.mxu0 0.0
    %1496 = vmatpush2.msra.mxu0 0.0
    %1497 = vmatprep.subr.mxu0 0.0
    %1498 = vmatpush2.msra.mxu0 0.0
    %1499 = vmatprep.subr.mxu0 0.0
    %1500 = vmatpush2.msra.mxu0 0.0
    %1501 = vmatprep.subr.mxu0 0.0
    %1502 = vmatpush2.msra.mxu0 0.0
    %1503 = vmatprep.subr.mxu0 0.0
    %1504 = vmatpush2.msra.mxu0 0.0
    %1505 = vmatprep.subr.mxu0 0.0
    %1506 = vmatpush2.msra.mxu0 0.0
    %1507 = vmatprep.subr.mxu0 0.0
    %1508 = vmatpush2.msra.mxu0 0.0
    %1509 = vmatprep.subr.mxu0 0.0
    %1510 = vmatpush2.msra.mxu0 0.0
    %1511 = vmatprep.mubr.f32.mxu0 0.0
    %1512 = vmatmul.mubr.f32.gmra.mxu0 %v1442
    %v1513 = vpop.f32.mrf.mxu0
    %v1514 = vadd.f32 0.0, %v1513
    %v1515 = vpop.f32.mrf.mxu0
    %1516 = vmatprep.mubr.f32.mxu0 0.0
    %1517 = vmatmul.mubr.f32.gmra.mxu0 %v1445
    %v1518 = vpop.f32.mrf.mxu0
    %v1519 = vadd.f32 0.0, %v1518
    %v1520 = vpop.f32.mrf.mxu0
    %1521 = vdwg.mxu0
    %v1522 = vsel %vm79, %v1271, 0.0
    %v1523 = vsel %vm79, %v1352, 0.0
    %v1524 = vadd.f32 %v1522, %v1523
    %v1525 = vsel %vm79, %v1433, 0.0
    %v1526 = vadd.f32 %v1524, %v1525
    %v1527 = vsel %vm79, %v1514, 0.0
    %v1528 = vadd.f32 %v1526, %v1527
    %v1529 = vsel %vm79, %v1276, 0.0
    %v1530 = vsel %vm79, %v1357, 0.0
    %v1531 = vadd.f32 %v1529, %v1530
    %v1532 = vsel %vm79, %v1438, 0.0
    %v1533 = vadd.f32 %v1531, %v1532
    %v1534 = vsel %vm79, %v1519, 0.0
    %v1535 = vadd.f32 %v1533, %v1534
    %v1536 = vadd.f32 %v73, %v1528
    %v1537 = vadd.f32 %v74, %v1535
    %v1538 = vld [vmem:[%s6] sm:$0x1]
    %v1540 = vlaneseq
    %v1541 = vshrl.u32 %v1540, 7
    %v1542 = vsub.s32 0, %v1541
    %v1543 = vrot.slane %v1538, %v1542
    %v1545 = vadd.f32 %v1536, %v1543
    %v1546 = vadd.f32 %v1537, %v1543
    %v1547 = vld [vmem:[%s7] sm:$0x1]
    %v1548 = vld [vmem:[%s8] sm:$0x1]
    %v1549 = vsel %vm79, %v1545, 0.0
    %1550 = vadd.xlane.f32.xlu0 %v1549
    %v1551 = vpop.xlane.xlu0 %1550
    %v1552 = vsel %vm79, %v1546, 0.0
    %1553 = vadd.xlane.f32.xlu0 %v1552
    %v1554 = vpop.xlane.xlu0 %1553
    %v1555 = vmul.f32 %v1551, %v86
    %v1556 = vmul.f32 %v1554, %v86
    %v1557 = vsub.f32 %v1545, %v1555
    %v1558 = vsub.f32 %v1546, %v1556
    %v1559 = vmul.f32 %v1557, %v1557
    %v1560 = vmul.f32 %v1558, %v1558
    %v1561 = vsel %vm79, %v1559, 0.0
    %1562 = vadd.xlane.f32.xlu0 %v1561
    %v1563 = vpop.xlane.xlu0 %1562
    %v1564 = vsel %vm79, %v1560, 0.0
    %1565 = vadd.xlane.f32.xlu0 %v1564
    %v1566 = vpop.xlane.xlu0 %1565
    %v1567 = vmul.f32 %v1563, %v86
    %v1568 = vmul.f32 %v1566, %v86
    %v1569 = vadd.f32 %v1567, 1e-05
    %v1570 = vadd.f32 %v1568, 1e-05
    %v1571 = vrsqrt.pop %v1569
    %v1572 = vrsqrt.pop %v1570
    %v1573 = vmul.f32 %v1557, %v1571
    %v1574 = vmul.f32 %v1558, %v1572
    %v1576 = vlaneseq
    %v1577 = vshrl.u32 %v1576, 7
    %v1578 = vsub.s32 0, %v1577
    %v1579 = vrot.slane %v1547, %v1578
    %v1581 = vmul.f32 %v1573, %v1579
    %v1582 = vmul.f32 %v1574, %v1579
    %v1584 = vlaneseq
    %v1585 = vshrl.u32 %v1584, 7
    %v1586 = vsub.s32 0, %v1585
    %v1587 = vrot.slane %v1548, %v1586
    %v1589 = vadd.f32 %v1581, %v1587
    %v1590 = vadd.f32 %v1582, %v1587
    %v1591 = vld [vmem:[%s9] sm:$0xff]
    %v1592 = vld [vmem:[%s9 + $0x8] sm:$0xff]
    %v1593 = vld [vmem:[%s9 + $0x10] sm:$0xff]
    %v1594 = vld [vmem:[%s9 + $0x18] sm:$0xff]
    %v1595 = vld [vmem:[%s10] sm:$0x1]
    %v1597 = vlaneseq
    %v1598 = vshrl.u32 %v1597, 7
    %v1599 = vsub.s32 0, %v1598
    %v1600 = vrot.slane %v1595, %v1599
    %v1603 = vsel %vm79, %v1589, 0
    %v1606 = vsel %vm79, %v1590, 0
    %1608 = vmatprep.subr.mxu0 0.0
    %1609 = vmatpush1.msra.mxu0 0.0
    %1610 = vmatprep.subr.mxu0 0.0
    %1611 = vmatpush1.msra.mxu0 0.0
    %1612 = vmatprep.subr.mxu0 0.0
    %1613 = vmatpush1.msra.mxu0 0.0
    %1614 = vmatprep.subr.mxu0 0.0
    %1615 = vmatpush1.msra.mxu0 0.0
    %1616 = vmatprep.subr.mxu0 0.0
    %1617 = vmatpush1.msra.mxu0 0.0
    %1618 = vmatprep.subr.mxu0 0.0
    %1619 = vmatpush1.msra.mxu0 0.0
    %1620 = vmatprep.subr.mxu0 0.0
    %1621 = vmatpush1.msra.mxu0 0.0
    %1622 = vmatprep.subr.mxu0 0.0
    %1623 = vmatpush1.msra.mxu0 0.0
    %1624 = vmatprep.subr.mxu0 0.0
    %1625 = vmatpush1.msra.mxu0 0.0
    %1626 = vmatprep.subr.mxu0 0.0
    %1627 = vmatpush1.msra.mxu0 0.0
    %1628 = vmatprep.subr.mxu0 0.0
    %1629 = vmatpush1.msra.mxu0 0.0
    %1630 = vmatprep.subr.mxu0 0.0
    %1631 = vmatpush1.msra.mxu0 0.0
    %1632 = vmatprep.subr.mxu0 0.0
    %1633 = vmatpush1.msra.mxu0 %v1594
    %1634 = vmatprep.subr.mxu0 0.0
    %1635 = vmatpush1.msra.mxu0 %v1593
    %1636 = vmatprep.subr.mxu0 0.0
    %1637 = vmatpush1.msra.mxu0 %v1592
    %1638 = vmatprep.subr.mxu0 0.0
    %1639 = vmatpush1.msra.mxu0 %v1591
    %1640 = vmatprep.subr.mxu0 0.0
    %1641 = vmatpush2.msra.mxu0 0.0
    %1642 = vmatprep.subr.mxu0 0.0
    %1643 = vmatpush2.msra.mxu0 0.0
    %1644 = vmatprep.subr.mxu0 0.0
    %1645 = vmatpush2.msra.mxu0 0.0
    %1646 = vmatprep.subr.mxu0 0.0
    %1647 = vmatpush2.msra.mxu0 0.0
    %1648 = vmatprep.subr.mxu0 0.0
    %1649 = vmatpush2.msra.mxu0 0.0
    %1650 = vmatprep.subr.mxu0 0.0
    %1651 = vmatpush2.msra.mxu0 0.0
    %1652 = vmatprep.subr.mxu0 0.0
    %1653 = vmatpush2.msra.mxu0 0.0
    %1654 = vmatprep.subr.mxu0 0.0
    %1655 = vmatpush2.msra.mxu0 0.0
    %1656 = vmatprep.subr.mxu0 0.0
    %1657 = vmatpush2.msra.mxu0 0.0
    %1658 = vmatprep.subr.mxu0 0.0
    %1659 = vmatpush2.msra.mxu0 0.0
    %1660 = vmatprep.subr.mxu0 0.0
    %1661 = vmatpush2.msra.mxu0 0.0
    %1662 = vmatprep.subr.mxu0 0.0
    %1663 = vmatpush2.msra.mxu0 0.0
    %1664 = vmatprep.subr.mxu0 0.0
    %1665 = vmatpush2.msra.mxu0 0.0
    %1666 = vmatprep.subr.mxu0 0.0
    %1667 = vmatpush2.msra.mxu0 0.0
    %1668 = vmatprep.subr.mxu0 0.0
    %1669 = vmatpush2.msra.mxu0 0.0
    %1670 = vmatprep.subr.mxu0 0.0
    %1671 = vmatpush2.msra.mxu0 0.0
    %1672 = vmatprep.mubr.f32.mxu0 0.0
    %1673 = vmatmul.mubr.f32.gmra.mxu0 %v1603
    %v1674 = vpop.f32.mrf.mxu0
    %v1675 = vadd.f32 %v1600, %v1674
    %v1676 = vpop.f32.mrf.mxu0
    %1677 = vmatprep.mubr.f32.mxu0 0.0
    %1678 = vmatmul.mubr.f32.gmra.mxu0 %v1606
    %v1679 = vpop.f32.mrf.mxu0
    %v1680 = vadd.f32 %v1600, %v1679
    %v1681 = vpop.f32.mrf.mxu0
    %1682 = vdwg.mxu0
    %v1683 = vmul.f32 %v1675, 0.5
    %v1684 = vmul.f32 %v1680, 0.5
    %v1685 = vmul.f32 %v1675, 0.70710677
    %v1686 = vmul.f32 %v1680, 0.70710677
    %v1687 = verf.f32.pop %v1685
    %v1688 = verf.f32.pop %v1686
    %v1689 = vadd.f32 %v1687, 1.0
    %v1690 = vadd.f32 %v1688, 1.0
    %v1691 = vmul.f32 %v1683, %v1689
    %v1692 = vmul.f32 %v1684, %v1690
    %v1693 = vld [vmem:[%s11] sm:$0xff]
    %v1694 = vld [vmem:[%s11 + $0x8] sm:$0xff]
    %v1695 = vld [vmem:[%s11 + $0x10] sm:$0xff]
    %v1696 = vld [vmem:[%s11 + $0x18] sm:$0xff]
    %v1697 = vld [vmem:[%s11 + $0x20] sm:$0xff]
    %v1698 = vld [vmem:[%s11 + $0x28] sm:$0xff]
    %v1699 = vld [vmem:[%s11 + $0x30] sm:$0xff]
    %v1700 = vld [vmem:[%s11 + $0x38] sm:$0xff]
    %vm1701 = vcmask 523264
    %v1703 = vsel %vm1701, %v1691, 0
    %v1706 = vsel %vm1701, %v1692, 0
    %1708 = vmatprep.subr.mxu0 0.0
    %1709 = vmatpush1.msra.mxu0 0.0
    %1710 = vmatprep.subr.mxu0 0.0
    %1711 = vmatpush1.msra.mxu0 0.0
    %1712 = vmatprep.subr.mxu0 0.0
    %1713 = vmatpush1.msra.mxu0 0.0
    %1714 = vmatprep.subr.mxu0 0.0
    %1715 = vmatpush1.msra.mxu0 0.0
    %1716 = vmatprep.subr.mxu0 0.0
    %1717 = vmatpush1.msra.mxu0 0.0
    %1718 = vmatprep.subr.mxu0 0.0
    %1719 = vmatpush1.msra.mxu0 0.0
    %1720 = vmatprep.subr.mxu0 0.0
    %1721 = vmatpush1.msra.mxu0 0.0
    %1722 = vmatprep.subr.mxu0 0.0
    %1723 = vmatpush1.msra.mxu0 0.0
    %1724 = vmatprep.subr.mxu0 0.0
    %1725 = vmatpush1.msra.mxu0 %v1700
    %1726 = vmatprep.subr.mxu0 0.0
    %1727 = vmatpush1.msra.mxu0 %v1699
    %1728 = vmatprep.subr.mxu0 0.0
    %1729 = vmatpush1.msra.mxu0 %v1698
    %1730 = vmatprep.subr.mxu0 0.0
    %1731 = vmatpush1.msra.mxu0 %v1697
    %1732 = vmatprep.subr.mxu0 0.0
    %1733 = vmatpush1.msra.mxu0 %v1696
    %1734 = vmatprep.subr.mxu0 0.0
    %1735 = vmatpush1.msra.mxu0 %v1695
    %1736 = vmatprep.subr.mxu0 0.0
    %1737 = vmatpush1.msra.mxu0 %v1694
    %1738 = vmatprep.subr.mxu0 0.0
    %1739 = vmatpush1.msra.mxu0 %v1693
    %1740 = vmatprep.subr.mxu0 0.0
    %1741 = vmatpush2.msra.mxu0 0.0
    %1742 = vmatprep.subr.mxu0 0.0
    %1743 = vmatpush2.msra.mxu0 0.0
    %1744 = vmatprep.subr.mxu0 0.0
    %1745 = vmatpush2.msra.mxu0 0.0
    %1746 = vmatprep.subr.mxu0 0.0
    %1747 = vmatpush2.msra.mxu0 0.0
    %1748 = vmatprep.subr.mxu0 0.0
    %1749 = vmatpush2.msra.mxu0 0.0
    %1750 = vmatprep.subr.mxu0 0.0
    %1751 = vmatpush2.msra.mxu0 0.0
    %1752 = vmatprep.subr.mxu0 0.0
    %1753 = vmatpush2.msra.mxu0 0.0
    %1754 = vmatprep.subr.mxu0 0.0
    %1755 = vmatpush2.msra.mxu0 0.0
    %1756 = vmatprep.subr.mxu0 0.0
    %1757 = vmatpush2.msra.mxu0 0.0
    %1758 = vmatprep.subr.mxu0 0.0
    %1759 = vmatpush2.msra.mxu0 0.0
    %1760 = vmatprep.subr.mxu0 0.0
    %1761 = vmatpush2.msra.mxu0 0.0
    %1762 = vmatprep.subr.mxu0 0.0
    %1763 = vmatpush2.msra.mxu0 0.0
    %1764 = vmatprep.subr.mxu0 0.0
    %1765 = vmatpush2.msra.mxu0 0.0
    %1766 = vmatprep.subr.mxu0 0.0
    %1767 = vmatpush2.msra.mxu0 0.0
    %1768 = vmatprep.subr.mxu0 0.0
    %1769 = vmatpush2.msra.mxu0 0.0
    %1770 = vmatprep.subr.mxu0 0.0
    %1771 = vmatpush2.msra.mxu0 0.0
    %1772 = vmatprep.mubr.f32.mxu0 0.0
    %1773 = vmatmul.mubr.f32.gmra.mxu0 %v1703
    %v1774 = vpop.f32.mrf.mxu0
    %v1775 = vadd.f32 0.0, %v1774
    %v1776 = vpop.f32.mrf.mxu0
    %1777 = vmatprep.mubr.f32.mxu0 0.0
    %1778 = vmatmul.mubr.f32.gmra.mxu0 %v1706
    %v1779 = vpop.f32.mrf.mxu0
    %v1780 = vadd.f32 0.0, %v1779
    %v1781 = vpop.f32.mrf.mxu0
    %1782 = vdwg.mxu0
    %v1783 = vadd.f32 %v1545, %v1775
    %v1784 = vadd.f32 %v1546, %v1780
    %v1785 = vld [vmem:[%s12] sm:$0x1]
    %v1787 = vlaneseq
    %v1788 = vshrl.u32 %v1787, 7
    %v1789 = vsub.s32 0, %v1788
    %v1790 = vrot.slane %v1785, %v1789
    %v1792 = vadd.f32 %v1783, %v1790
    %v1793 = vadd.f32 %v1784, %v1790
    %s1794 = scalar_lea.vmem %s2, 1
    %v1795 = vld [vmem:[%s1794] sm:$0x1]
    %s1796 = scalar_lea.vmem %s3, 1
    %v1797 = vld [vmem:[%s1796] sm:$0x1]
    %v1798 = vsel %vm79, %v1792, 0.0
    %1799 = vadd.xlane.f32.xlu0 %v1798
    %v1800 = vpop.xlane.xlu0 %1799
    %v1801 = vsel %vm79, %v1793, 0.0
    %1802 = vadd.xlane.f32.xlu0 %v1801
    %v1803 = vpop.xlane.xlu0 %1802
    %v1804 = vmul.f32 %v1800, %v86
    %v1805 = vmul.f32 %v1803, %v86
    %v1806 = vsub.f32 %v1792, %v1804
    %v1807 = vsub.f32 %v1793, %v1805
    %v1808 = vmul.f32 %v1806, %v1806
    %v1809 = vmul.f32 %v1807, %v1807
    %v1810 = vsel %vm79, %v1808, 0.0
    %1811 = vadd.xlane.f32.xlu0 %v1810
    %v1812 = vpop.xlane.xlu0 %1811
    %v1813 = vsel %vm79, %v1809, 0.0
    %1814 = vadd.xlane.f32.xlu0 %v1813
    %v1815 = vpop.xlane.xlu0 %1814
    %v1816 = vmul.f32 %v1812, %v86
    %v1817 = vmul.f32 %v1815, %v86
    %v1818 = vadd.f32 %v1816, 1e-05
    %v1819 = vadd.f32 %v1817, 1e-05
    %v1820 = vrsqrt.pop %v1818
    %v1821 = vrsqrt.pop %v1819
    %v1822 = vmul.f32 %v1806, %v1820
    %v1823 = vmul.f32 %v1807, %v1821
    %v1825 = vlaneseq
    %v1826 = vshrl.u32 %v1825, 7
    %v1827 = vsub.s32 0, %v1826
    %v1828 = vrot.slane %v1795, %v1827
    %v1830 = vmul.f32 %v1822, %v1828
    %v1831 = vmul.f32 %v1823, %v1828
    %v1833 = vlaneseq
    %v1834 = vshrl.u32 %v1833, 7
    %v1835 = vsub.s32 0, %v1834
    %v1836 = vrot.slane %v1797, %v1835
    %v1838 = vadd.f32 %v1830, %v1836
    %v1839 = vadd.f32 %v1831, %v1836
    %s1840 = scalar_lea.vmem [#allocation2], 128
    %v1841 = vld [vmem:[%s1840] sm:$0xff]
    %v1842 = vld [vmem:[%s1840 + $0x8] sm:$0xff]
    %v1843 = vld [vmem:[%s1840 + $0x10] sm:$0xff]
    %v1844 = vld [vmem:[%s1840 + $0x18] sm:$0xff]
    %v1845 = vld [vmem:[%s1840 + $0x20] sm:$0xff]
    %v1846 = vld [vmem:[%s1840 + $0x28] sm:$0xff]
    %v1847 = vld [vmem:[%s1840 + $0x30] sm:$0xff]
    %v1848 = vld [vmem:[%s1840 + $0x38] sm:$0xff]
    %v1849 = vld [vmem:[%s1840 + $0x40] sm:$0xff]
    %v1850 = vld [vmem:[%s1840 + $0x48] sm:$0xff]
    %v1851 = vld [vmem:[%s1840 + $0x50] sm:$0xff]
    %v1852 = vld [vmem:[%s1840 + $0x58] sm:$0xff]
    %v1853 = vld [vmem:[%s1840 + $0x60] sm:$0xff]
    %v1854 = vld [vmem:[%s1840 + $0x68] sm:$0xff]
    %v1855 = vld [vmem:[%s1840 + $0x70] sm:$0xff]
    %v1856 = vld [vmem:[%s1840 + $0x78] sm:$0xff]
    %v1858 = vsel %vm79, %v1838, 0
    %v1861 = vsel %vm79, %v1839, 0
    %1863 = vmatprep.subr.mxu0 0.0
    %1864 = vmatpush1.msra.mxu0 0.0
    %1865 = vmatprep.subr.mxu0 0.0
    %1866 = vmatpush1.msra.mxu0 0.0
    %1867 = vmatprep.subr.mxu0 0.0
    %1868 = vmatpush1.msra.mxu0 0.0
    %1869 = vmatprep.subr.mxu0 0.0
    %1870 = vmatpush1.msra.mxu0 0.0
    %1871 = vmatprep.subr.mxu0 0.0
    %1872 = vmatpush1.msra.mxu0 0.0
    %1873 = vmatprep.subr.mxu0 0.0
    %1874 = vmatpush1.msra.mxu0 0.0
    %1875 = vmatprep.subr.mxu0 0.0
    %1876 = vmatpush1.msra.mxu0 0.0
    %1877 = vmatprep.subr.mxu0 0.0
    %1878 = vmatpush1.msra.mxu0 0.0
    %1879 = vmatprep.subr.mxu0 0.0
    %1880 = vmatpush1.msra.mxu0 0.0
    %1881 = vmatprep.subr.mxu0 0.0
    %1882 = vmatpush1.msra.mxu0 0.0
    %1883 = vmatprep.subr.mxu0 0.0
    %1884 = vmatpush1.msra.mxu0 0.0
    %1885 = vmatprep.subr.mxu0 0.0
    %1886 = vmatpush1.msra.mxu0 0.0
    %1887 = vmatprep.subr.mxu0 0.0
    %1888 = vmatpush1.msra.mxu0 %v1844
    %1889 = vmatprep.subr.mxu0 0.0
    %1890 = vmatpush1.msra.mxu0 %v1843
    %1891 = vmatprep.subr.mxu0 0.0
    %1892 = vmatpush1.msra.mxu0 %v1842
    %1893 = vmatprep.subr.mxu0 0.0
    %1894 = vmatpush1.msra.mxu0 %v1841
    %1895 = vmatprep.subr.mxu0 0.0
    %1896 = vmatpush2.msra.mxu0 0.0
    %1897 = vmatprep.subr.mxu0 0.0
    %1898 = vmatpush2.msra.mxu0 0.0
    %1899 = vmatprep.subr.mxu0 0.0
    %1900 = vmatpush2.msra.mxu0 0.0
    %1901 = vmatprep.subr.mxu0 0.0
    %1902 = vmatpush2.msra.mxu0 0.0
    %1903 = vmatprep.subr.mxu0 0.0
    %1904 = vmatpush2.msra.mxu0 0.0
    %1905 = vmatprep.subr.mxu0 0.0
    %1906 = vmatpush2.msra.mxu0 0.0
    %1907 = vmatprep.subr.mxu0 0.0
    %1908 = vmatpush2.msra.mxu0 0.0
    %1909 = vmatprep.subr.mxu0 0.0
    %1910 = vmatpush2.msra.mxu0 0.0
    %1911 = vmatprep.subr.mxu0 0.0
    %1912 = vmatpush2.msra.mxu0 0.0
    %1913 = vmatprep.subr.mxu0 0.0
    %1914 = vmatpush2.msra.mxu0 0.0
    %1915 = vmatprep.subr.mxu0 0.0
    %1916 = vmatpush2.msra.mxu0 0.0
    %1917 = vmatprep.subr.mxu0 0.0
    %1918 = vmatpush2.msra.mxu0 0.0
    %1919 = vmatprep.subr.mxu0 0.0
    %1920 = vmatpush2.msra.mxu0 0.0
    %1921 = vmatprep.subr.mxu0 0.0
    %1922 = vmatpush2.msra.mxu0 0.0
    %1923 = vmatprep.subr.mxu0 0.0
    %1924 = vmatpush2.msra.mxu0 0.0
    %1925 = vmatprep.subr.mxu0 0.0
    %1926 = vmatpush2.msra.mxu0 0.0
    %1927 = vmatprep.mubr.f32.mxu0 0.0
    %1928 = vmatmul.mubr.f32.gmra.mxu0 %v1858
    %v1929 = vpop.f32.mrf.mxu0
    %v1930 = vadd.f32 0.0, %v1929
    %v1931 = vpop.f32.mrf.mxu0
    %1932 = vmatprep.mubr.f32.mxu0 0.0
    %1933 = vmatmul.mubr.f32.gmra.mxu0 %v1861
    %v1934 = vpop.f32.mrf.mxu0
    %v1935 = vadd.f32 0.0, %v1934
    %v1936 = vpop.f32.mrf.mxu0
    %1937 = vdwg.mxu0
    %1938 = vmatprep.subr.mxu0 0.0
    %1939 = vmatpush1.msra.mxu0 0.0
    %1940 = vmatprep.subr.mxu0 0.0
    %1941 = vmatpush1.msra.mxu0 0.0
    %1942 = vmatprep.subr.mxu0 0.0
    %1943 = vmatpush1.msra.mxu0 0.0
    %1944 = vmatprep.subr.mxu0 0.0
    %1945 = vmatpush1.msra.mxu0 0.0
    %1946 = vmatprep.subr.mxu0 0.0
    %1947 = vmatpush1.msra.mxu0 0.0
    %1948 = vmatprep.subr.mxu0 0.0
    %1949 = vmatpush1.msra.mxu0 0.0
    %1950 = vmatprep.subr.mxu0 0.0
    %1951 = vmatpush1.msra.mxu0 0.0
    %1952 = vmatprep.subr.mxu0 0.0
    %1953 = vmatpush1.msra.mxu0 0.0
    %1954 = vmatprep.subr.mxu0 0.0
    %1955 = vmatpush1.msra.mxu0 0.0
    %1956 = vmatprep.subr.mxu0 0.0
    %1957 = vmatpush1.msra.mxu0 0.0
    %1958 = vmatprep.subr.mxu0 0.0
    %1959 = vmatpush1.msra.mxu0 0.0
    %1960 = vmatprep.subr.mxu0 0.0
    %1961 = vmatpush1.msra.mxu0 0.0
    %1962 = vmatprep.subr.mxu0 0.0
    %1963 = vmatpush1.msra.mxu0 %v1848
    %1964 = vmatprep.subr.mxu0 0.0
    %1965 = vmatpush1.msra.mxu0 %v1847
    %1966 = vmatprep.subr.mxu0 0.0
    %1967 = vmatpush1.msra.mxu0 %v1846
    %1968 = vmatprep.subr.mxu0 0.0
    %1969 = vmatpush1.msra.mxu0 %v1845
    %1970 = vmatprep.subr.mxu0 0.0
    %1971 = vmatpush2.msra.mxu0 0.0
    %1972 = vmatprep.subr.mxu0 0.0
    %1973 = vmatpush2.msra.mxu0 0.0
    %1974 = vmatprep.subr.mxu0 0.0
    %1975 = vmatpush2.msra.mxu0 0.0
    %1976 = vmatprep.subr.mxu0 0.0
    %1977 = vmatpush2.msra.mxu0 0.0
    %1978 = vmatprep.subr.mxu0 0.0
    %1979 = vmatpush2.msra.mxu0 0.0
    %1980 = vmatprep.subr.mxu0 0.0
    %1981 = vmatpush2.msra.mxu0 0.0
    %1982 = vmatprep.subr.mxu0 0.0
    %1983 = vmatpush2.msra.mxu0 0.0
    %1984 = vmatprep.subr.mxu0 0.0
    %1985 = vmatpush2.msra.mxu0 0.0
    %1986 = vmatprep.subr.mxu0 0.0
    %1987 = vmatpush2.msra.mxu0 0.0
    %1988 = vmatprep.subr.mxu0 0.0
    %1989 = vmatpush2.msra.mxu0 0.0
    %1990 = vmatprep.subr.mxu0 0.0
    %1991 = vmatpush2.msra.mxu0 0.0
    %1992 = vmatprep.subr.mxu0 0.0
    %1993 = vmatpush2.msra.mxu0 0.0
    %1994 = vmatprep.subr.mxu0 0.0
    %1995 = vmatpush2.msra.mxu0 0.0
    %1996 = vmatprep.subr.mxu0 0.0
    %1997 = vmatpush2.msra.mxu0 0.0
    %1998 = vmatprep.subr.mxu0 0.0
    %1999 = vmatpush2.msra.mxu0 0.0
    %2000 = vmatprep.subr.mxu0 0.0
    %2001 = vmatpush2.msra.mxu0 0.0
    %2002 = vmatprep.mubr.f32.mxu0 0.0
    %2003 = vmatmul.mubr.f32.gmra.mxu0 %v1858
    %v2004 = vpop.f32.mrf.mxu0
    %v2005 = vadd.f32 0.0, %v2004
    %v2006 = vpop.f32.mrf.mxu0
    %2007 = vmatprep.mubr.f32.mxu0 0.0
    %2008 = vmatmul.mubr.f32.gmra.mxu0 %v1861
    %v2009 = vpop.f32.mrf.mxu0
    %v2010 = vadd.f32 0.0, %v2009
    %v2011 = vpop.f32.mrf.mxu0
    %2012 = vdwg.mxu0
    %2013 = vmatprep.subr.mxu0 0.0
    %2014 = vmatpush1.msra.mxu0 0.0
    %2015 = vmatprep.subr.mxu0 0.0
    %2016 = vmatpush1.msra.mxu0 0.0
    %2017 = vmatprep.subr.mxu0 0.0
    %2018 = vmatpush1.msra.mxu0 0.0
    %2019 = vmatprep.subr.mxu0 0.0
    %2020 = vmatpush1.msra.mxu0 0.0
    %2021 = vmatprep.subr.mxu0 0.0
    %2022 = vmatpush1.msra.mxu0 0.0
    %2023 = vmatprep.subr.mxu0 0.0
    %2024 = vmatpush1.msra.mxu0 0.0
    %2025 = vmatprep.subr.mxu0 0.0
    %2026 = vmatpush1.msra.mxu0 0.0
    %2027 = vmatprep.subr.mxu0 0.0
    %2028 = vmatpush1.msra.mxu0 0.0
    %2029 = vmatprep.subr.mxu0 0.0
    %2030 = vmatpush1.msra.mxu0 0.0
    %2031 = vmatprep.subr.mxu0 0.0
    %2032 = vmatpush1.msra.mxu0 0.0
    %2033 = vmatprep.subr.mxu0 0.0
    %2034 = vmatpush1.msra.mxu0 0.0
    %2035 = vmatprep.subr.mxu0 0.0
    %2036 = vmatpush1.msra.mxu0 0.0
    %2037 = vmatprep.subr.mxu0 0.0
    %2038 = vmatpush1.msra.mxu0 %v1852
    %2039 = vmatprep.subr.mxu0 0.0
    %2040 = vmatpush1.msra.mxu0 %v1851
    %2041 = vmatprep.subr.mxu0 0.0
    %2042 = vmatpush1.msra.mxu0 %v1850
    %2043 = vmatprep.subr.mxu0 0.0
    %2044 = vmatpush1.msra.mxu0 %v1849
    %2045 = vmatprep.subr.mxu0 0.0
    %2046 = vmatpush2.msra.mxu0 0.0
    %2047 = vmatprep.subr.mxu0 0.0
    %2048 = vmatpush2.msra.mxu0 0.0
    %2049 = vmatprep.subr.mxu0 0.0
    %2050 = vmatpush2.msra.mxu0 0.0
    %2051 = vmatprep.subr.mxu0 0.0
    %2052 = vmatpush2.msra.mxu0 0.0
    %2053 = vmatprep.subr.mxu0 0.0
    %2054 = vmatpush2.msra.mxu0 0.0
    %2055 = vmatprep.subr.mxu0 0.0
    %2056 = vmatpush2.msra.mxu0 0.0
    %2057 = vmatprep.subr.mxu0 0.0
    %2058 = vmatpush2.msra.mxu0 0.0
    %2059 = vmatprep.subr.mxu0 0.0
    %2060 = vmatpush2.msra.mxu0 0.0
    %2061 = vmatprep.subr.mxu0 0.0
    %2062 = vmatpush2.msra.mxu0 0.0
    %2063 = vmatprep.subr.mxu0 0.0
    %2064 = vmatpush2.msra.mxu0 0.0
    %2065 = vmatprep.subr.mxu0 0.0
    %2066 = vmatpush2.msra.mxu0 0.0
    %2067 = vmatprep.subr.mxu0 0.0
    %2068 = vmatpush2.msra.mxu0 0.0
    %2069 = vmatprep.subr.mxu0 0.0
    %2070 = vmatpush2.msra.mxu0 0.0
    %2071 = vmatprep.subr.mxu0 0.0
    %2072 = vmatpush2.msra.mxu0 0.0
    %2073 = vmatprep.subr.mxu0 0.0
    %2074 = vmatpush2.msra.mxu0 0.0
    %2075 = vmatprep.subr.mxu0 0.0
    %2076 = vmatpush2.msra.mxu0 0.0
    %2077 = vmatprep.mubr.f32.mxu0 0.0
    %2078 = vmatmul.mubr.f32.gmra.mxu0 %v1858
    %v2079 = vpop.f32.mrf.mxu0
    %v2080 = vadd.f32 0.0, %v2079
    %v2081 = vpop.f32.mrf.mxu0
    %2082 = vmatprep.mubr.f32.mxu0 0.0
    %2083 = vmatmul.mubr.f32.gmra.mxu0 %v1861
    %v2084 = vpop.f32.mrf.mxu0
    %v2085 = vadd.f32 0.0, %v2084
    %v2086 = vpop.f32.mrf.mxu0
    %2087 = vdwg.mxu0
    %2088 = vmatprep.subr.mxu0 0.0
    %2089 = vmatpush1.msra.mxu0 0.0
    %2090 = vmatprep.subr.mxu0 0.0
    %2091 = vmatpush1.msra.mxu0 0.0
    %2092 = vmatprep.subr.mxu0 0.0
    %2093 = vmatpush1.msra.mxu0 0.0
    %2094 = vmatprep.subr.mxu0 0.0
    %2095 = vmatpush1.msra.mxu0 0.0
    %2096 = vmatprep.subr.mxu0 0.0
    %2097 = vmatpush1.msra.mxu0 0.0
    %2098 = vmatprep.subr.mxu0 0.0
    %2099 = vmatpush1.msra.mxu0 0.0
    %2100 = vmatprep.subr.mxu0 0.0
    %2101 = vmatpush1.msra.mxu0 0.0
    %2102 = vmatprep.subr.mxu0 0.0
    %2103 = vmatpush1.msra.mxu0 0.0
    %2104 = vmatprep.subr.mxu0 0.0
    %2105 = vmatpush1.msra.mxu0 0.0
    %2106 = vmatprep.subr.mxu0 0.0
    %2107 = vmatpush1.msra.mxu0 0.0
    %2108 = vmatprep.subr.mxu0 0.0
    %2109 = vmatpush1.msra.mxu0 0.0
    %2110 = vmatprep.subr.mxu0 0.0
    %2111 = vmatpush1.msra.mxu0 0.0
    %2112 = vmatprep.subr.mxu0 0.0
    %2113 = vmatpush1.msra.mxu0 %v1856
    %2114 = vmatprep.subr.mxu0 0.0
    %2115 = vmatpush1.msra.mxu0 %v1855
    %2116 = vmatprep.subr.mxu0 0.0
    %2117 = vmatpush1.msra.mxu0 %v1854
    %2118 = vmatprep.subr.mxu0 0.0
    %2119 = vmatpush1.msra.mxu0 %v1853
    %2120 = vmatprep.subr.mxu0 0.0
    %2121 = vmatpush2.msra.mxu0 0.0
    %2122 = vmatprep.subr.mxu0 0.0
    %2123 = vmatpush2.msra.mxu0 0.0
    %2124 = vmatprep.subr.mxu0 0.0
    %2125 = vmatpush2.msra.mxu0 0.0
    %2126 = vmatprep.subr.mxu0 0.0
    %2127 = vmatpush2.msra.mxu0 0.0
    %2128 = vmatprep.subr.mxu0 0.0
    %2129 = vmatpush2.msra.mxu0 0.0
    %2130 = vmatprep.subr.mxu0 0.0
    %2131 = vmatpush2.msra.mxu0 0.0
    %2132 = vmatprep.subr.mxu0 0.0
    %2133 = vmatpush2.msra.mxu0 0.0
    %2134 = vmatprep.subr.mxu0 0.0
    %2135 = vmatpush2.msra.mxu0 0.0
    %2136 = vmatprep.subr.mxu0 0.0
    %2137 = vmatpush2.msra.mxu0 0.0
    %2138 = vmatprep.subr.mxu0 0.0
    %2139 = vmatpush2.msra.mxu0 0.0
    %2140 = vmatprep.subr.mxu0 0.0
    %2141 = vmatpush2.msra.mxu0 0.0
    %2142 = vmatprep.subr.mxu0 0.0
    %2143 = vmatpush2.msra.mxu0 0.0
    %2144 = vmatprep.subr.mxu0 0.0
    %2145 = vmatpush2.msra.mxu0 0.0
    %2146 = vmatprep.subr.mxu0 0.0
    %2147 = vmatpush2.msra.mxu0 0.0
    %2148 = vmatprep.subr.mxu0 0.0
    %2149 = vmatpush2.msra.mxu0 0.0
    %2150 = vmatprep.subr.mxu0 0.0
    %2151 = vmatpush2.msra.mxu0 0.0
    %2152 = vmatprep.mubr.f32.mxu0 0.0
    %2153 = vmatmul.mubr.f32.gmra.mxu0 %v1858
    %v2154 = vpop.f32.mrf.mxu0
    %v2155 = vadd.f32 0.0, %v2154
    %v2156 = vpop.f32.mrf.mxu0
    %2157 = vmatprep.mubr.f32.mxu0 0.0
    %2158 = vmatmul.mubr.f32.gmra.mxu0 %v1861
    %v2159 = vpop.f32.mrf.mxu0
    %v2160 = vadd.f32 0.0, %v2159
    %v2161 = vpop.f32.mrf.mxu0
    %2162 = vdwg.mxu0
    %v2164 = vsel %vm79, %v1930, 0
    %v2167 = vsel %vm79, %v1935, 0
    %2169 = vmatprep.subr.mxu0 0.0
    %2170 = vmatpush1.xpose.msra.mxu0 0.0
    %2171 = vmatprep.subr.mxu0 0.0
    %2172 = vmatpush1.xpose.msra.mxu0 0.0
    %2173 = vmatprep.subr.mxu0 0.0
    %2174 = vmatpush1.xpose.msra.mxu0 0.0
    %2175 = vmatprep.subr.mxu0 0.0
    %2176 = vmatpush1.xpose.msra.mxu0 0.0
    %2177 = vmatprep.subr.mxu0 0.0
    %2178 = vmatpush1.xpose.msra.mxu0 0.0
    %2179 = vmatprep.subr.mxu0 0.0
    %2180 = vmatpush1.xpose.msra.mxu0 0.0
    %2181 = vmatprep.subr.mxu0 0.0
    %2182 = vmatpush1.xpose.msra.mxu0 0.0
    %2183 = vmatprep.subr.mxu0 0.0
    %2184 = vmatpush1.xpose.msra.mxu0 0.0
    %2185 = vmatprep.subr.mxu0 0.0
    %2186 = vmatpush1.xpose.msra.mxu0 0.0
    %2187 = vmatprep.subr.mxu0 0.0
    %2188 = vmatpush1.xpose.msra.mxu0 0.0
    %2189 = vmatprep.subr.mxu0 0.0
    %2190 = vmatpush1.xpose.msra.mxu0 0.0
    %2191 = vmatprep.subr.mxu0 0.0
    %2192 = vmatpush1.xpose.msra.mxu0 0.0
    %2193 = vmatprep.subr.mxu0 0.0
    %2194 = vmatpush1.xpose.msra.mxu0 0.0
    %2195 = vmatprep.subr.mxu0 0.0
    %2196 = vmatpush1.xpose.msra.mxu0 0.0
    %2197 = vmatprep.subr.mxu0 0.0
    %2198 = vmatpush1.xpose.msra.mxu0 %v1861
    %2199 = vmatprep.subr.mxu0 0.0
    %2200 = vmatpush1.xpose.msra.mxu0 %v1858
    %2201 = vmatprep.subr.mxu0 0.0
    %2202 = vmatpush2.xpose.msra.mxu0 0.0
    %2203 = vmatprep.subr.mxu0 0.0
    %2204 = vmatpush2.xpose.msra.mxu0 0.0
    %2205 = vmatprep.subr.mxu0 0.0
    %2206 = vmatpush2.xpose.msra.mxu0 0.0
    %2207 = vmatprep.subr.mxu0 0.0
    %2208 = vmatpush2.xpose.msra.mxu0 0.0
    %2209 = vmatprep.subr.mxu0 0.0
    %2210 = vmatpush2.xpose.msra.mxu0 0.0
    %2211 = vmatprep.subr.mxu0 0.0
    %2212 = vmatpush2.xpose.msra.mxu0 0.0
    %2213 = vmatprep.subr.mxu0 0.0
    %2214 = vmatpush2.xpose.msra.mxu0 0.0
    %2215 = vmatprep.subr.mxu0 0.0
    %2216 = vmatpush2.xpose.msra.mxu0 0.0
    %2217 = vmatprep.subr.mxu0 0.0
    %2218 = vmatpush2.xpose.msra.mxu0 0.0
    %2219 = vmatprep.subr.mxu0 0.0
    %2220 = vmatpush2.xpose.msra.mxu0 0.0
    %2221 = vmatprep.subr.mxu0 0.0
    %2222 = vmatpush2.xpose.msra.mxu0 0.0
    %2223 = vmatprep.subr.mxu0 0.0
    %2224 = vmatpush2.xpose.msra.mxu0 0.0
    %2225 = vmatprep.subr.mxu0 0.0
    %2226 = vmatpush2.xpose.msra.mxu0 0.0
    %2227 = vmatprep.subr.mxu0 0.0
    %2228 = vmatpush2.xpose.msra.mxu0 0.0
    %2229 = vmatprep.subr.mxu0 0.0
    %2230 = vmatpush2.xpose.msra.mxu0 0.0
    %2231 = vmatprep.subr.mxu0 0.0
    %2232 = vmatpush2.xpose.msra.mxu0 0.0
    %2233 = vmatprep.mubr.f32.mxu0 0.0
    %2234 = vmatmul.mubr.f32.gmra.mxu0 %v2164
    %v2235 = vpop.f32.mrf.mxu0
    %v2236 = vadd.f32 %v75, %v2235
    %v2237 = vpop.f32.mrf.mxu0
    %2238 = vmatprep.mubr.f32.mxu0 0.0
    %2239 = vmatmul.mubr.f32.gmra.mxu0 %v2167
    %v2240 = vpop.f32.mrf.mxu0
    %v2241 = vadd.f32 %v76, %v2240
    %v2242 = vpop.f32.mrf.mxu0
    %2243 = vdwg.mxu0
    %v2245 = vsel %vm79, %v2005, 0
    %v2248 = vsel %vm79, %v2010, 0
    %2250 = vmatprep.subr.mxu0 0.0
    %2251 = vmatpush1.xpose.msra.mxu0 0.0
    %2252 = vmatprep.subr.mxu0 0.0
    %2253 = vmatpush1.xpose.msra.mxu0 0.0
    %2254 = vmatprep.subr.mxu0 0.0
    %2255 = vmatpush1.xpose.msra.mxu0 0.0
    %2256 = vmatprep.subr.mxu0 0.0
    %2257 = vmatpush1.xpose.msra.mxu0 0.0
    %2258 = vmatprep.subr.mxu0 0.0
    %2259 = vmatpush1.xpose.msra.mxu0 0.0
    %2260 = vmatprep.subr.mxu0 0.0
    %2261 = vmatpush1.xpose.msra.mxu0 0.0
    %2262 = vmatprep.subr.mxu0 0.0
    %2263 = vmatpush1.xpose.msra.mxu0 0.0
    %2264 = vmatprep.subr.mxu0 0.0
    %2265 = vmatpush1.xpose.msra.mxu0 0.0
    %2266 = vmatprep.subr.mxu0 0.0
    %2267 = vmatpush1.xpose.msra.mxu0 0.0
    %2268 = vmatprep.subr.mxu0 0.0
    %2269 = vmatpush1.xpose.msra.mxu0 0.0
    %2270 = vmatprep.subr.mxu0 0.0
    %2271 = vmatpush1.xpose.msra.mxu0 0.0
    %2272 = vmatprep.subr.mxu0 0.0
    %2273 = vmatpush1.xpose.msra.mxu0 0.0
    %2274 = vmatprep.subr.mxu0 0.0
    %2275 = vmatpush1.xpose.msra.mxu0 0.0
    %2276 = vmatprep.subr.mxu0 0.0
    %2277 = vmatpush1.xpose.msra.mxu0 0.0
    %2278 = vmatprep.subr.mxu0 0.0
    %2279 = vmatpush1.xpose.msra.mxu0 %v1861
    %2280 = vmatprep.subr.mxu0 0.0
    %2281 = vmatpush1.xpose.msra.mxu0 %v1858
    %2282 = vmatprep.subr.mxu0 0.0
    %2283 = vmatpush2.xpose.msra.mxu0 0.0
    %2284 = vmatprep.subr.mxu0 0.0
    %2285 = vmatpush2.xpose.msra.mxu0 0.0
    %2286 = vmatprep.subr.mxu0 0.0
    %2287 = vmatpush2.xpose.msra.mxu0 0.0
    %2288 = vmatprep.subr.mxu0 0.0
    %2289 = vmatpush2.xpose.msra.mxu0 0.0
    %2290 = vmatprep.subr.mxu0 0.0
    %2291 = vmatpush2.xpose.msra.mxu0 0.0
    %2292 = vmatprep.subr.mxu0 0.0
    %2293 = vmatpush2.xpose.msra.mxu0 0.0
    %2294 = vmatprep.subr.mxu0 0.0
    %2295 = vmatpush2.xpose.msra.mxu0 0.0
    %2296 = vmatprep.subr.mxu0 0.0
    %2297 = vmatpush2.xpose.msra.mxu0 0.0
    %2298 = vmatprep.subr.mxu0 0.0
    %2299 = vmatpush2.xpose.msra.mxu0 0.0
    %2300 = vmatprep.subr.mxu0 0.0
    %2301 = vmatpush2.xpose.msra.mxu0 0.0
    %2302 = vmatprep.subr.mxu0 0.0
    %2303 = vmatpush2.xpose.msra.mxu0 0.0
    %2304 = vmatprep.subr.mxu0 0.0
    %2305 = vmatpush2.xpose.msra.mxu0 0.0
    %2306 = vmatprep.subr.mxu0 0.0
    %2307 = vmatpush2.xpose.msra.mxu0 0.0
    %2308 = vmatprep.subr.mxu0 0.0
    %2309 = vmatpush2.xpose.msra.mxu0 0.0
    %2310 = vmatprep.subr.mxu0 0.0
    %2311 = vmatpush2.xpose.msra.mxu0 0.0
    %2312 = vmatprep.subr.mxu0 0.0
    %2313 = vmatpush2.xpose.msra.mxu0 0.0
    %2314 = vmatprep.mubr.f32.mxu0 0.0
    %2315 = vmatmul.mubr.f32.gmra.mxu0 %v2245
    %v2316 = vpop.f32.mrf.mxu0
    %v2317 = vadd.f32 %v75, %v2316
    %v2318 = vpop.f32.mrf.mxu0
    %2319 = vmatprep.mubr.f32.mxu0 0.0
    %2320 = vmatmul.mubr.f32.gmra.mxu0 %v2248
    %v2321 = vpop.f32.mrf.mxu0
    %v2322 = vadd.f32 %v76, %v2321
    %v2323 = vpop.f32.mrf.mxu0
    %2324 = vdwg.mxu0
    %v2326 = vsel %vm79, %v2080, 0
    %v2329 = vsel %vm79, %v2085, 0
    %2331 = vmatprep.subr.mxu0 0.0
    %2332 = vmatpush1.xpose.msra.mxu0 0.0
    %2333 = vmatprep.subr.mxu0 0.0
    %2334 = vmatpush1.xpose.msra.mxu0 0.0
    %2335 = vmatprep.subr.mxu0 0.0
    %2336 = vmatpush1.xpose.msra.mxu0 0.0
    %2337 = vmatprep.subr.mxu0 0.0
    %2338 = vmatpush1.xpose.msra.mxu0 0.0
    %2339 = vmatprep.subr.mxu0 0.0
    %2340 = vmatpush1.xpose.msra.mxu0 0.0
    %2341 = vmatprep.subr.mxu0 0.0
    %2342 = vmatpush1.xpose.msra.mxu0 0.0
    %2343 = vmatprep.subr.mxu0 0.0
    %2344 = vmatpush1.xpose.msra.mxu0 0.0
    %2345 = vmatprep.subr.mxu0 0.0
    %2346 = vmatpush1.xpose.msra.mxu0 0.0
    %2347 = vmatprep.subr.mxu0 0.0
    %2348 = vmatpush1.xpose.msra.mxu0 0.0
    %2349 = vmatprep.subr.mxu0 0.0
    %2350 = vmatpush1.xpose.msra.mxu0 0.0
    %2351 = vmatprep.subr.mxu0 0.0
    %2352 = vmatpush1.xpose.msra.mxu0 0.0
    %2353 = vmatprep.subr.mxu0 0.0
    %2354 = vmatpush1.xpose.msra.mxu0 0.0
    %2355 = vmatprep.subr.mxu0 0.0
    %2356 = vmatpush1.xpose.msra.mxu0 0.0
    %2357 = vmatprep.subr.mxu0 0.0
    %2358 = vmatpush1.xpose.msra.mxu0 0.0
    %2359 = vmatprep.subr.mxu0 0.0
    %2360 = vmatpush1.xpose.msra.mxu0 %v1861
    %2361 = vmatprep.subr.mxu0 0.0
    %2362 = vmatpush1.xpose.msra.mxu0 %v1858
    %2363 = vmatprep.subr.mxu0 0.0
    %2364 = vmatpush2.xpose.msra.mxu0 0.0
    %2365 = vmatprep.subr.mxu0 0.0
    %2366 = vmatpush2.xpose.msra.mxu0 0.0
    %2367 = vmatprep.subr.mxu0 0.0
    %2368 = vmatpush2.xpose.msra.mxu0 0.0
    %2369 = vmatprep.subr.mxu0 0.0
    %2370 = vmatpush2.xpose.msra.mxu0 0.0
    %2371 = vmatprep.subr.mxu0 0.0
    %2372 = vmatpush2.xpose.msra.mxu0 0.0
    %2373 = vmatprep.subr.mxu0 0.0
    %2374 = vmatpush2.xpose.msra.mxu0 0.0
    %2375 = vmatprep.subr.mxu0 0.0
    %2376 = vmatpush2.xpose.msra.mxu0 0.0
    %2377 = vmatprep.subr.mxu0 0.0
    %2378 = vmatpush2.xpose.msra.mxu0 0.0
    %2379 = vmatprep.subr.mxu0 0.0
    %2380 = vmatpush2.xpose.msra.mxu0 0.0
    %2381 = vmatprep.subr.mxu0 0.0
    %2382 = vmatpush2.xpose.msra.mxu0 0.0
    %2383 = vmatprep.subr.mxu0 0.0
    %2384 = vmatpush2.xpose.msra.mxu0 0.0
    %2385 = vmatprep.subr.mxu0 0.0
    %2386 = vmatpush2.xpose.msra.mxu0 0.0
    %2387 = vmatprep.subr.mxu0 0.0
    %2388 = vmatpush2.xpose.msra.mxu0 0.0
    %2389 = vmatprep.subr.mxu0 0.0
    %2390 = vmatpush2.xpose.msra.mxu0 0.0
    %2391 = vmatprep.subr.mxu0 0.0
    %2392 = vmatpush2.xpose.msra.mxu0 0.0
    %2393 = vmatprep.subr.mxu0 0.0
    %2394 = vmatpush2.xpose.msra.mxu0 0.0
    %2395 = vmatprep.mubr.f32.mxu0 0.0
    %2396 = vmatmul.mubr.f32.gmra.mxu0 %v2326
    %v2397 = vpop.f32.mrf.mxu0
    %v2398 = vadd.f32 %v75, %v2397
    %v2399 = vpop.f32.mrf.mxu0
    %2400 = vmatprep.mubr.f32.mxu0 0.0
    %2401 = vmatmul.mubr.f32.gmra.mxu0 %v2329
    %v2402 = vpop.f32.mrf.mxu0
    %v2403 = vadd.f32 %v76, %v2402
    %v2404 = vpop.f32.mrf.mxu0
    %2405 = vdwg.mxu0
    %v2407 = vsel %vm79, %v2155, 0
    %v2410 = vsel %vm79, %v2160, 0
    %2412 = vmatprep.subr.mxu0 0.0
    %2413 = vmatpush1.xpose.msra.mxu0 0.0
    %2414 = vmatprep.subr.mxu0 0.0
    %2415 = vmatpush1.xpose.msra.mxu0 0.0
    %2416 = vmatprep.subr.mxu0 0.0
    %2417 = vmatpush1.xpose.msra.mxu0 0.0
    %2418 = vmatprep.subr.mxu0 0.0
    %2419 = vmatpush1.xpose.msra.mxu0 0.0
    %2420 = vmatprep.subr.mxu0 0.0
    %2421 = vmatpush1.xpose.msra.mxu0 0.0
    %2422 = vmatprep.subr.mxu0 0.0
    %2423 = vmatpush1.xpose.msra.mxu0 0.0
    %2424 = vmatprep.subr.mxu0 0.0
    %2425 = vmatpush1.xpose.msra.mxu0 0.0
    %2426 = vmatprep.subr.mxu0 0.0
    %2427 = vmatpush1.xpose.msra.mxu0 0.0
    %2428 = vmatprep.subr.mxu0 0.0
    %2429 = vmatpush1.xpose.msra.mxu0 0.0
    %2430 = vmatprep.subr.mxu0 0.0
    %2431 = vmatpush1.xpose.msra.mxu0 0.0
    %2432 = vmatprep.subr.mxu0 0.0
    %2433 = vmatpush1.xpose.msra.mxu0 0.0
    %2434 = vmatprep.subr.mxu0 0.0
    %2435 = vmatpush1.xpose.msra.mxu0 0.0
    %2436 = vmatprep.subr.mxu0 0.0
    %2437 = vmatpush1.xpose.msra.mxu0 0.0
    %2438 = vmatprep.subr.mxu0 0.0
    %2439 = vmatpush1.xpose.msra.mxu0 0.0
    %2440 = vmatprep.subr.mxu0 0.0
    %2441 = vmatpush1.xpose.msra.mxu0 %v1861
    %2442 = vmatprep.subr.mxu0 0.0
    %2443 = vmatpush1.xpose.msra.mxu0 %v1858
    %2444 = vmatprep.subr.mxu0 0.0
    %2445 = vmatpush2.xpose.msra.mxu0 0.0
    %2446 = vmatprep.subr.mxu0 0.0
    %2447 = vmatpush2.xpose.msra.mxu0 0.0
    %2448 = vmatprep.subr.mxu0 0.0
    %2449 = vmatpush2.xpose.msra.mxu0 0.0
    %2450 = vmatprep.subr.mxu0 0.0
    %2451 = vmatpush2.xpose.msra.mxu0 0.0
    %2452 = vmatprep.subr.mxu0 0.0
    %2453 = vmatpush2.xpose.msra.mxu0 0.0
    %2454 = vmatprep.subr.mxu0 0.0
    %2455 = vmatpush2.xpose.msra.mxu0 0.0
    %2456 = vmatprep.subr.mxu0 0.0
    %2457 = vmatpush2.xpose.msra.mxu0 0.0
    %2458 = vmatprep.subr.mxu0 0.0
    %2459 = vmatpush2.xpose.msra.mxu0 0.0
    %2460 = vmatprep.subr.mxu0 0.0
    %2461 = vmatpush2.xpose.msra.mxu0 0.0
    %2462 = vmatprep.subr.mxu0 0.0
    %2463 = vmatpush2.xpose.msra.mxu0 0.0
    %2464 = vmatprep.subr.mxu0 0.0
    %2465 = vmatpush2.xpose.msra.mxu0 0.0
    %2466 = vmatprep.subr.mxu0 0.0
    %2467 = vmatpush2.xpose.msra.mxu0 0.0
    %2468 = vmatprep.subr.mxu0 0.0
    %2469 = vmatpush2.xpose.msra.mxu0 0.0
    %2470 = vmatprep.subr.mxu0 0.0
    %2471 = vmatpush2.xpose.msra.mxu0 0.0
    %2472 = vmatprep.subr.mxu0 0.0
    %2473 = vmatpush2.xpose.msra.mxu0 0.0
    %2474 = vmatprep.subr.mxu0 0.0
    %2475 = vmatpush2.xpose.msra.mxu0 0.0
    %2476 = vmatprep.mubr.f32.mxu0 0.0
    %2477 = vmatmul.mubr.f32.gmra.mxu0 %v2407
    %v2478 = vpop.f32.mrf.mxu0
    %v2479 = vadd.f32 %v75, %v2478
    %v2480 = vpop.f32.mrf.mxu0
    %2481 = vmatprep.mubr.f32.mxu0 0.0
    %2482 = vmatmul.mubr.f32.gmra.mxu0 %v2410
    %v2483 = vpop.f32.mrf.mxu0
    %v2484 = vadd.f32 %v76, %v2483
    %v2485 = vpop.f32.mrf.mxu0
    %2486 = vdwg.mxu0
    %v2487 = vsel %vm769, %v2236, -inf
    %2488 = vmax.xlane.f32.xlu0 %v2487
    %v2489 = vpop.xlane.xlu0 %2488
    %v2490 = vsel %vm769, %v2241, -inf
    %2491 = vmax.xlane.f32.xlu0 %v2490
    %v2492 = vpop.xlane.xlu0 %2491
    %v2493 = vsel %vm769, %v2317, -inf
    %2494 = vmax.xlane.f32.xlu0 %v2493
    %v2495 = vpop.xlane.xlu0 %2494
    %v2496 = vsel %vm769, %v2322, -inf
    %2497 = vmax.xlane.f32.xlu0 %v2496
    %v2498 = vpop.xlane.xlu0 %2497
    %v2499 = vsel %vm769, %v2398, -inf
    %2500 = vmax.xlane.f32.xlu0 %v2499
    %v2501 = vpop.xlane.xlu0 %2500
    %v2502 = vsel %vm769, %v2403, -inf
    %2503 = vmax.xlane.f32.xlu0 %v2502
    %v2504 = vpop.xlane.xlu0 %2503
    %v2505 = vsel %vm769, %v2479, -inf
    %2506 = vmax.xlane.f32.xlu0 %v2505
    %v2507 = vpop.xlane.xlu0 %2506
    %v2508 = vsel %vm769, %v2484, -inf
    %2509 = vmax.xlane.f32.xlu0 %v2508
    %v2510 = vpop.xlane.xlu0 %2509
    %v2511 = vsub.f32 %v2236, %v2489
    %v2512 = vsub.f32 %v2241, %v2492
    %v2513 = vsub.f32 %v2317, %v2495
    %v2514 = vsub.f32 %v2322, %v2498
    %v2515 = vsub.f32 %v2398, %v2501
    %v2516 = vsub.f32 %v2403, %v2504
    %v2517 = vsub.f32 %v2479, %v2507
    %v2518 = vsub.f32 %v2484, %v2510
    %v2519 = vmul.f32 %v2511, 1.442695
    %v2520 = vpow.pop %v2519
    %v2521 = vmul.f32 %v2512, 1.442695
    %v2522 = vpow.pop %v2521
    %v2523 = vmul.f32 %v2513, 1.442695
    %v2524 = vpow.pop %v2523
    %v2525 = vmul.f32 %v2514, 1.442695
    %v2526 = vpow.pop %v2525
    %v2527 = vmul.f32 %v2515, 1.442695
    %v2528 = vpow.pop %v2527
    %v2529 = vmul.f32 %v2516, 1.442695
    %v2530 = vpow.pop %v2529
    %v2531 = vmul.f32 %v2517, 1.442695
    %v2532 = vpow.pop %v2531
    %v2533 = vmul.f32 %v2518, 1.442695
    %v2534 = vpow.pop %v2533
    %v2535 = vsel %vm769, %v2520, 0.0
    %2536 = vadd.xlane.f32.xlu0 %v2535
    %v2537 = vpop.xlane.xlu0 %2536
    %v2538 = vsel %vm769, %v2522, 0.0
    %2539 = vadd.xlane.f32.xlu0 %v2538
    %v2540 = vpop.xlane.xlu0 %2539
    %v2541 = vsel %vm769, %v2524, 0.0
    %2542 = vadd.xlane.f32.xlu0 %v2541
    %v2543 = vpop.xlane.xlu0 %2542
    %v2544 = vsel %vm769, %v2526, 0.0
    %2545 = vadd.xlane.f32.xlu0 %v2544
    %v2546 = vpop.xlane.xlu0 %2545
    %v2547 = vsel %vm769, %v2528, 0.0
    %2548 = vadd.xlane.f32.xlu0 %v2547
    %v2549 = vpop.xlane.xlu0 %2548
    %v2550 = vsel %vm769, %v2530, 0.0
    %2551 = vadd.xlane.f32.xlu0 %v2550
    %v2552 = vpop.xlane.xlu0 %2551
    %v2553 = vsel %vm769, %v2532, 0.0
    %2554 = vadd.xlane.f32.xlu0 %v2553
    %v2555 = vpop.xlane.xlu0 %2554
    %v2556 = vsel %vm769, %v2534, 0.0
    %2557 = vadd.xlane.f32.xlu0 %v2556
    %v2558 = vpop.xlane.xlu0 %2557
    %v2559 = vrcp.pop %v2537
    %v2560 = vrcp.pop %v2540
    %v2561 = vrcp.pop %v2543
    %v2562 = vrcp.pop %v2546
    %v2563 = vrcp.pop %v2549
    %v2564 = vrcp.pop %v2552
    %v2565 = vrcp.pop %v2555
    %v2566 = vrcp.pop %v2558
    %v2567 = vmul.f32 %v2520, %v2559
    %v2568 = vmul.f32 %v2522, %v2560
    %v2569 = vmul.f32 %v2524, %v2561
    %v2570 = vmul.f32 %v2526, %v2562
    %v2571 = vmul.f32 %v2528, %v2563
    %v2572 = vmul.f32 %v2530, %v2564
    %v2573 = vmul.f32 %v2532, %v2565
    %v2574 = vmul.f32 %v2534, %v2566
    %v2576 = vsel %vm769, %v2567, 0
    %v2579 = vsel %vm769, %v2568, 0
    %2581 = vmatprep.subr.mxu0 0.0
    %2582 = vmatpush1.msra.mxu0 0.0
    %2583 = vmatprep.subr.mxu0 0.0
    %2584 = vmatpush1.msra.mxu0 0.0
    %2585 = vmatprep.subr.mxu0 0.0
    %2586 = vmatpush1.msra.mxu0 0.0
    %2587 = vmatprep.subr.mxu0 0.0
    %2588 = vmatpush1.msra.mxu0 0.0
    %2589 = vmatprep.subr.mxu0 0.0
    %2590 = vmatpush1.msra.mxu0 0.0
    %2591 = vmatprep.subr.mxu0 0.0
    %2592 = vmatpush1.msra.mxu0 0.0
    %2593 = vmatprep.subr.mxu0 0.0
    %2594 = vmatpush1.msra.mxu0 0.0
    %2595 = vmatprep.subr.mxu0 0.0
    %2596 = vmatpush1.msra.mxu0 0.0
    %2597 = vmatprep.subr.mxu0 0.0
    %2598 = vmatpush1.msra.mxu0 0.0
    %2599 = vmatprep.subr.mxu0 0.0
    %2600 = vmatpush1.msra.mxu0 0.0
    %2601 = vmatprep.subr.mxu0 0.0
    %2602 = vmatpush1.msra.mxu0 0.0
    %2603 = vmatprep.subr.mxu0 0.0
    %2604 = vmatpush1.msra.mxu0 0.0
    %2605 = vmatprep.subr.mxu0 0.0
    %2606 = vmatpush1.msra.mxu0 0.0
    %2607 = vmatprep.subr.mxu0 0.0
    %2608 = vmatpush1.msra.mxu0 0.0
    %2609 = vmatprep.subr.mxu0 0.0
    %2610 = vmatpush1.msra.mxu0 %v1839
    %2611 = vmatprep.subr.mxu0 0.0
    %2612 = vmatpush1.msra.mxu0 %v1838
    %2613 = vmatprep.subr.mxu0 0.0
    %2614 = vmatpush2.msra.mxu0 0.0
    %2615 = vmatprep.subr.mxu0 0.0
    %2616 = vmatpush2.msra.mxu0 0.0
    %2617 = vmatprep.subr.mxu0 0.0
    %2618 = vmatpush2.msra.mxu0 0.0
    %2619 = vmatprep.subr.mxu0 0.0
    %2620 = vmatpush2.msra.mxu0 0.0
    %2621 = vmatprep.subr.mxu0 0.0
    %2622 = vmatpush2.msra.mxu0 0.0
    %2623 = vmatprep.subr.mxu0 0.0
    %2624 = vmatpush2.msra.mxu0 0.0
    %2625 = vmatprep.subr.mxu0 0.0
    %2626 = vmatpush2.msra.mxu0 0.0
    %2627 = vmatprep.subr.mxu0 0.0
    %2628 = vmatpush2.msra.mxu0 0.0
    %2629 = vmatprep.subr.mxu0 0.0
    %2630 = vmatpush2.msra.mxu0 0.0
    %2631 = vmatprep.subr.mxu0 0.0
    %2632 = vmatpush2.msra.mxu0 0.0
    %2633 = vmatprep.subr.mxu0 0.0
    %2634 = vmatpush2.msra.mxu0 0.0
    %2635 = vmatprep.subr.mxu0 0.0
    %2636 = vmatpush2.msra.mxu0 0.0
    %2637 = vmatprep.subr.mxu0 0.0
    %2638 = vmatpush2.msra.mxu0 0.0
    %2639 = vmatprep.subr.mxu0 0.0
    %2640 = vmatpush2.msra.mxu0 0.0
    %2641 = vmatprep.subr.mxu0 0.0
    %2642 = vmatpush2.msra.mxu0 0.0
    %2643 = vmatprep.subr.mxu0 0.0
    %2644 = vmatpush2.msra.mxu0 0.0
    %2645 = vmatprep.mubr.f32.mxu0 0.0
    %2646 = vmatmul.mubr.f32.gmra.mxu0 %v2576
    %v2647 = vpop.f32.mrf.mxu0
    %v2648 = vadd.f32 0.0, %v2647
    %v2649 = vpop.f32.mrf.mxu0
    %2650 = vmatprep.mubr.f32.mxu0 0.0
    %2651 = vmatmul.mubr.f32.gmra.mxu0 %v2579
    %v2652 = vpop.f32.mrf.mxu0
    %v2653 = vadd.f32 0.0, %v2652
    %v2654 = vpop.f32.mrf.mxu0
    %2655 = vdwg.mxu0
    %v2657 = vsel %vm769, %v2569, 0
    %v2660 = vsel %vm769, %v2570, 0
    %2662 = vmatprep.subr.mxu0 0.0
    %2663 = vmatpush1.msra.mxu0 0.0
    %2664 = vmatprep.subr.mxu0 0.0
    %2665 = vmatpush1.msra.mxu0 0.0
    %2666 = vmatprep.subr.mxu0 0.0
    %2667 = vmatpush1.msra.mxu0 0.0
    %2668 = vmatprep.subr.mxu0 0.0
    %2669 = vmatpush1.msra.mxu0 0.0
    %2670 = vmatprep.subr.mxu0 0.0
    %2671 = vmatpush1.msra.mxu0 0.0
    %2672 = vmatprep.subr.mxu0 0.0
    %2673 = vmatpush1.msra.mxu0 0.0
    %2674 = vmatprep.subr.mxu0 0.0
    %2675 = vmatpush1.msra.mxu0 0.0
    %2676 = vmatprep.subr.mxu0 0.0
    %2677 = vmatpush1.msra.mxu0 0.0
    %2678 = vmatprep.subr.mxu0 0.0
    %2679 = vmatpush1.msra.mxu0 0.0
    %2680 = vmatprep.subr.mxu0 0.0
    %2681 = vmatpush1.msra.mxu0 0.0
    %2682 = vmatprep.subr.mxu0 0.0
    %2683 = vmatpush1.msra.mxu0 0.0
    %2684 = vmatprep.subr.mxu0 0.0
    %2685 = vmatpush1.msra.mxu0 0.0
    %2686 = vmatprep.subr.mxu0 0.0
    %2687 = vmatpush1.msra.mxu0 0.0
    %2688 = vmatprep.subr.mxu0 0.0
    %2689 = vmatpush1.msra.mxu0 0.0
    %2690 = vmatprep.subr.mxu0 0.0
    %2691 = vmatpush1.msra.mxu0 %v1839
    %2692 = vmatprep.subr.mxu0 0.0
    %2693 = vmatpush1.msra.mxu0 %v1838
    %2694 = vmatprep.subr.mxu0 0.0
    %2695 = vmatpush2.msra.mxu0 0.0
    %2696 = vmatprep.subr.mxu0 0.0
    %2697 = vmatpush2.msra.mxu0 0.0
    %2698 = vmatprep.subr.mxu0 0.0
    %2699 = vmatpush2.msra.mxu0 0.0
    %2700 = vmatprep.subr.mxu0 0.0
    %2701 = vmatpush2.msra.mxu0 0.0
    %2702 = vmatprep.subr.mxu0 0.0
    %2703 = vmatpush2.msra.mxu0 0.0
    %2704 = vmatprep.subr.mxu0 0.0
    %2705 = vmatpush2.msra.mxu0 0.0
    %2706 = vmatprep.subr.mxu0 0.0
    %2707 = vmatpush2.msra.mxu0 0.0
    %2708 = vmatprep.subr.mxu0 0.0
    %2709 = vmatpush2.msra.mxu0 0.0
    %2710 = vmatprep.subr.mxu0 0.0
    %2711 = vmatpush2.msra.mxu0 0.0
    %2712 = vmatprep.subr.mxu0 0.0
    %2713 = vmatpush2.msra.mxu0 0.0
    %2714 = vmatprep.subr.mxu0 0.0
    %2715 = vmatpush2.msra.mxu0 0.0
    %2716 = vmatprep.subr.mxu0 0.0
    %2717 = vmatpush2.msra.mxu0 0.0
    %2718 = vmatprep.subr.mxu0 0.0
    %2719 = vmatpush2.msra.mxu0 0.0
    %2720 = vmatprep.subr.mxu0 0.0
    %2721 = vmatpush2.msra.mxu0 0.0
    %2722 = vmatprep.subr.mxu0 0.0
    %2723 = vmatpush2.msra.mxu0 0.0
    %2724 = vmatprep.subr.mxu0 0.0
    %2725 = vmatpush2.msra.mxu0 0.0
    %2726 = vmatprep.mubr.f32.mxu0 0.0
    %2727 = vmatmul.mubr.f32.gmra.mxu0 %v2657
    %v2728 = vpop.f32.mrf.mxu0
    %v2729 = vadd.f32 0.0, %v2728
    %v2730 = vpop.f32.mrf.mxu0
    %2731 = vmatprep.mubr.f32.mxu0 0.0
    %2732 = vmatmul.mubr.f32.gmra.mxu0 %v2660
    %v2733 = vpop.f32.mrf.mxu0
    %v2734 = vadd.f32 0.0, %v2733
    %v2735 = vpop.f32.mrf.mxu0
    %2736 = vdwg.mxu0
    %v2738 = vsel %vm769, %v2571, 0
    %v2741 = vsel %vm769, %v2572, 0
    %2743 = vmatprep.subr.mxu0 0.0
    %2744 = vmatpush1.msra.mxu0 0.0
    %2745 = vmatprep.subr.mxu0 0.0
    %2746 = vmatpush1.msra.mxu0 0.0
    %2747 = vmatprep.subr.mxu0 0.0
    %2748 = vmatpush1.msra.mxu0 0.0
    %2749 = vmatprep.subr.mxu0 0.0
    %2750 = vmatpush1.msra.mxu0 0.0
    %2751 = vmatprep.subr.mxu0 0.0
    %2752 = vmatpush1.msra.mxu0 0.0
    %2753 = vmatprep.subr.mxu0 0.0
    %2754 = vmatpush1.msra.mxu0 0.0
    %2755 = vmatprep.subr.mxu0 0.0
    %2756 = vmatpush1.msra.mxu0 0.0
    %2757 = vmatprep.subr.mxu0 0.0
    %2758 = vmatpush1.msra.mxu0 0.0
    %2759 = vmatprep.subr.mxu0 0.0
    %2760 = vmatpush1.msra.mxu0 0.0
    %2761 = vmatprep.subr.mxu0 0.0
    %2762 = vmatpush1.msra.mxu0 0.0
    %2763 = vmatprep.subr.mxu0 0.0
    %2764 = vmatpush1.msra.mxu0 0.0
    %2765 = vmatprep.subr.mxu0 0.0
    %2766 = vmatpush1.msra.mxu0 0.0
    %2767 = vmatprep.subr.mxu0 0.0
    %2768 = vmatpush1.msra.mxu0 0.0
    %2769 = vmatprep.subr.mxu0 0.0
    %2770 = vmatpush1.msra.mxu0 0.0
    %2771 = vmatprep.subr.mxu0 0.0
    %2772 = vmatpush1.msra.mxu0 %v1839
    %2773 = vmatprep.subr.mxu0 0.0
    %2774 = vmatpush1.msra.mxu0 %v1838
    %2775 = vmatprep.subr.mxu0 0.0
    %2776 = vmatpush2.msra.mxu0 0.0
    %2777 = vmatprep.subr.mxu0 0.0
    %2778 = vmatpush2.msra.mxu0 0.0
    %2779 = vmatprep.subr.mxu0 0.0
    %2780 = vmatpush2.msra.mxu0 0.0
    %2781 = vmatprep.subr.mxu0 0.0
    %2782 = vmatpush2.msra.mxu0 0.0
    %2783 = vmatprep.subr.mxu0 0.0
    %2784 = vmatpush2.msra.mxu0 0.0
    %2785 = vmatprep.subr.mxu0 0.0
    %2786 = vmatpush2.msra.mxu0 0.0
    %2787 = vmatprep.subr.mxu0 0.0
    %2788 = vmatpush2.msra.mxu0 0.0
    %2789 = vmatprep.subr.mxu0 0.0
    %2790 = vmatpush2.msra.mxu0 0.0
    %2791 = vmatprep.subr.mxu0 0.0
    %2792 = vmatpush2.msra.mxu0 0.0
    %2793 = vmatprep.subr.mxu0 0.0
    %2794 = vmatpush2.msra.mxu0 0.0
    %2795 = vmatprep.subr.mxu0 0.0
    %2796 = vmatpush2.msra.mxu0 0.0
    %2797 = vmatprep.subr.mxu0 0.0
    %2798 = vmatpush2.msra.mxu0 0.0
    %2799 = vmatprep.subr.mxu0 0.0
    %2800 = vmatpush2.msra.mxu0 0.0
    %2801 = vmatprep.subr.mxu0 0.0
    %2802 = vmatpush2.msra.mxu0 0.0
    %2803 = vmatprep.subr.mxu0 0.0
    %2804 = vmatpush2.msra.mxu0 0.0
    %2805 = vmatprep.subr.mxu0 0.0
    %2806 = vmatpush2.msra.mxu0 0.0
    %2807 = vmatprep.mubr.f32.mxu0 0.0
    %2808 = vmatmul.mubr.f32.gmra.mxu0 %v2738
    %v2809 = vpop.f32.mrf.mxu0
    %v2810 = vadd.f32 0.0, %v2809
    %v2811 = vpop.f32.mrf.mxu0
    %2812 = vmatprep.mubr.f32.mxu0 0.0
    %2813 = vmatmul.mubr.f32.gmra.mxu0 %v2741
    %v2814 = vpop.f32.mrf.mxu0
    %v2815 = vadd.f32 0.0, %v2814
    %v2816 = vpop.f32.mrf.mxu0
    %2817 = vdwg.mxu0
    %v2819 = vsel %vm769, %v2573, 0
    %v2822 = vsel %vm769, %v2574, 0
    %2824 = vmatprep.subr.mxu0 0.0
    %2825 = vmatpush1.msra.mxu0 0.0
    %2826 = vmatprep.subr.mxu0 0.0
    %2827 = vmatpush1.msra.mxu0 0.0
    %2828 = vmatprep.subr.mxu0 0.0
    %2829 = vmatpush1.msra.mxu0 0.0
    %2830 = vmatprep.subr.mxu0 0.0
    %2831 = vmatpush1.msra.mxu0 0.0
    %2832 = vmatprep.subr.mxu0 0.0
    %2833 = vmatpush1.msra.mxu0 0.0
    %2834 = vmatprep.subr.mxu0 0.0
    %2835 = vmatpush1.msra.mxu0 0.0
    %2836 = vmatprep.subr.mxu0 0.0
    %2837 = vmatpush1.msra.mxu0 0.0
    %2838 = vmatprep.subr.mxu0 0.0
    %2839 = vmatpush1.msra.mxu0 0.0
    %2840 = vmatprep.subr.mxu0 0.0
    %2841 = vmatpush1.msra.mxu0 0.0
    %2842 = vmatprep.subr.mxu0 0.0
    %2843 = vmatpush1.msra.mxu0 0.0
    %2844 = vmatprep.subr.mxu0 0.0
    %2845 = vmatpush1.msra.mxu0 0.0
    %2846 = vmatprep.subr.mxu0 0.0
    %2847 = vmatpush1.msra.mxu0 0.0
    %2848 = vmatprep.subr.mxu0 0.0
    %2849 = vmatpush1.msra.mxu0 0.0
    %2850 = vmatprep.subr.mxu0 0.0
    %2851 = vmatpush1.msra.mxu0 0.0
    %2852 = vmatprep.subr.mxu0 0.0
    %2853 = vmatpush1.msra.mxu0 %v1839
    %2854 = vmatprep.subr.mxu0 0.0
    %2855 = vmatpush1.msra.mxu0 %v1838
    %2856 = vmatprep.subr.mxu0 0.0
    %2857 = vmatpush2.msra.mxu0 0.0
    %2858 = vmatprep.subr.mxu0 0.0
    %2859 = vmatpush2.msra.mxu0 0.0
    %2860 = vmatprep.subr.mxu0 0.0
    %2861 = vmatpush2.msra.mxu0 0.0
    %2862 = vmatprep.subr.mxu0 0.0
    %2863 = vmatpush2.msra.mxu0 0.0
    %2864 = vmatprep.subr.mxu0 0.0
    %2865 = vmatpush2.msra.mxu0 0.0
    %2866 = vmatprep.subr.mxu0 0.0
    %2867 = vmatpush2.msra.mxu0 0.0
    %2868 = vmatprep.subr.mxu0 0.0
    %2869 = vmatpush2.msra.mxu0 0.0
    %2870 = vmatprep.subr.mxu0 0.0
    %2871 = vmatpush2.msra.mxu0 0.0
    %2872 = vmatprep.subr.mxu0 0.0
    %2873 = vmatpush2.msra.mxu0 0.0
    %2874 = vmatprep.subr.mxu0 0.0
    %2875 = vmatpush2.msra.mxu0 0.0
    %2876 = vmatprep.subr.mxu0 0.0
    %2877 = vmatpush2.msra.mxu0 0.0
    %2878 = vmatprep.subr.mxu0 0.0
    %2879 = vmatpush2.msra.mxu0 0.0
    %2880 = vmatprep.subr.mxu0 0.0
    %2881 = vmatpush2.msra.mxu0 0.0
    %2882 = vmatprep.subr.mxu0 0.0
    %2883 = vmatpush2.msra.mxu0 0.0
    %2884 = vmatprep.subr.mxu0 0.0
    %2885 = vmatpush2.msra.mxu0 0.0
    %2886 = vmatprep.subr.mxu0 0.0
    %2887 = vmatpush2.msra.mxu0 0.0
    %2888 = vmatprep.mubr.f32.mxu0 0.0
    %2889 = vmatmul.mubr.f32.gmra.mxu0 %v2819
    %v2890 = vpop.f32.mrf.mxu0
    %v2891 = vadd.f32 0.0, %v2890
    %v2892 = vpop.f32.mrf.mxu0
    %2893 = vmatprep.mubr.f32.mxu0 0.0
    %2894 = vmatmul.mubr.f32.gmra.mxu0 %v2822
    %v2895 = vpop.f32.mrf.mxu0
    %v2896 = vadd.f32 0.0, %v2895
    %v2897 = vpop.f32.mrf.mxu0
    %2898 = vdwg.mxu0
    %s2899 = scalar_lea.vmem [#allocation5], 128
    %v2900 = vld [vmem:[%s2899] sm:$0xff]
    %v2901 = vld [vmem:[%s2899 + $0x8] sm:$0xff]
    %v2902 = vld [vmem:[%s2899 + $0x10] sm:$0xff]
    %v2903 = vld [vmem:[%s2899 + $0x18] sm:$0xff]
    %v2904 = vld [vmem:[%s2899 + $0x20] sm:$0xff]
    %v2905 = vld [vmem:[%s2899 + $0x28] sm:$0xff]
    %v2906 = vld [vmem:[%s2899 + $0x30] sm:$0xff]
    %v2907 = vld [vmem:[%s2899 + $0x38] sm:$0xff]
    %v2908 = vld [vmem:[%s2899 + $0x40] sm:$0xff]
    %v2909 = vld [vmem:[%s2899 + $0x48] sm:$0xff]
    %v2910 = vld [vmem:[%s2899 + $0x50] sm:$0xff]
    %v2911 = vld [vmem:[%s2899 + $0x58] sm:$0xff]
    %v2912 = vld [vmem:[%s2899 + $0x60] sm:$0xff]
    %v2913 = vld [vmem:[%s2899 + $0x68] sm:$0xff]
    %v2914 = vld [vmem:[%s2899 + $0x70] sm:$0xff]
    %v2915 = vld [vmem:[%s2899 + $0x78] sm:$0xff]
    %v2917 = vsel %vm79, %v2648, 0
    %v2920 = vsel %vm79, %v2653, 0
    %2922 = vmatprep.subr.mxu0 0.0
    %2923 = vmatpush1.msra.mxu0 0.0
    %2924 = vmatprep.subr.mxu0 0.0
    %2925 = vmatpush1.msra.mxu0 0.0
    %2926 = vmatprep.subr.mxu0 0.0
    %2927 = vmatpush1.msra.mxu0 0.0
    %2928 = vmatprep.subr.mxu0 0.0
    %2929 = vmatpush1.msra.mxu0 0.0
    %2930 = vmatprep.subr.mxu0 0.0
    %2931 = vmatpush1.msra.mxu0 0.0
    %2932 = vmatprep.subr.mxu0 0.0
    %2933 = vmatpush1.msra.mxu0 0.0
    %2934 = vmatprep.subr.mxu0 0.0
    %2935 = vmatpush1.msra.mxu0 0.0
    %2936 = vmatprep.subr.mxu0 0.0
    %2937 = vmatpush1.msra.mxu0 0.0
    %2938 = vmatprep.subr.mxu0 0.0
    %2939 = vmatpush1.msra.mxu0 0.0
    %2940 = vmatprep.subr.mxu0 0.0
    %2941 = vmatpush1.msra.mxu0 0.0
    %2942 = vmatprep.subr.mxu0 0.0
    %2943 = vmatpush1.msra.mxu0 0.0
    %2944 = vmatprep.subr.mxu0 0.0
    %2945 = vmatpush1.msra.mxu0 0.0
    %2946 = vmatprep.subr.mxu0 0.0
    %2947 = vmatpush1.msra.mxu0 %v2903
    %2948 = vmatprep.subr.mxu0 0.0
    %2949 = vmatpush1.msra.mxu0 %v2902
    %2950 = vmatprep.subr.mxu0 0.0
    %2951 = vmatpush1.msra.mxu0 %v2901
    %2952 = vmatprep.subr.mxu0 0.0
    %2953 = vmatpush1.msra.mxu0 %v2900
    %2954 = vmatprep.subr.mxu0 0.0
    %2955 = vmatpush2.msra.mxu0 0.0
    %2956 = vmatprep.subr.mxu0 0.0
    %2957 = vmatpush2.msra.mxu0 0.0
    %2958 = vmatprep.subr.mxu0 0.0
    %2959 = vmatpush2.msra.mxu0 0.0
    %2960 = vmatprep.subr.mxu0 0.0
    %2961 = vmatpush2.msra.mxu0 0.0
    %2962 = vmatprep.subr.mxu0 0.0
    %2963 = vmatpush2.msra.mxu0 0.0
    %2964 = vmatprep.subr.mxu0 0.0
    %2965 = vmatpush2.msra.mxu0 0.0
    %2966 = vmatprep.subr.mxu0 0.0
    %2967 = vmatpush2.msra.mxu0 0.0
    %2968 = vmatprep.subr.mxu0 0.0
    %2969 = vmatpush2.msra.mxu0 0.0
    %2970 = vmatprep.subr.mxu0 0.0
    %2971 = vmatpush2.msra.mxu0 0.0
    %2972 = vmatprep.subr.mxu0 0.0
    %2973 = vmatpush2.msra.mxu0 0.0
    %2974 = vmatprep.subr.mxu0 0.0
    %2975 = vmatpush2.msra.mxu0 0.0
    %2976 = vmatprep.subr.mxu0 0.0
    %2977 = vmatpush2.msra.mxu0 0.0
    %2978 = vmatprep.subr.mxu0 0.0
    %2979 = vmatpush2.msra.mxu0 0.0
    %2980 = vmatprep.subr.mxu0 0.0
    %2981 = vmatpush2.msra.mxu0 0.0
    %2982 = vmatprep.subr.mxu0 0.0
    %2983 = vmatpush2.msra.mxu0 0.0
    %2984 = vmatprep.subr.mxu0 0.0
    %2985 = vmatpush2.msra.mxu0 0.0
    %2986 = vmatprep.mubr.f32.mxu0 0.0
    %2987 = vmatmul.mubr.f32.gmra.mxu0 %v2917
    %v2988 = vpop.f32.mrf.mxu0
    %v2989 = vadd.f32 0.0, %v2988
    %v2990 = vpop.f32.mrf.mxu0
    %2991 = vmatprep.mubr.f32.mxu0 0.0
    %2992 = vmatmul.mubr.f32.gmra.mxu0 %v2920
    %v2993 = vpop.f32.mrf.mxu0
    %v2994 = vadd.f32 0.0, %v2993
    %v2995 = vpop.f32.mrf.mxu0
    %2996 = vdwg.mxu0
    %v2998 = vsel %vm79, %v2729, 0
    %v3001 = vsel %vm79, %v2734, 0
    %3003 = vmatprep.subr.mxu0 0.0
    %3004 = vmatpush1.msra.mxu0 0.0
    %3005 = vmatprep.subr.mxu0 0.0
    %3006 = vmatpush1.msra.mxu0 0.0
    %3007 = vmatprep.subr.mxu0 0.0
    %3008 = vmatpush1.msra.mxu0 0.0
    %3009 = vmatprep.subr.mxu0 0.0
    %3010 = vmatpush1.msra.mxu0 0.0
    %3011 = vmatprep.subr.mxu0 0.0
    %3012 = vmatpush1.msra.mxu0 0.0
    %3013 = vmatprep.subr.mxu0 0.0
    %3014 = vmatpush1.msra.mxu0 0.0
    %3015 = vmatprep.subr.mxu0 0.0
    %3016 = vmatpush1.msra.mxu0 0.0
    %3017 = vmatprep.subr.mxu0 0.0
    %3018 = vmatpush1.msra.mxu0 0.0
    %3019 = vmatprep.subr.mxu0 0.0
    %3020 = vmatpush1.msra.mxu0 0.0
    %3021 = vmatprep.subr.mxu0 0.0
    %3022 = vmatpush1.msra.mxu0 0.0
    %3023 = vmatprep.subr.mxu0 0.0
    %3024 = vmatpush1.msra.mxu0 0.0
    %3025 = vmatprep.subr.mxu0 0.0
    %3026 = vmatpush1.msra.mxu0 0.0
    %3027 = vmatprep.subr.mxu0 0.0
    %3028 = vmatpush1.msra.mxu0 %v2907
    %3029 = vmatprep.subr.mxu0 0.0
    %3030 = vmatpush1.msra.mxu0 %v2906
    %3031 = vmatprep.subr.mxu0 0.0
    %3032 = vmatpush1.msra.mxu0 %v2905
    %3033 = vmatprep.subr.mxu0 0.0
    %3034 = vmatpush1.msra.mxu0 %v2904
    %3035 = vmatprep.subr.mxu0 0.0
    %3036 = vmatpush2.msra.mxu0 0.0
    %3037 = vmatprep.subr.mxu0 0.0
    %3038 = vmatpush2.msra.mxu0 0.0
    %3039 = vmatprep.subr.mxu0 0.0
    %3040 = vmatpush2.msra.mxu0 0.0
    %3041 = vmatprep.subr.mxu0 0.0
    %3042 = vmatpush2.msra.mxu0 0.0
    %3043 = vmatprep.subr.mxu0 0.0
    %3044 = vmatpush2.msra.mxu0 0.0
    %3045 = vmatprep.subr.mxu0 0.0
    %3046 = vmatpush2.msra.mxu0 0.0
    %3047 = vmatprep.subr.mxu0 0.0
    %3048 = vmatpush2.msra.mxu0 0.0
    %3049 = vmatprep.subr.mxu0 0.0
    %3050 = vmatpush2.msra.mxu0 0.0
    %3051 = vmatprep.subr.mxu0 0.0
    %3052 = vmatpush2.msra.mxu0 0.0
    %3053 = vmatprep.subr.mxu0 0.0
    %3054 = vmatpush2.msra.mxu0 0.0
    %3055 = vmatprep.subr.mxu0 0.0
    %3056 = vmatpush2.msra.mxu0 0.0
    %3057 = vmatprep.subr.mxu0 0.0
    %3058 = vmatpush2.msra.mxu0 0.0
    %3059 = vmatprep.subr.mxu0 0.0
    %3060 = vmatpush2.msra.mxu0 0.0
    %3061 = vmatprep.subr.mxu0 0.0
    %3062 = vmatpush2.msra.mxu0 0.0
    %3063 = vmatprep.subr.mxu0 0.0
    %3064 = vmatpush2.msra.mxu0 0.0
    %3065 = vmatprep.subr.mxu0 0.0
    %3066 = vmatpush2.msra.mxu0 0.0
    %3067 = vmatprep.mubr.f32.mxu0 0.0
    %3068 = vmatmul.mubr.f32.gmra.mxu0 %v2998
    %v3069 = vpop.f32.mrf.mxu0
    %v3070 = vadd.f32 0.0, %v3069
    %v3071 = vpop.f32.mrf.mxu0
    %3072 = vmatprep.mubr.f32.mxu0 0.0
    %3073 = vmatmul.mubr.f32.gmra.mxu0 %v3001
    %v3074 = vpop.f32.mrf.mxu0
    %v3075 = vadd.f32 0.0, %v3074
    %v3076 = vpop.f32.mrf.mxu0
    %3077 = vdwg.mxu0
    %v3079 = vsel %vm79, %v2810, 0
    %v3082 = vsel %vm79, %v2815, 0
    %3084 = vmatprep.subr.mxu0 0.0
    %3085 = vmatpush1.msra.mxu0 0.0
    %3086 = vmatprep.subr.mxu0 0.0
    %3087 = vmatpush1.msra.mxu0 0.0
    %3088 = vmatprep.subr.mxu0 0.0
    %3089 = vmatpush1.msra.mxu0 0.0
    %3090 = vmatprep.subr.mxu0 0.0
    %3091 = vmatpush1.msra.mxu0 0.0
    %3092 = vmatprep.subr.mxu0 0.0
    %3093 = vmatpush1.msra.mxu0 0.0
    %3094 = vmatprep.subr.mxu0 0.0
    %3095 = vmatpush1.msra.mxu0 0.0
    %3096 = vmatprep.subr.mxu0 0.0
    %3097 = vmatpush1.msra.mxu0 0.0
    %3098 = vmatprep.subr.mxu0 0.0
    %3099 = vmatpush1.msra.mxu0 0.0
    %3100 = vmatprep.subr.mxu0 0.0
    %3101 = vmatpush1.msra.mxu0 0.0
    %3102 = vmatprep.subr.mxu0 0.0
    %3103 = vmatpush1.msra.mxu0 0.0
    %3104 = vmatprep.subr.mxu0 0.0
    %3105 = vmatpush1.msra.mxu0 0.0
    %3106 = vmatprep.subr.mxu0 0.0
    %3107 = vmatpush1.msra.mxu0 0.0
    %3108 = vmatprep.subr.mxu0 0.0
    %3109 = vmatpush1.msra.mxu0 %v2911
    %3110 = vmatprep.subr.mxu0 0.0
    %3111 = vmatpush1.msra.mxu0 %v2910
    %3112 = vmatprep.subr.mxu0 0.0
    %3113 = vmatpush1.msra.mxu0 %v2909
    %3114 = vmatprep.subr.mxu0 0.0
    %3115 = vmatpush1.msra.mxu0 %v2908
    %3116 = vmatprep.subr.mxu0 0.0
    %3117 = vmatpush2.msra.mxu0 0.0
    %3118 = vmatprep.subr.mxu0 0.0
    %3119 = vmatpush2.msra.mxu0 0.0
    %3120 = vmatprep.subr.mxu0 0.0
    %3121 = vmatpush2.msra.mxu0 0.0
    %3122 = vmatprep.subr.mxu0 0.0
    %3123 = vmatpush2.msra.mxu0 0.0
    %3124 = vmatprep.subr.mxu0 0.0
    %3125 = vmatpush2.msra.mxu0 0.0
    %3126 = vmatprep.subr.mxu0 0.0
    %3127 = vmatpush2.msra.mxu0 0.0
    %3128 = vmatprep.subr.mxu0 0.0
    %3129 = vmatpush2.msra.mxu0 0.0
    %3130 = vmatprep.subr.mxu0 0.0
    %3131 = vmatpush2.msra.mxu0 0.0
    %3132 = vmatprep.subr.mxu0 0.0
    %3133 = vmatpush2.msra.mxu0 0.0
    %3134 = vmatprep.subr.mxu0 0.0
    %3135 = vmatpush2.msra.mxu0 0.0
    %3136 = vmatprep.subr.mxu0 0.0
    %3137 = vmatpush2.msra.mxu0 0.0
    %3138 = vmatprep.subr.mxu0 0.0
    %3139 = vmatpush2.msra.mxu0 0.0
    %3140 = vmatprep.subr.mxu0 0.0
    %3141 = vmatpush2.msra.mxu0 0.0
    %3142 = vmatprep.subr.mxu0 0.0
    %3143 = vmatpush2.msra.mxu0 0.0
    %3144 = vmatprep.subr.mxu0 0.0
    %3145 = vmatpush2.msra.mxu0 0.0
    %3146 = vmatprep.subr.mxu0 0.0
    %3147 = vmatpush2.msra.mxu0 0.0
    %3148 = vmatprep.mubr.f32.mxu0 0.0
    %3149 = vmatmul.mubr.f32.gmra.mxu0 %v3079
    %v3150 = vpop.f32.mrf.mxu0
    %v3151 = vadd.f32 0.0, %v3150
    %v3152 = vpop.f32.mrf.mxu0
    %3153 = vmatprep.mubr.f32.mxu0 0.0
    %3154 = vmatmul.mubr.f32.gmra.mxu0 %v3082
    %v3155 = vpop.f32.mrf.mxu0
    %v3156 = vadd.f32 0.0, %v3155
    %v3157 = vpop.f32.mrf.mxu0
    %3158 = vdwg.mxu0
    %v3160 = vsel %vm79, %v2891, 0
    %v3163 = vsel %vm79, %v2896, 0
    %3165 = vmatprep.subr.mxu0 0.0
    %3166 = vmatpush1.msra.mxu0 0.0
    %3167 = vmatprep.subr.mxu0 0.0
    %3168 = vmatpush1.msra.mxu0 0.0
    %3169 = vmatprep.subr.mxu0 0.0
    %3170 = vmatpush1.msra.mxu0 0.0
    %3171 = vmatprep.subr.mxu0 0.0
    %3172 = vmatpush1.msra.mxu0 0.0
    %3173 = vmatprep.subr.mxu0 0.0
    %3174 = vmatpush1.msra.mxu0 0.0
    %3175 = vmatprep.subr.mxu0 0.0
    %3176 = vmatpush1.msra.mxu0 0.0
    %3177 = vmatprep.subr.mxu0 0.0
    %3178 = vmatpush1.msra.mxu0 0.0
    %3179 = vmatprep.subr.mxu0 0.0
    %3180 = vmatpush1.msra.mxu0 0.0
    %3181 = vmatprep.subr.mxu0 0.0
    %3182 = vmatpush1.msra.mxu0 0.0
    %3183 = vmatprep.subr.mxu0 0.0
    %3184 = vmatpush1.msra.mxu0 0.0
    %3185 = vmatprep.subr.mxu0 0.0
    %3186 = vmatpush1.msra.mxu0 0.0
    %3187 = vmatprep.subr.mxu0 0.0
    %3188 = vmatpush1.msra.mxu0 0.0
    %3189 = vmatprep.subr.mxu0 0.0
    %3190 = vmatpush1.msra.mxu0 %v2915
    %3191 = vmatprep.subr.mxu0 0.0
    %3192 = vmatpush1.msra.mxu0 %v2914
    %3193 = vmatprep.subr.mxu0 0.0
    %3194 = vmatpush1.msra.mxu0 %v2913
    %3195 = vmatprep.subr.mxu0 0.0
    %3196 = vmatpush1.msra.mxu0 %v2912
    %3197 = vmatprep.subr.mxu0 0.0
    %3198 = vmatpush2.msra.mxu0 0.0
    %3199 = vmatprep.subr.mxu0 0.0
    %3200 = vmatpush2.msra.mxu0 0.0
    %3201 = vmatprep.subr.mxu0 0.0
    %3202 = vmatpush2.msra.mxu0 0.0
    %3203 = vmatprep.subr.mxu0 0.0
    %3204 = vmatpush2.msra.mxu0 0.0
    %3205 = vmatprep.subr.mxu0 0.0
    %3206 = vmatpush2.msra.mxu0 0.0
    %3207 = vmatprep.subr.mxu0 0.0
    %3208 = vmatpush2.msra.mxu0 0.0
    %3209 = vmatprep.subr.mxu0 0.0
    %3210 = vmatpush2.msra.mxu0 0.0
    %3211 = vmatprep.subr.mxu0 0.0
    %3212 = vmatpush2.msra.mxu0 0.0
    %3213 = vmatprep.subr.mxu0 0.0
    %3214 = vmatpush2.msra.mxu0 0.0
    %3215 = vmatprep.subr.mxu0 0.0
    %3216 = vmatpush2.msra.mxu0 0.0
    %3217 = vmatprep.subr.mxu0 0.0
    %3218 = vmatpush2.msra.mxu0 0.0
    %3219 = vmatprep.subr.mxu0 0.0
    %3220 = vmatpush2.msra.mxu0 0.0
    %3221 = vmatprep.subr.mxu0 0.0
    %3222 = vmatpush2.msra.mxu0 0.0
    %3223 = vmatprep.subr.mxu0 0.0
    %3224 = vmatpush2.msra.mxu0 0.0
    %3225 = vmatprep.subr.mxu0 0.0
    %3226 = vmatpush2.msra.mxu0 0.0
    %3227 = vmatprep.subr.mxu0 0.0
    %3228 = vmatpush2.msra.mxu0 0.0
    %3229 = vmatprep.mubr.f32.mxu0 0.0
    %3230 = vmatmul.mubr.f32.gmra.mxu0 %v3160
    %v3231 = vpop.f32.mrf.mxu0
    %v3232 = vadd.f32 0.0, %v3231
    %v3233 = vpop.f32.mrf.mxu0
    %3234 = vmatprep.mubr.f32.mxu0 0.0
    %3235 = vmatmul.mubr.f32.gmra.mxu0 %v3163
    %v3236 = vpop.f32.mrf.mxu0
    %v3237 = vadd.f32 0.0, %v3236
    %v3238 = vpop.f32.mrf.mxu0
    %3239 = vdwg.mxu0
    %v3240 = vsel %vm79, %v2989, 0.0
    %v3241 = vsel %vm79, %v3070, 0.0
    %v3242 = vadd.f32 %v3240, %v3241
    %v3243 = vsel %vm79, %v3151, 0.0
    %v3244 = vadd.f32 %v3242, %v3243
    %v3245 = vsel %vm79, %v3232, 0.0
    %v3246 = vadd.f32 %v3244, %v3245
    %v3247 = vsel %vm79, %v2994, 0.0
    %v3248 = vsel %vm79, %v3075, 0.0
    %v3249 = vadd.f32 %v3247, %v3248
    %v3250 = vsel %vm79, %v3156, 0.0
    %v3251 = vadd.f32 %v3249, %v3250
    %v3252 = vsel %vm79, %v3237, 0.0
    %v3253 = vadd.f32 %v3251, %v3252
    %v3254 = vadd.f32 %v1792, %v3246
    %v3255 = vadd.f32 %v1793, %v3253
    %s3256 = scalar_lea.vmem %s6, 1
    %v3257 = vld [vmem:[%s3256] sm:$0x1]
    %v3259 = vlaneseq
    %v3260 = vshrl.u32 %v3259, 7
    %v3261 = vsub.s32 0, %v3260
    %v3262 = vrot.slane %v3257, %v3261
    %v3264 = vadd.f32 %v3254, %v3262
    %v3265 = vadd.f32 %v3255, %v3262
    %s3266 = scalar_lea.vmem %s7, 1
    %v3267 = vld [vmem:[%s3266] sm:$0x1]
    %s3268 = scalar_lea.vmem %s8, 1
    %v3269 = vld [vmem:[%s3268] sm:$0x1]
    %v3270 = vsel %vm79, %v3264, 0.0
    %3271 = vadd.xlane.f32.xlu0 %v3270
    %v3272 = vpop.xlane.xlu0 %3271
    %v3273 = vsel %vm79, %v3265, 0.0
    %3274 = vadd.xlane.f32.xlu0 %v3273
    %v3275 = vpop.xlane.xlu0 %3274
    %v3276 = vmul.f32 %v3272, %v86
    %v3277 = vmul.f32 %v3275, %v86
    %v3278 = vsub.f32 %v3264, %v3276
    %v3279 = vsub.f32 %v3265, %v3277
    %v3280 = vmul.f32 %v3278, %v3278
    %v3281 = vmul.f32 %v3279, %v3279
    %v3282 = vsel %vm79, %v3280, 0.0
    %3283 = vadd.xlane.f32.xlu0 %v3282
    %v3284 = vpop.xlane.xlu0 %3283
    %v3285 = vsel %vm79, %v3281, 0.0
    %3286 = vadd.xlane.f32.xlu0 %v3285
    %v3287 = vpop.xlane.xlu0 %3286
    %v3288 = vmul.f32 %v3284, %v86
    %v3289 = vmul.f32 %v3287, %v86
    %v3290 = vadd.f32 %v3288, 1e-05
    %v3291 = vadd.f32 %v3289, 1e-05
    %v3292 = vrsqrt.pop %v3290
    %v3293 = vrsqrt.pop %v3291
    %v3294 = vmul.f32 %v3278, %v3292
    %v3295 = vmul.f32 %v3279, %v3293
    %v3297 = vlaneseq
    %v3298 = vshrl.u32 %v3297, 7
    %v3299 = vsub.s32 0, %v3298
    %v3300 = vrot.slane %v3267, %v3299
    %v3302 = vmul.f32 %v3294, %v3300
    %v3303 = vmul.f32 %v3295, %v3300
    %v3305 = vlaneseq
    %v3306 = vshrl.u32 %v3305, 7
    %v3307 = vsub.s32 0, %v3306
    %v3308 = vrot.slane %v3269, %v3307
    %v3310 = vadd.f32 %v3302, %v3308
    %v3311 = vadd.f32 %v3303, %v3308
    %s3312 = scalar_lea.vmem %s9, 32
    %v3313 = vld [vmem:[%s3312] sm:$0xff]
    %v3314 = vld [vmem:[%s3312 + $0x8] sm:$0xff]
    %v3315 = vld [vmem:[%s3312 + $0x10] sm:$0xff]
    %v3316 = vld [vmem:[%s3312 + $0x18] sm:$0xff]
    %s3317 = scalar_lea.vmem %s10, 1
    %v3318 = vld [vmem:[%s3317] sm:$0x1]
    %v3320 = vlaneseq
    %v3321 = vshrl.u32 %v3320, 7
    %v3322 = vsub.s32 0, %v3321
    %v3323 = vrot.slane %v3318, %v3322
    %v3326 = vsel %vm79, %v3310, 0
    %v3329 = vsel %vm79, %v3311, 0
    %3331 = vmatprep.subr.mxu0 0.0
    %3332 = vmatpush1.msra.mxu0 0.0
    %3333 = vmatprep.subr.mxu0 0.0
    %3334 = vmatpush1.msra.mxu0 0.0
    %3335 = vmatprep.subr.mxu0 0.0
    %3336 = vmatpush1.msra.mxu0 0.0
    %3337 = vmatprep.subr.mxu0 0.0
    %3338 = vmatpush1.msra.mxu0 0.0
    %3339 = vmatprep.subr.mxu0 0.0
    %3340 = vmatpush1.msra.mxu0 0.0
    %3341 = vmatprep.subr.mxu0 0.0
    %3342 = vmatpush1.msra.mxu0 0.0
    %3343 = vmatprep.subr.mxu0 0.0
    %3344 = vmatpush1.msra.mxu0 0.0
    %3345 = vmatprep.subr.mxu0 0.0
    %3346 = vmatpush1.msra.mxu0 0.0
    %3347 = vmatprep.subr.mxu0 0.0
    %3348 = vmatpush1.msra.mxu0 0.0
    %3349 = vmatprep.subr.mxu0 0.0
    %3350 = vmatpush1.msra.mxu0 0.0
    %3351 = vmatprep.subr.mxu0 0.0
    %3352 = vmatpush1.msra.mxu0 0.0
    %3353 = vmatprep.subr.mxu0 0.0
    %3354 = vmatpush1.msra.mxu0 0.0
    %3355 = vmatprep.subr.mxu0 0.0
    %3356 = vmatpush1.msra.mxu0 %v3316
    %3357 = vmatprep.subr.mxu0 0.0
    %3358 = vmatpush1.msra.mxu0 %v3315
    %3359 = vmatprep.subr.mxu0 0.0
    %3360 = vmatpush1.msra.mxu0 %v3314
    %3361 = vmatprep.subr.mxu0 0.0
    %3362 = vmatpush1.msra.mxu0 %v3313
    %3363 = vmatprep.subr.mxu0 0.0
    %3364 = vmatpush2.msra.mxu0 0.0
    %3365 = vmatprep.subr.mxu0 0.0
    %3366 = vmatpush2.msra.mxu0 0.0
    %3367 = vmatprep.subr.mxu0 0.0
    %3368 = vmatpush2.msra.mxu0 0.0
    %3369 = vmatprep.subr.mxu0 0.0
    %3370 = vmatpush2.msra.mxu0 0.0
    %3371 = vmatprep.subr.mxu0 0.0
    %3372 = vmatpush2.msra.mxu0 0.0
    %3373 = vmatprep.subr.mxu0 0.0
    %3374 = vmatpush2.msra.mxu0 0.0
    %3375 = vmatprep.subr.mxu0 0.0
    %3376 = vmatpush2.msra.mxu0 0.0
    %3377 = vmatprep.subr.mxu0 0.0
    %3378 = vmatpush2.msra.mxu0 0.0
    %3379 = vmatprep.subr.mxu0 0.0
    %3380 = vmatpush2.msra.mxu0 0.0
    %3381 = vmatprep.subr.mxu0 0.0
    %3382 = vmatpush2.msra.mxu0 0.0
    %3383 = vmatprep.subr.mxu0 0.0
    %3384 = vmatpush2.msra.mxu0 0.0
    %3385 = vmatprep.subr.mxu0 0.0
    %3386 = vmatpush2.msra.mxu0 0.0
    %3387 = vmatprep.subr.mxu0 0.0
    %3388 = vmatpush2.msra.mxu0 0.0
    %3389 = vmatprep.subr.mxu0 0.0
    %3390 = vmatpush2.msra.mxu0 0.0
    %3391 = vmatprep.subr.mxu0 0.0
    %3392 = vmatpush2.msra.mxu0 0.0
    %3393 = vmatprep.subr.mxu0 0.0
    %3394 = vmatpush2.msra.mxu0 0.0
    %3395 = vmatprep.mubr.f32.mxu0 0.0
    %3396 = vmatmul.mubr.f32.gmra.mxu0 %v3326
    %v3397 = vpop.f32.mrf.mxu0
    %v3398 = vadd.f32 %v3323, %v3397
    %v3399 = vpop.f32.mrf.mxu0
    %3400 = vmatprep.mubr.f32.mxu0 0.0
    %3401 = vmatmul.mubr.f32.gmra.mxu0 %v3329
    %v3402 = vpop.f32.mrf.mxu0
    %v3403 = vadd.f32 %v3323, %v3402
    %v3404 = vpop.f32.mrf.mxu0
    %3405 = vdwg.mxu0
    %v3406 = vmul.f32 %v3398, 0.5
    %v3407 = vmul.f32 %v3403, 0.5
    %v3408 = vmul.f32 %v3398, 0.70710677
    %v3409 = vmul.f32 %v3403, 0.70710677
    %v3410 = verf.f32.pop %v3408
    %v3411 = verf.f32.pop %v3409
    %v3412 = vadd.f32 %v3410, 1.0
    %v3413 = vadd.f32 %v3411, 1.0
    %v3414 = vmul.f32 %v3406, %v3412
    %v3415 = vmul.f32 %v3407, %v3413
    %s3416 = scalar_lea.vmem %s11, 64
    %v3417 = vld [vmem:[%s3416] sm:$0xff]
    %v3418 = vld [vmem:[%s3416 + $0x8] sm:$0xff]
    %v3419 = vld [vmem:[%s3416 + $0x10] sm:$0xff]
    %v3420 = vld [vmem:[%s3416 + $0x18] sm:$0xff]
    %v3421 = vld [vmem:[%s3416 + $0x20] sm:$0xff]
    %v3422 = vld [vmem:[%s3416 + $0x28] sm:$0xff]
    %v3423 = vld [vmem:[%s3416 + $0x30] sm:$0xff]
    %v3424 = vld [vmem:[%s3416 + $0x38] sm:$0xff]
    %v3426 = vsel %vm1701, %v3414, 0
    %v3429 = vsel %vm1701, %v3415, 0
    %3431 = vmatprep.subr.mxu0 0.0
    %3432 = vmatpush1.msra.mxu0 0.0
    %3433 = vmatprep.subr.mxu0 0.0
    %3434 = vmatpush1.msra.mxu0 0.0
    %3435 = vmatprep.subr.mxu0 0.0
    %3436 = vmatpush1.msra.mxu0 0.0
    %3437 = vmatprep.subr.mxu0 0.0
    %3438 = vmatpush1.msra.mxu0 0.0
    %3439 = vmatprep.subr.mxu0 0.0
    %3440 = vmatpush1.msra.mxu0 0.0
    %3441 = vmatprep.subr.mxu0 0.0
    %3442 = vmatpush1.msra.mxu0 0.0
    %3443 = vmatprep.subr.mxu0 0.0
    %3444 = vmatpush1.msra.mxu0 0.0
    %3445 = vmatprep.subr.mxu0 0.0
    %3446 = vmatpush1.msra.mxu0 0.0
    %3447 = vmatprep.subr.mxu0 0.0
    %3448 = vmatpush1.msra.mxu0 %v3424
    %3449 = vmatprep.subr.mxu0 0.0
    %3450 = vmatpush1.msra.mxu0 %v3423
    %3451 = vmatprep.subr.mxu0 0.0
    %3452 = vmatpush1.msra.mxu0 %v3422
    %3453 = vmatprep.subr.mxu0 0.0
    %3454 = vmatpush1.msra.mxu0 %v3421
    %3455 = vmatprep.subr.mxu0 0.0
    %3456 = vmatpush1.msra.mxu0 %v3420
    %3457 = vmatprep.subr.mxu0 0.0
    %3458 = vmatpush1.msra.mxu0 %v3419
    %3459 = vmatprep.subr.mxu0 0.0
    %3460 = vmatpush1.msra.mxu0 %v3418
    %3461 = vmatprep.subr.mxu0 0.0
    %3462 = vmatpush1.msra.mxu0 %v3417
    %3463 = vmatprep.subr.mxu0 0.0
    %3464 = vmatpush2.msra.mxu0 0.0
    %3465 = vmatprep.subr.mxu0 0.0
    %3466 = vmatpush2.msra.mxu0 0.0
    %3467 = vmatprep.subr.mxu0 0.0
    %3468 = vmatpush2.msra.mxu0 0.0
    %3469 = vmatprep.subr.mxu0 0.0
    %3470 = vmatpush2.msra.mxu0 0.0
    %3471 = vmatprep.subr.mxu0 0.0
    %3472 = vmatpush2.msra.mxu0 0.0
    %3473 = vmatprep.subr.mxu0 0.0
    %3474 = vmatpush2.msra.mxu0 0.0
    %3475 = vmatprep.subr.mxu0 0.0
    %3476 = vmatpush2.msra.mxu0 0.0
    %3477 = vmatprep.subr.mxu0 0.0
    %3478 = vmatpush2.msra.mxu0 0.0
    %3479 = vmatprep.subr.mxu0 0.0
    %3480 = vmatpush2.msra.mxu0 0.0
    %3481 = vmatprep.subr.mxu0 0.0
    %3482 = vmatpush2.msra.mxu0 0.0
    %3483 = vmatprep.subr.mxu0 0.0
    %3484 = vmatpush2.msra.mxu0 0.0
    %3485 = vmatprep.subr.mxu0 0.0
    %3486 = vmatpush2.msra.mxu0 0.0
    %3487 = vmatprep.subr.mxu0 0.0
    %3488 = vmatpush2.msra.mxu0 0.0
    %3489 = vmatprep.subr.mxu0 0.0
    %3490 = vmatpush2.msra.mxu0 0.0
    %3491 = vmatprep.subr.mxu0 0.0
    %3492 = vmatpush2.msra.mxu0 0.0
    %3493 = vmatprep.subr.mxu0 0.0
    %3494 = vmatpush2.msra.mxu0 0.0
    %3495 = vmatprep.mubr.f32.mxu0 0.0
    %3496 = vmatmul.mubr.f32.gmra.mxu0 %v3426
    %v3497 = vpop.f32.mrf.mxu0
    %v3498 = vadd.f32 0.0, %v3497
    %v3499 = vpop.f32.mrf.mxu0
    %3500 = vmatprep.mubr.f32.mxu0 0.0
    %3501 = vmatmul.mubr.f32.gmra.mxu0 %v3429
    %v3502 = vpop.f32.mrf.mxu0
    %v3503 = vadd.f32 0.0, %v3502
    %v3504 = vpop.f32.mrf.mxu0
    %3505 = vdwg.mxu0
    %v3506 = vadd.f32 %v3264, %v3498
    %v3507 = vadd.f32 %v3265, %v3503
    %s3508 = scalar_lea.vmem %s12, 1
    %v3509 = vld [vmem:[%s3508] sm:$0x1]
    %v3511 = vlaneseq
    %v3512 = vshrl.u32 %v3511, 7
    %v3513 = vsub.s32 0, %v3512
    %v3514 = vrot.slane %v3509, %v3513
    %v3516 = vadd.f32 %v3506, %v3514
    %v3517 = vadd.f32 %v3507, %v3514
    %3518 = vst.msk [vmem:[#allocation7] sm:$0xff] %vm79, %v3516
    %3519 = vst.msk [vmem:[#allocation7 + $0x8] sm:$0xff] %vm79, %v3517
    // Predicated region
    $region62: #{transformer_forward.1} parent=1 // pred_check
      _
    $region63: #{transformer_forward.1} parent=1 // pred_check_branch
      %3521 = sbr.rel (0) target = $region65
    $region64: #{transformer_forward.1} parent=1 // pred_region
      %s3523 = ssub.s32 256, 256
      %3524 = vsyncadd [#allocation4], %s3523
      %s3525 = sshll.u32 [#allocation7], 4
      %s3526 = int_to_ptr.vmem [resolvable:$true] %s3525
      %3531 = dma.vmem_to_hbm [thread:$0]  %s3526, 256, %s13, [#allocation4], 128, 128, 8
    $region65: #{transformer_forward.1} parent=1 // pred_fallthru
      _
    // Predicated region
    $region66: #{transformer_forward.1} parent=1 // pred_check
      _
    $region67: #{transformer_forward.1} parent=1 // pred_check_branch
      %3533 = sbr.rel (0) target = $region69
    $region68: #{transformer_forward.1} parent=1 // pred_region
      %3534 = dma.done [#allocation4], 256
    $region69: #{transformer_forward.1} parent=1 // pred_fallthru
      _
    %3535 = vsyncpa [#allocation3], 1
    %3536 = vsyncpa [#allocation6], 1
    %3537 = vsyncpa [#allocation4], 1

</llo_original>
